<compile_context>
chip_gen: v7x
topology: tpu7x:2x2x1
jax: 0.10.0
libtpu: 0.0.40
codegen_flags: <defaults>
</compile_context>

<pallas_src>
import functools

import jax
import jax.numpy as jnp
from jax import lax
from jax.experimental import pallas as pl
from jax.experimental.pallas import tpu as pltpu


# ----------------------------------------------------------------------------
# Decoder.forward == identity (empty nn.Sequential)
# ----------------------------------------------------------------------------
def decoder_forward(x):
    """Exact Decoder.forward: self.layers is an empty Sequential -> identity.

    Per perf feedback, no Pallas copy kernel is launched for a semantic no-op.
    """
    return x


# ----------------------------------------------------------------------------
# TConvBnActivation: fused polyphase transposed-conv + BN(eval) + ReLU kernel
# ----------------------------------------------------------------------------
def _tconv_poly_kernel(x_ref, wp_ref, sc_ref, sh_ref, e0_ref, e1_ref, o_ref, *,
                       n_ic, n_oc, img_h, rows_per_step, n_bands):
    """One (batch, H-band) grid step.

    For every input row i of the band, emit the two final output rows
    (2i, 2i+1) of the stride-2 transposed conv with BN + ReLU fused.
    """
    wp = wp_ref[...]                       # (4*OC, 4*IC) bf16, resident weights
    sc = sc_ref[...]                       # (4*OC, 1) f32  BN scale per phase row
    sh = sh_ref[...]                       # (4*OC, 1) f32  BN shift
    e0 = e0_ref[...]                       # (W, OW) f32: GEMM col j -> out col 2j
    e1 = e1_ref[...]                       # (W, OW) f32: GEMM col j -> out col 2j+1
    zcol = jnp.zeros((n_ic, 1), jnp.bfloat16)
    base = 0 if n_bands == 1 else pl.program_id(1) * rows_per_step

    def emit_row_pair(r, base_row):
        i = base_row + r                                        # global input row
        # In-kernel bf16 cast of the input rows (no wrapper cast pass).
        x00 = x_ref[0, :, i, :].astype(jnp.bfloat16)            # x[:, i, j]
        x01 = jnp.concatenate([x00[:, 1:], zcol], axis=1)       # x[:, i, j+1]
        if isinstance(i, int):
            nxt = min(i + 1, img_h - 1)
        else:
            nxt = jnp.minimum(i + 1, img_h - 1)
        xr1 = x_ref[0, :, nxt, :].astype(jnp.bfloat16)
        x10 = jnp.where(i + 1 < img_h, xr1, jnp.zeros_like(xr1))  # x[:, i+1, j]
        x11 = jnp.concatenate([x10[:, 1:], zcol], axis=1)         # x[:, i+1, j+1]
        rhs = jnp.concatenate([x00, x01, x10, x11], axis=0)       # (4*IC, W)

        # One MXU GEMM for all four output parities of this row pair, f32 acc,
        # then fused BatchNorm (f32 scale/shift) + ReLU.
        acc = jnp.dot(wp, rhs, preferred_element_type=jnp.float32)   # (4*OC, W)
        y = jnp.maximum(acc * sc + sh, 0.0)

        # Column-parity interleave with constant 0/1 matmuls: keeps every store
        # a dense lane-contiguous (OC, OW) row write (no reshapes / striding).
        # Row blocks of `y`: [EE, OE] -> even output columns, [EO, OO] -> odd.
        res = (jnp.dot(y[:2 * n_oc], e0, preferred_element_type=jnp.float32) +
               jnp.dot(y[2 * n_oc:], e1, preferred_element_type=jnp.float32))
        o_ref[0, :, 2 * r, :] = res[:n_oc].astype(o_ref.dtype)        # row 2i
        o_ref[0, :, 2 * r + 1, :] = res[n_oc:].astype(o_ref.dtype)    # row 2i+1

    if rows_per_step <= 32:
        for r in range(rows_per_step):         # static unroll for small bands
            emit_row_pair(r, base)
    else:
        def _body(r, carry):
            emit_row_pair(r, base)
            return carry
        lax.fori_loop(0, rows_per_step, _body, 0)


def _vmem_params():
    """(band-size VMEM budget, vmem_limit_bytes), generation aware."""
    cap = 0
    try:
        cap = int(getattr(pltpu.get_tpu_info(), "vmem_capacity_bytes", 0))
    except Exception:
        cap = 0
    if cap >= 100 * (1 << 20):          # v5e / v6e: 128 MiB physical VMEM
        return 24 * (1 << 20), 64 * (1 << 20)
    # v7x (64 MiB per TensorCore) or unknown: stay conservative.
    return 12 * (1 << 20), 40 * (1 << 20)


def _pick_row_band(n, ic, oc, h, w, budget_bytes):
    """Input rows processed per grid step.

    Must divide H; 2*th must be a multiple of 8 (or th == H) so the output
    block stays sublane aligned.  Prefers >=2 total grid steps so both v7x
    TensorCores get work.
    """
    ow = 2 * w
    fixed = (2 * ic * h * w * 4            # full-image input block (dbl-buffered)
             + 2 * 16 * oc * ic * 2        # (4*OC, 4*IC) bf16 weights
             + 2 * 2 * w * ow * 4          # interleave matrices
             + 64 * 1024)

    def fits(th):
        return fixed + 2 * (oc * 2 * th * ow * 4) <= budget_bytes

    cands = [d for d in range(h, 0, -1) if h % d == 0 and (d == h or d % 4 == 0)]
    th = next((d for d in cands if fits(d)), cands[-1])
    if n * (h // th) < 2:                  # guarantee a 2-way parallel split
        th = next((d for d in cands if d < th and fits(d)), th)
    return th


def tconv_bn_act_forward(x, weight, gamma, beta, running_mean, running_var,
                         kernel_size=3, stride=2, eps=1e-5):
    """TConvBnActivation forward (eval-mode BN), NCHW in / NCHW out.

    x: (N, IC, H, W); weight: (IC, OC, K, K) (PyTorch ConvTranspose2d layout).
    """
    if kernel_size != 3 or stride != 2:
        raise NotImplementedError("polyphase kernel assumes K=3, stride=2")
    N, IC, H, W = x.shape
    OC = weight.shape[1]
    OH, OW = 2 * H, 2 * W

    # BatchNorm2d eval-mode running stats; scale applied post-matmul in f32.
    scale = (gamma / jnp.sqrt(running_var + eps)).astype(jnp.float32)
    shift = (beta - running_mean * scale).astype(jnp.float32)

    # Polyphase weight matrix: rows = [EE, OE, EO, OO] x OC, column blocks =
    # [x(i,j) | x(i,j+1) | x(i+1,j) | x(i+1,j+1)] x IC (output-parity taps).
    wt = jnp.transpose(weight, (1, 0, 2, 3)).astype(jnp.float32)   # (OC, IC, K, K)
    z = jnp.zeros((OC, IC), jnp.float32)
    row_ee = jnp.concatenate([wt[:, :, 1, 1], z, z, z], axis=1)
    row_oe = jnp.concatenate([wt[:, :, 2, 1], z, wt[:, :, 0, 1], z], axis=1)
    row_eo = jnp.concatenate([wt[:, :, 1, 2], wt[:, :, 1, 0], z, z], axis=1)
    row_oo = jnp.concatenate([wt[:, :, 2, 2], wt[:, :, 2, 0],
                              wt[:, :, 0, 2], wt[:, :, 0, 0]], axis=1)
    wp = jnp.concatenate([row_ee, row_oe, row_eo, row_oo],
                         axis=0).astype(jnp.bfloat16)               # (4*OC, 4*IC)

    sc4 = jnp.tile(scale, 4)[:, None]                               # (4*OC, 1)
    sh4 = jnp.tile(shift, 4)[:, None]

    # Constant 0/1 interleave matrices (even / odd output columns).
    ow_idx = jnp.arange(OW)[None, :]
    w_idx = jnp.arange(W)[:, None]
    e0 = (ow_idx == 2 * w_idx).astype(jnp.float32)                  # (W, OW)
    e1 = (ow_idx == 2 * w_idx + 1).astype(jnp.float32)

    budget, vmem_limit = _vmem_params()
    th = _pick_row_band(N, IC, OC, H, W, budget)
    nb = H // th

    kernel = functools.partial(
        _tconv_poly_kernel,
        n_ic=IC, n_oc=OC, img_h=H, rows_per_step=th, n_bands=nb)

    out = pl.pallas_call(
        kernel,
        out_shape=jax.ShapeDtypeStruct((N, OC, OH, OW), x.dtype),
        grid=(N, nb),
        in_specs=[
            pl.BlockSpec((1, IC, H, W), lambda n, g: (n, 0, 0, 0)),   # full image
            pl.BlockSpec((4 * OC, 4 * IC), lambda n, g: (0, 0)),      # weights
            pl.BlockSpec((4 * OC, 1), lambda n, g: (0, 0)),           # BN scale
            pl.BlockSpec((4 * OC, 1), lambda n, g: (0, 0)),           # BN shift
            pl.BlockSpec((W, OW), lambda n, g: (0, 0)),               # interleave E0
            pl.BlockSpec((W, OW), lambda n, g: (0, 0)),               # interleave E1
        ],
        out_specs=pl.BlockSpec((1, OC, 2 * th, OW), lambda n, g: (n, 0, g, 0)),
        compiler_params=pltpu.CompilerParams(
            dimension_semantics=("parallel", "parallel"),
            vmem_limit_bytes=vmem_limit),
    )(x, wp, sc4, sh4, e0, e1)
    return out


# ----------------------------------------------------------------------------
# Pure-JAX reference (PyTorch semantics) for verification
# ----------------------------------------------------------------------------
def _tconv_bn_act_reference(x, weight, gamma, beta, running_mean, running_var,
                            kernel_size=3, stride=2, eps=1e-5):
    K = kernel_size
    pad = K // 2
    lo = K - 1 - pad
    hi = K - 1 - pad + 1                      # + output_padding
    w_conv = jnp.transpose(weight[:, :, ::-1, ::-1], (1, 0, 2, 3))  # (OC, IC, K, K)
    y = lax.conv_general_dilated(
        x, w_conv, window_strides=(1, 1),
        padding=[(lo, hi), (lo, hi)], lhs_dilation=(stride, stride),
        dimension_numbers=("NCHW", "OIHW", "NCHW"))
    scale = gamma / jnp.sqrt(running_var + eps)
    shift = beta - running_mean * scale
    y = y * scale[None, :, None, None] + shift[None, :, None, None]
    return jnp.maximum(y, 0.0)


if __name__ == "__main__":
    key = jax.random.PRNGKey(0)
    k1, k2, k3 = jax.random.split(key, 3)

    # ---- Decoder(layers_num=2, in_channels=4): forward is the identity -----
    x_dec = jax.random.normal(k1, (2, 4, 16, 16), dtype=jnp.float32)
    y_dec = jax.block_until_ready(decoder_forward(x_dec))
    assert y_dec.shape == x_dec.shape
    assert jnp.allclose(y_dec, x_dec), "Decoder identity mismatch"

    # ---- dependent TConvBnActivation block (IC=4 -> OC=2, 8x8 -> 16x16) ----
    x_t = jax.random.normal(k2, (2, 4, 8, 8), dtype=jnp.float32)
    w_t = 0.1 * jax.random.normal(k3, (4, 2, 3, 3), dtype=jnp.float32)
    gamma = jnp.ones((2,), jnp.float32)          # BatchNorm2d default init
    beta = jnp.zeros((2,), jnp.float32)
    r_mean = jnp.zeros((2,), jnp.float32)
    r_var = jnp.ones((2,), jnp.float32)

    y_k = jax.block_until_ready(
        tconv_bn_act_forward(x_t, w_t, gamma, beta, r_mean, r_var))
    y_r = _tconv_bn_act_reference(x_t, w_t, gamma, beta, r_mean, r_var)
    assert y_k.shape == (2, 2, 16, 16)
    assert jnp.allclose(y_k, y_r, atol=2e-2, rtol=2e-2), "TConvBnActivation mismatch"

    print("KERNEL_OK")
</pallas_src>

<mosaic_0001>
module attributes {stable_mosaic.version = 11 : i64} {
  func.func @_tconv_poly_kernel(%arg0: i32, %arg1: i32, %arg2: memref<1x4x8x8xf32, #tpu.memory_space<vmem>>, %arg3: memref<8x16xbf16, #tpu.memory_space<vmem>>, %arg4: memref<8x1xf32, #tpu.memory_space<vmem>>, %arg5: memref<8x1xf32, #tpu.memory_space<vmem>>, %arg6: memref<8x16xf32, #tpu.memory_space<vmem>>, %arg7: memref<8x16xf32, #tpu.memory_space<vmem>>, %arg8: memref<1x2x16x16xf32, #tpu.memory_space<vmem>>) attributes {dimension_semantics = [#tpu.dimension_semantics<parallel>, #tpu.dimension_semantics<parallel>], iteration_bounds = array<i64: 2, 1>, scalar_prefetch = 0 : i64, scratch_operands = 0 : i64, tpu.core_type = #tpu.core_type<tc>, window_params = [{transform_indices = @transform_0, window_bounds = array<i64: 1, 4, 8, 8>}, {pipeline_mode = #tpu.pipeline_mode<synchronous>, transform_indices = @transform_1, window_bounds = array<i64: 8, 16>}, {pipeline_mode = #tpu.pipeline_mode<synchronous>, transform_indices = @transform_2, window_bounds = array<i64: 8, 1>}, {pipeline_mode = #tpu.pipeline_mode<synchronous>, transform_indices = @transform_3, window_bounds = array<i64: 8, 1>}, {pipeline_mode = #tpu.pipeline_mode<synchronous>, transform_indices = @transform_4, window_bounds = array<i64: 8, 16>}, {pipeline_mode = #tpu.pipeline_mode<synchronous>, transform_indices = @transform_5, window_bounds = array<i64: 8, 16>}, {transform_indices = @transform_6, window_bounds = array<i64: 1, 2, 16, 16>}]} {
    %c0 = arith.constant 0 : index
    %c0_0 = arith.constant 0 : index
    %0 = vector.load %arg3[%c0, %c0_0] : memref<8x16xbf16, #tpu.memory_space<vmem>>, vector<8x16xbf16>
    %c0_1 = arith.constant 0 : index
    %c0_2 = arith.constant 0 : index
    %1 = vector.load %arg4[%c0_1, %c0_2] : memref<8x1xf32, #tpu.memory_space<vmem>>, vector<8x1xf32>
    %c0_3 = arith.constant 0 : index
    %c0_4 = arith.constant 0 : index
    %2 = vector.load %arg5[%c0_3, %c0_4] : memref<8x1xf32, #tpu.memory_space<vmem>>, vector<8x1xf32>
    %c0_5 = arith.constant 0 : index
    %c0_6 = arith.constant 0 : index
    %3 = vector.load %arg6[%c0_5, %c0_6] : memref<8x16xf32, #tpu.memory_space<vmem>>, vector<8x16xf32>
    %c0_7 = arith.constant 0 : index
    %c0_8 = arith.constant 0 : index
    %4 = vector.load %arg7[%c0_7, %c0_8] : memref<8x16xf32, #tpu.memory_space<vmem>>, vector<8x16xf32>
    %cst = arith.constant 0.000000e+00 : bf16
    %5 = vector.broadcast %cst : bf16 to vector<4x1xbf16>
    %c0_9 = arith.constant 0 : index
    %c0_10 = arith.constant 0 : index
    %c0_11 = arith.constant 0 : index
    %c0_12 = arith.constant 0 : index
    %6 = vector.load %arg2[%c0_9, %c0_10, %c0_11, %c0_12] : memref<1x4x8x8xf32, #tpu.memory_space<vmem>>, vector<1x4x1x8xf32>
    %7 = vector.shape_cast %6 : vector<1x4x1x8xf32> to vector<4x8xf32>
    %8 = arith.truncf %7 : vector<4x8xf32> to vector<4x8xbf16>
    %9 = vector.extract_strided_slice %8 {offsets = [0, 1], sizes = [4, 7], strides = [1, 1]} : vector<4x8xbf16> to vector<4x7xbf16>
    %10 = tpu.concatenate %9, %5 in 1 : vector<4x7xbf16>, vector<4x1xbf16> -> vector<4x8xbf16>
    %c0_13 = arith.constant 0 : index
    %c0_14 = arith.constant 0 : index
    %c1 = arith.constant 1 : index
    %c0_15 = arith.constant 0 : index
    %11 = vector.load %arg2[%c0_13, %c0_14, %c1, %c0_15] : memref<1x4x8x8xf32, #tpu.memory_space<vmem>>, vector<1x4x1x8xf32>
    %12 = vector.shape_cast %11 : vector<1x4x1x8xf32> to vector<4x8xf32>
    %13 = arith.truncf %12 : vector<4x8xf32> to vector<4x8xbf16>
    %cst_16 = arith.constant 0.000000e+00 : bf16
    %14 = vector.broadcast %cst_16 : bf16 to vector<4x8xbf16>
    %true = arith.constant true
    %15 = arith.select %true, %13, %14 : vector<4x8xbf16>
    %16 = vector.extract_strided_slice %15 {offsets = [0, 1], sizes = [4, 7], strides = [1, 1]} : vector<4x8xbf16> to vector<4x7xbf16>
    %17 = tpu.concatenate %16, %5 in 1 : vector<4x7xbf16>, vector<4x1xbf16> -> vector<4x8xbf16>
    %18 = tpu.concatenate %8, %10, %15, %17 in 0 : vector<4x8xbf16>, vector<4x8xbf16>, vector<4x8xbf16>, vector<4x8xbf16> -> vector<16x8xbf16>
    %cst_17 = arith.constant dense<0.000000e+00> : vector<8x8xf32>
    %19 = tpu.matmul %0, %18, %cst_17 {dimension_numbers = #tpu.dot_dimension_numbers<[1], [0], [0], [1], [0, 0, 1, 1], [], []>} : vector<8x16xbf16>, vector<16x8xbf16>, vector<8x8xf32> -> vector<8x8xf32>
    %20 = vector.broadcast %1 : vector<8x1xf32> to vector<8x8xf32>
    %21 = arith.mulf %19, %20 : vector<8x8xf32>
    %22 = vector.broadcast %2 : vector<8x1xf32> to vector<8x8xf32>
    %23 = arith.addf %21, %22 : vector<8x8xf32>
    %cst_18 = arith.constant 0.000000e+00 : f32
    %24 = vector.broadcast %cst_18 : f32 to vector<8x8xf32>
    %25 = arith.maximumf %23, %24 : vector<8x8xf32>
    %26 = vector.extract_strided_slice %25 {offsets = [0, 0], sizes = [4, 8], strides = [1, 1]} : vector<8x8xf32> to vector<4x8xf32>
    %cst_19 = arith.constant dense<0.000000e+00> : vector<4x16xf32>
    %27 = tpu.matmul %26, %3, %cst_19 {dimension_numbers = #tpu.dot_dimension_numbers<[1], [0], [0], [1], [0, 0, 1, 1], [], []>} : vector<4x8xf32>, vector<8x16xf32>, vector<4x16xf32> -> vector<4x16xf32>
    %28 = vector.extract_strided_slice %25 {offsets = [4, 0], sizes = [4, 8], strides = [1, 1]} : vector<8x8xf32> to vector<4x8xf32>
    %cst_20 = arith.constant dense<0.000000e+00> : vector<4x16xf32>
    %29 = tpu.matmul %28, %4, %cst_20 {dimension_numbers = #tpu.dot_dimension_numbers<[1], [0], [0], [1], [0, 0, 1, 1], [], []>} : vector<4x8xf32>, vector<8x16xf32>, vector<4x16xf32> -> vector<4x16xf32>
    %30 = arith.addf %27, %29 : vector<4x16xf32>
    %31 = vector.extract_strided_slice %30 {offsets = [0, 0], sizes = [2, 16], strides = [1, 1]} : vector<4x16xf32> to vector<2x16xf32>
    %c0_21 = arith.constant 0 : index
    %c0_22 = arith.constant 0 : index
    %c0_23 = arith.constant 0 : index
    %c0_24 = arith.constant 0 : index
    %32 = vector.load %arg8[%c0_21, %c0_22, %c0_23, %c0_24] : memref<1x2x16x16xf32, #tpu.memory_space<vmem>>, vector<1x2x1x16xf32>
    %33 = vector.shape_cast %32 : vector<1x2x1x16xf32> to vector<2x16xf32>
    %34 = vector.shape_cast %31 : vector<2x16xf32> to vector<1x2x1x16xf32>
    tpu.vector_store %arg8[%c0_21, %c0_22, %c0_23, %c0_24], %34 {strides = array<i32>} : memref<1x2x16x16xf32, #tpu.memory_space<vmem>>, vector<1x2x1x16xf32>,
    %35 = vector.extract_strided_slice %30 {offsets = [2, 0], sizes = [2, 16], strides = [1, 1]} : vector<4x16xf32> to vector<2x16xf32>
    %c0_25 = arith.constant 0 : index
    %c0_26 = arith.constant 0 : index
    %c1_27 = arith.constant 1 : index
    %c0_28 = arith.constant 0 : index
    %36 = vector.load %arg8[%c0_25, %c0_26, %c1_27, %c0_28] : memref<1x2x16x16xf32, #tpu.memory_space<vmem>>, vector<1x2x1x16xf32>
    %37 = vector.shape_cast %36 : vector<1x2x1x16xf32> to vector<2x16xf32>
    %38 = vector.shape_cast %35 : vector<2x16xf32> to vector<1x2x1x16xf32>
    tpu.vector_store %arg8[%c0_25, %c0_26, %c1_27, %c0_28], %38 {strides = array<i32>} : memref<1x2x16x16xf32, #tpu.memory_space<vmem>>, vector<1x2x1x16xf32>,
    %c0_29 = arith.constant 0 : index
    %c0_30 = arith.constant 0 : index
    %c1_31 = arith.constant 1 : index
    %c0_32 = arith.constant 0 : index
    %39 = vector.load %arg2[%c0_29, %c0_30, %c1_31, %c0_32] : memref<1x4x8x8xf32, #tpu.memory_space<vmem>>, vector<1x4x1x8xf32>
    %40 = vector.shape_cast %39 : vector<1x4x1x8xf32> to vector<4x8xf32>
    %41 = arith.truncf %40 : vector<4x8xf32> to vector<4x8xbf16>
    %42 = vector.extract_strided_slice %41 {offsets = [0, 1], sizes = [4, 7], strides = [1, 1]} : vector<4x8xbf16> to vector<4x7xbf16>
    %43 = tpu.concatenate %42, %5 in 1 : vector<4x7xbf16>, vector<4x1xbf16> -> vector<4x8xbf16>
    %c0_33 = arith.constant 0 : index
    %c0_34 = arith.constant 0 : index
    %c2 = arith.constant 2 : index
    %c0_35 = arith.constant 0 : index
    %44 = vector.load %arg2[%c0_33, %c0_34, %c2, %c0_35] : memref<1x4x8x8xf32, #tpu.memory_space<vmem>>, vector<1x4x1x8xf32>
    %45 = vector.shape_cast %44 : vector<1x4x1x8xf32> to vector<4x8xf32>
    %46 = arith.truncf %45 : vector<4x8xf32> to vector<4x8xbf16>
    %cst_36 = arith.constant 0.000000e+00 : bf16
    %47 = vector.broadcast %cst_36 : bf16 to vector<4x8xbf16>
    %true_37 = arith.constant true
    %48 = arith.select %true_37, %46, %47 : vector<4x8xbf16>
    %49 = vector.extract_strided_slice %48 {offsets = [0, 1], sizes = [4, 7], strides = [1, 1]} : vector<4x8xbf16> to vector<4x7xbf16>
    %50 = tpu.concatenate %49, %5 in 1 : vector<4x7xbf16>, vector<4x1xbf16> -> vector<4x8xbf16>
    %51 = tpu.concatenate %41, %43, %48, %50 in 0 : vector<4x8xbf16>, vector<4x8xbf16>, vector<4x8xbf16>, vector<4x8xbf16> -> vector<16x8xbf16>
    %cst_38 = arith.constant dense<0.000000e+00> : vector<8x8xf32>
    %52 = tpu.matmul %0, %51, %cst_38 {dimension_numbers = #tpu.dot_dimension_numbers<[1], [0], [0], [1], [0, 0, 1, 1], [], []>} : vector<8x16xbf16>, vector<16x8xbf16>, vector<8x8xf32> -> vector<8x8xf32>
    %53 = vector.broadcast %1 : vector<8x1xf32> to vector<8x8xf32>
    %54 = arith.mulf %52, %53 : vector<8x8xf32>
    %55 = vector.broadcast %2 : vector<8x1xf32> to vector<8x8xf32>
    %56 = arith.addf %54, %55 : vector<8x8xf32>
    %cst_39 = arith.constant 0.000000e+00 : f32
    %57 = vector.broadcast %cst_39 : f32 to vector<8x8xf32>
    %58 = arith.maximumf %56, %57 : vector<8x8xf32>
    %59 = vector.extract_strided_slice %58 {offsets = [0, 0], sizes = [4, 8], strides = [1, 1]} : vector<8x8xf32> to vector<4x8xf32>
    %cst_40 = arith.constant dense<0.000000e+00> : vector<4x16xf32>
    %60 = tpu.matmul %59, %3, %cst_40 {dimension_numbers = #tpu.dot_dimension_numbers<[1], [0], [0], [1], [0, 0, 1, 1], [], []>} : vector<4x8xf32>, vector<8x16xf32>, vector<4x16xf32> -> vector<4x16xf32>
    %61 = vector.extract_strided_slice %58 {offsets = [4, 0], sizes = [4, 8], strides = [1, 1]} : vector<8x8xf32> to vector<4x8xf32>
    %cst_41 = arith.constant dense<0.000000e+00> : vector<4x16xf32>
    %62 = tpu.matmul %61, %4, %cst_41 {dimension_numbers = #tpu.dot_dimension_numbers<[1], [0], [0], [1], [0, 0, 1, 1], [], []>} : vector<4x8xf32>, vector<8x16xf32>, vector<4x16xf32> -> vector<4x16xf32>
    %63 = arith.addf %60, %62 : vector<4x16xf32>
    %64 = vector.extract_strided_slice %63 {offsets = [0, 0], sizes = [2, 16], strides = [1, 1]} : vector<4x16xf32> to vector<2x16xf32>
    %c0_42 = arith.constant 0 : index
    %c0_43 = arith.constant 0 : index
    %c2_44 = arith.constant 2 : index
    %c0_45 = arith.constant 0 : index
    %65 = vector.load %arg8[%c0_42, %c0_43, %c2_44, %c0_45] : memref<1x2x16x16xf32, #tpu.memory_space<vmem>>, vector<1x2x1x16xf32>
    %66 = vector.shape_cast %65 : vector<1x2x1x16xf32> to vector<2x16xf32>
    %67 = vector.shape_cast %64 : vector<2x16xf32> to vector<1x2x1x16xf32>
    tpu.vector_store %arg8[%c0_42, %c0_43, %c2_44, %c0_45], %67 {strides = array<i32>} : memref<1x2x16x16xf32, #tpu.memory_space<vmem>>, vector<1x2x1x16xf32>,
    %68 = vector.extract_strided_slice %63 {offsets = [2, 0], sizes = [2, 16], strides = [1, 1]} : vector<4x16xf32> to vector<2x16xf32>
    %c0_46 = arith.constant 0 : index
    %c0_47 = arith.constant 0 : index
    %c3 = arith.constant 3 : index
    %c0_48 = arith.constant 0 : index
    %69 = vector.load %arg8[%c0_46, %c0_47, %c3, %c0_48] : memref<1x2x16x16xf32, #tpu.memory_space<vmem>>, vector<1x2x1x16xf32>
    %70 = vector.shape_cast %69 : vector<1x2x1x16xf32> to vector<2x16xf32>
    %71 = vector.shape_cast %68 : vector<2x16xf32> to vector<1x2x1x16xf32>
    tpu.vector_store %arg8[%c0_46, %c0_47, %c3, %c0_48], %71 {strides = array<i32>} : memref<1x2x16x16xf32, #tpu.memory_space<vmem>>, vector<1x2x1x16xf32>,
    %c0_49 = arith.constant 0 : index
    %c0_50 = arith.constant 0 : index
    %c2_51 = arith.constant 2 : index
    %c0_52 = arith.constant 0 : index
    %72 = vector.load %arg2[%c0_49, %c0_50, %c2_51, %c0_52] : memref<1x4x8x8xf32, #tpu.memory_space<vmem>>, vector<1x4x1x8xf32>
    %73 = vector.shape_cast %72 : vector<1x4x1x8xf32> to vector<4x8xf32>
    %74 = arith.truncf %73 : vector<4x8xf32> to vector<4x8xbf16>
    %75 = vector.extract_strided_slice %74 {offsets = [0, 1], sizes = [4, 7], strides = [1, 1]} : vector<4x8xbf16> to vector<4x7xbf16>
    %76 = tpu.concatenate %75, %5 in 1 : vector<4x7xbf16>, vector<4x1xbf16> -> vector<4x8xbf16>
    %c0_53 = arith.constant 0 : index
    %c0_54 = arith.constant 0 : index
    %c3_55 = arith.constant 3 : index
    %c0_56 = arith.constant 0 : index
    %77 = vector.load %arg2[%c0_53, %c0_54, %c3_55, %c0_56] : memref<1x4x8x8xf32, #tpu.memory_space<vmem>>, vector<1x4x1x8xf32>
    %78 = vector.shape_cast %77 : vector<1x4x1x8xf32> to vector<4x8xf32>
    %79 = arith.truncf %78 : vector<4x8xf32> to vector<4x8xbf16>
    %cst_57 = arith.constant 0.000000e+00 : bf16
    %80 = vector.broadcast %cst_57 : bf16 to vector<4x8xbf16>
    %true_58 = arith.constant true
    %81 = arith.select %true_58, %79, %80 : vector<4x8xbf16>
    %82 = vector.extract_strided_slice %81 {offsets = [0, 1], sizes = [4, 7], strides = [1, 1]} : vector<4x8xbf16> to vector<4x7xbf16>
    %83 = tpu.concatenate %82, %5 in 1 : vector<4x7xbf16>, vector<4x1xbf16> -> vector<4x8xbf16>
    %84 = tpu.concatenate %74, %76, %81, %83 in 0 : vector<4x8xbf16>, vector<4x8xbf16>, vector<4x8xbf16>, vector<4x8xbf16> -> vector<16x8xbf16>
    %cst_59 = arith.constant dense<0.000000e+00> : vector<8x8xf32>
    %85 = tpu.matmul %0, %84, %cst_59 {dimension_numbers = #tpu.dot_dimension_numbers<[1], [0], [0], [1], [0, 0, 1, 1], [], []>} : vector<8x16xbf16>, vector<16x8xbf16>, vector<8x8xf32> -> vector<8x8xf32>
    %86 = vector.broadcast %1 : vector<8x1xf32> to vector<8x8xf32>
    %87 = arith.mulf %85, %86 : vector<8x8xf32>
    %88 = vector.broadcast %2 : vector<8x1xf32> to vector<8x8xf32>
    %89 = arith.addf %87, %88 : vector<8x8xf32>
    %cst_60 = arith.constant 0.000000e+00 : f32
    %90 = vector.broadcast %cst_60 : f32 to vector<8x8xf32>
    %91 = arith.maximumf %89, %90 : vector<8x8xf32>
    %92 = vector.extract_strided_slice %91 {offsets = [0, 0], sizes = [4, 8], strides = [1, 1]} : vector<8x8xf32> to vector<4x8xf32>
    %cst_61 = arith.constant dense<0.000000e+00> : vector<4x16xf32>
    %93 = tpu.matmul %92, %3, %cst_61 {dimension_numbers = #tpu.dot_dimension_numbers<[1], [0], [0], [1], [0, 0, 1, 1], [], []>} : vector<4x8xf32>, vector<8x16xf32>, vector<4x16xf32> -> vector<4x16xf32>
    %94 = vector.extract_strided_slice %91 {offsets = [4, 0], sizes = [4, 8], strides = [1, 1]} : vector<8x8xf32> to vector<4x8xf32>
    %cst_62 = arith.constant dense<0.000000e+00> : vector<4x16xf32>
    %95 = tpu.matmul %94, %4, %cst_62 {dimension_numbers = #tpu.dot_dimension_numbers<[1], [0], [0], [1], [0, 0, 1, 1], [], []>} : vector<4x8xf32>, vector<8x16xf32>, vector<4x16xf32> -> vector<4x16xf32>
    %96 = arith.addf %93, %95 : vector<4x16xf32>
    %97 = vector.extract_strided_slice %96 {offsets = [0, 0], sizes = [2, 16], strides = [1, 1]} : vector<4x16xf32> to vector<2x16xf32>
    %c0_63 = arith.constant 0 : index
    %c0_64 = arith.constant 0 : index
    %c4 = arith.constant 4 : index
    %c0_65 = arith.constant 0 : index
    %98 = vector.load %arg8[%c0_63, %c0_64, %c4, %c0_65] : memref<1x2x16x16xf32, #tpu.memory_space<vmem>>, vector<1x2x1x16xf32>
    %99 = vector.shape_cast %98 : vector<1x2x1x16xf32> to vector<2x16xf32>
    %100 = vector.shape_cast %97 : vector<2x16xf32> to vector<1x2x1x16xf32>
    tpu.vector_store %arg8[%c0_63, %c0_64, %c4, %c0_65], %100 {strides = array<i32>} : memref<1x2x16x16xf32, #tpu.memory_space<vmem>>, vector<1x2x1x16xf32>,
    %101 = vector.extract_strided_slice %96 {offsets = [2, 0], sizes = [2, 16], strides = [1, 1]} : vector<4x16xf32> to vector<2x16xf32>
    %c0_66 = arith.constant 0 : index
    %c0_67 = arith.constant 0 : index
    %c5 = arith.constant 5 : index
    %c0_68 = arith.constant 0 : index
    %102 = vector.load %arg8[%c0_66, %c0_67, %c5, %c0_68] : memref<1x2x16x16xf32, #tpu.memory_space<vmem>>, vector<1x2x1x16xf32>
    %103 = vector.shape_cast %102 : vector<1x2x1x16xf32> to vector<2x16xf32>
    %104 = vector.shape_cast %101 : vector<2x16xf32> to vector<1x2x1x16xf32>
    tpu.vector_store %arg8[%c0_66, %c0_67, %c5, %c0_68], %104 {strides = array<i32>} : memref<1x2x16x16xf32, #tpu.memory_space<vmem>>, vector<1x2x1x16xf32>,
    %c0_69 = arith.constant 0 : index
    %c0_70 = arith.constant 0 : index
    %c3_71 = arith.constant 3 : index
    %c0_72 = arith.constant 0 : index
    %105 = vector.load %arg2[%c0_69, %c0_70, %c3_71, %c0_72] : memref<1x4x8x8xf32, #tpu.memory_space<vmem>>, vector<1x4x1x8xf32>
    %106 = vector.shape_cast %105 : vector<1x4x1x8xf32> to vector<4x8xf32>
    %107 = arith.truncf %106 : vector<4x8xf32> to vector<4x8xbf16>
    %108 = vector.extract_strided_slice %107 {offsets = [0, 1], sizes = [4, 7], strides = [1, 1]} : vector<4x8xbf16> to vector<4x7xbf16>
    %109 = tpu.concatenate %108, %5 in 1 : vector<4x7xbf16>, vector<4x1xbf16> -> vector<4x8xbf16>
    %c0_73 = arith.constant 0 : index
    %c0_74 = arith.constant 0 : index
    %c4_75 = arith.constant 4 : index
    %c0_76 = arith.constant 0 : index
    %110 = vector.load %arg2[%c0_73, %c0_74, %c4_75, %c0_76] : memref<1x4x8x8xf32, #tpu.memory_space<vmem>>, vector<1x4x1x8xf32>
    %111 = vector.shape_cast %110 : vector<1x4x1x8xf32> to vector<4x8xf32>
    %112 = arith.truncf %111 : vector<4x8xf32> to vector<4x8xbf16>
    %cst_77 = arith.constant 0.000000e+00 : bf16
    %113 = vector.broadcast %cst_77 : bf16 to vector<4x8xbf16>
    %true_78 = arith.constant true
    %114 = arith.select %true_78, %112, %113 : vector<4x8xbf16>
    %115 = vector.extract_strided_slice %114 {offsets = [0, 1], sizes = [4, 7], strides = [1, 1]} : vector<4x8xbf16> to vector<4x7xbf16>
    %116 = tpu.concatenate %115, %5 in 1 : vector<4x7xbf16>, vector<4x1xbf16> -> vector<4x8xbf16>
    %117 = tpu.concatenate %107, %109, %114, %116 in 0 : vector<4x8xbf16>, vector<4x8xbf16>, vector<4x8xbf16>, vector<4x8xbf16> -> vector<16x8xbf16>
    %cst_79 = arith.constant dense<0.000000e+00> : vector<8x8xf32>
    %118 = tpu.matmul %0, %117, %cst_79 {dimension_numbers = #tpu.dot_dimension_numbers<[1], [0], [0], [1], [0, 0, 1, 1], [], []>} : vector<8x16xbf16>, vector<16x8xbf16>, vector<8x8xf32> -> vector<8x8xf32>
    %119 = vector.broadcast %1 : vector<8x1xf32> to vector<8x8xf32>
    %120 = arith.mulf %118, %119 : vector<8x8xf32>
    %121 = vector.broadcast %2 : vector<8x1xf32> to vector<8x8xf32>
    %122 = arith.addf %120, %121 : vector<8x8xf32>
    %cst_80 = arith.constant 0.000000e+00 : f32
    %123 = vector.broadcast %cst_80 : f32 to vector<8x8xf32>
    %124 = arith.maximumf %122, %123 : vector<8x8xf32>
    %125 = vector.extract_strided_slice %124 {offsets = [0, 0], sizes = [4, 8], strides = [1, 1]} : vector<8x8xf32> to vector<4x8xf32>
    %cst_81 = arith.constant dense<0.000000e+00> : vector<4x16xf32>
    %126 = tpu.matmul %125, %3, %cst_81 {dimension_numbers = #tpu.dot_dimension_numbers<[1], [0], [0], [1], [0, 0, 1, 1], [], []>} : vector<4x8xf32>, vector<8x16xf32>, vector<4x16xf32> -> vector<4x16xf32>
    %127 = vector.extract_strided_slice %124 {offsets = [4, 0], sizes = [4, 8], strides = [1, 1]} : vector<8x8xf32> to vector<4x8xf32>
    %cst_82 = arith.constant dense<0.000000e+00> : vector<4x16xf32>
    %128 = tpu.matmul %127, %4, %cst_82 {dimension_numbers = #tpu.dot_dimension_numbers<[1], [0], [0], [1], [0, 0, 1, 1], [], []>} : vector<4x8xf32>, vector<8x16xf32>, vector<4x16xf32> -> vector<4x16xf32>
    %129 = arith.addf %126, %128 : vector<4x16xf32>
    %130 = vector.extract_strided_slice %129 {offsets = [0, 0], sizes = [2, 16], strides = [1, 1]} : vector<4x16xf32> to vector<2x16xf32>
    %c0_83 = arith.constant 0 : index
    %c0_84 = arith.constant 0 : index
    %c6 = arith.constant 6 : index
    %c0_85 = arith.constant 0 : index
    %131 = vector.load %arg8[%c0_83, %c0_84, %c6, %c0_85] : memref<1x2x16x16xf32, #tpu.memory_space<vmem>>, vector<1x2x1x16xf32>
    %132 = vector.shape_cast %131 : vector<1x2x1x16xf32> to vector<2x16xf32>
    %133 = vector.shape_cast %130 : vector<2x16xf32> to vector<1x2x1x16xf32>
    tpu.vector_store %arg8[%c0_83, %c0_84, %c6, %c0_85], %133 {strides = array<i32>} : memref<1x2x16x16xf32, #tpu.memory_space<vmem>>, vector<1x2x1x16xf32>,
    %134 = vector.extract_strided_slice %129 {offsets = [2, 0], sizes = [2, 16], strides = [1, 1]} : vector<4x16xf32> to vector<2x16xf32>
    %c0_86 = arith.constant 0 : index
    %c0_87 = arith.constant 0 : index
    %c7 = arith.constant 7 : index
    %c0_88 = arith.constant 0 : index
    %135 = vector.load %arg8[%c0_86, %c0_87, %c7, %c0_88] : memref<1x2x16x16xf32, #tpu.memory_space<vmem>>, vector<1x2x1x16xf32>
    %136 = vector.shape_cast %135 : vector<1x2x1x16xf32> to vector<2x16xf32>
    %137 = vector.shape_cast %134 : vector<2x16xf32> to vector<1x2x1x16xf32>
    tpu.vector_store %arg8[%c0_86, %c0_87, %c7, %c0_88], %137 {strides = array<i32>} : memref<1x2x16x16xf32, #tpu.memory_space<vmem>>, vector<1x2x1x16xf32>,
    %c0_89 = arith.constant 0 : index
    %c0_90 = arith.constant 0 : index
    %c4_91 = arith.constant 4 : index
    %c0_92 = arith.constant 0 : index
    %138 = vector.load %arg2[%c0_89, %c0_90, %c4_91, %c0_92] : memref<1x4x8x8xf32, #tpu.memory_space<vmem>>, vector<1x4x1x8xf32>
    %139 = vector.shape_cast %138 : vector<1x4x1x8xf32> to vector<4x8xf32>
    %140 = arith.truncf %139 : vector<4x8xf32> to vector<4x8xbf16>
    %141 = vector.extract_strided_slice %140 {offsets = [0, 1], sizes = [4, 7], strides = [1, 1]} : vector<4x8xbf16> to vector<4x7xbf16>
    %142 = tpu.concatenate %141, %5 in 1 : vector<4x7xbf16>, vector<4x1xbf16> -> vector<4x8xbf16>
    %c0_93 = arith.constant 0 : index
    %c0_94 = arith.constant 0 : index
    %c5_95 = arith.constant 5 : index
    %c0_96 = arith.constant 0 : index
    %143 = vector.load %arg2[%c0_93, %c0_94, %c5_95, %c0_96] : memref<1x4x8x8xf32, #tpu.memory_space<vmem>>, vector<1x4x1x8xf32>
    %144 = vector.shape_cast %143 : vector<1x4x1x8xf32> to vector<4x8xf32>
    %145 = arith.truncf %144 : vector<4x8xf32> to vector<4x8xbf16>
    %cst_97 = arith.constant 0.000000e+00 : bf16
    %146 = vector.broadcast %cst_97 : bf16 to vector<4x8xbf16>
    %true_98 = arith.constant true
    %147 = arith.select %true_98, %145, %146 : vector<4x8xbf16>
    %148 = vector.extract_strided_slice %147 {offsets = [0, 1], sizes = [4, 7], strides = [1, 1]} : vector<4x8xbf16> to vector<4x7xbf16>
    %149 = tpu.concatenate %148, %5 in 1 : vector<4x7xbf16>, vector<4x1xbf16> -> vector<4x8xbf16>
    %150 = tpu.concatenate %140, %142, %147, %149 in 0 : vector<4x8xbf16>, vector<4x8xbf16>, vector<4x8xbf16>, vector<4x8xbf16> -> vector<16x8xbf16>
    %cst_99 = arith.constant dense<0.000000e+00> : vector<8x8xf32>
    %151 = tpu.matmul %0, %150, %cst_99 {dimension_numbers = #tpu.dot_dimension_numbers<[1], [0], [0], [1], [0, 0, 1, 1], [], []>} : vector<8x16xbf16>, vector<16x8xbf16>, vector<8x8xf32> -> vector<8x8xf32>
    %152 = vector.broadcast %1 : vector<8x1xf32> to vector<8x8xf32>
    %153 = arith.mulf %151, %152 : vector<8x8xf32>
    %154 = vector.broadcast %2 : vector<8x1xf32> to vector<8x8xf32>
    %155 = arith.addf %153, %154 : vector<8x8xf32>
    %cst_100 = arith.constant 0.000000e+00 : f32
    %156 = vector.broadcast %cst_100 : f32 to vector<8x8xf32>
    %157 = arith.maximumf %155, %156 : vector<8x8xf32>
    %158 = vector.extract_strided_slice %157 {offsets = [0, 0], sizes = [4, 8], strides = [1, 1]} : vector<8x8xf32> to vector<4x8xf32>
    %cst_101 = arith.constant dense<0.000000e+00> : vector<4x16xf32>
    %159 = tpu.matmul %158, %3, %cst_101 {dimension_numbers = #tpu.dot_dimension_numbers<[1], [0], [0], [1], [0, 0, 1, 1], [], []>} : vector<4x8xf32>, vector<8x16xf32>, vector<4x16xf32> -> vector<4x16xf32>
    %160 = vector.extract_strided_slice %157 {offsets = [4, 0], sizes = [4, 8], strides = [1, 1]} : vector<8x8xf32> to vector<4x8xf32>
    %cst_102 = arith.constant dense<0.000000e+00> : vector<4x16xf32>
    %161 = tpu.matmul %160, %4, %cst_102 {dimension_numbers = #tpu.dot_dimension_numbers<[1], [0], [0], [1], [0, 0, 1, 1], [], []>} : vector<4x8xf32>, vector<8x16xf32>, vector<4x16xf32> -> vector<4x16xf32>
    %162 = arith.addf %159, %161 : vector<4x16xf32>
    %163 = vector.extract_strided_slice %162 {offsets = [0, 0], sizes = [2, 16], strides = [1, 1]} : vector<4x16xf32> to vector<2x16xf32>
    %c0_103 = arith.constant 0 : index
    %c0_104 = arith.constant 0 : index
    %c8 = arith.constant 8 : index
    %c0_105 = arith.constant 0 : index
    %164 = vector.load %arg8[%c0_103, %c0_104, %c8, %c0_105] : memref<1x2x16x16xf32, #tpu.memory_space<vmem>>, vector<1x2x1x16xf32>
    %165 = vector.shape_cast %164 : vector<1x2x1x16xf32> to vector<2x16xf32>
    %166 = vector.shape_cast %163 : vector<2x16xf32> to vector<1x2x1x16xf32>
    tpu.vector_store %arg8[%c0_103, %c0_104, %c8, %c0_105], %166 {strides = array<i32>} : memref<1x2x16x16xf32, #tpu.memory_space<vmem>>, vector<1x2x1x16xf32>,
    %167 = vector.extract_strided_slice %162 {offsets = [2, 0], sizes = [2, 16], strides = [1, 1]} : vector<4x16xf32> to vector<2x16xf32>
    %c0_106 = arith.constant 0 : index
    %c0_107 = arith.constant 0 : index
    %c9 = arith.constant 9 : index
    %c0_108 = arith.constant 0 : index
    %168 = vector.load %arg8[%c0_106, %c0_107, %c9, %c0_108] : memref<1x2x16x16xf32, #tpu.memory_space<vmem>>, vector<1x2x1x16xf32>
    %169 = vector.shape_cast %168 : vector<1x2x1x16xf32> to vector<2x16xf32>
    %170 = vector.shape_cast %167 : vector<2x16xf32> to vector<1x2x1x16xf32>
    tpu.vector_store %arg8[%c0_106, %c0_107, %c9, %c0_108], %170 {strides = array<i32>} : memref<1x2x16x16xf32, #tpu.memory_space<vmem>>, vector<1x2x1x16xf32>,
    %c0_109 = arith.constant 0 : index
    %c0_110 = arith.constant 0 : index
    %c5_111 = arith.constant 5 : index
    %c0_112 = arith.constant 0 : index
    %171 = vector.load %arg2[%c0_109, %c0_110, %c5_111, %c0_112] : memref<1x4x8x8xf32, #tpu.memory_space<vmem>>, vector<1x4x1x8xf32>
    %172 = vector.shape_cast %171 : vector<1x4x1x8xf32> to vector<4x8xf32>
    %173 = arith.truncf %172 : vector<4x8xf32> to vector<4x8xbf16>
    %174 = vector.extract_strided_slice %173 {offsets = [0, 1], sizes = [4, 7], strides = [1, 1]} : vector<4x8xbf16> to vector<4x7xbf16>
    %175 = tpu.concatenate %174, %5 in 1 : vector<4x7xbf16>, vector<4x1xbf16> -> vector<4x8xbf16>
    %c0_113 = arith.constant 0 : index
    %c0_114 = arith.constant 0 : index
    %c6_115 = arith.constant 6 : index
    %c0_116 = arith.constant 0 : index
    %176 = vector.load %arg2[%c0_113, %c0_114, %c6_115, %c0_116] : memref<1x4x8x8xf32, #tpu.memory_space<vmem>>, vector<1x4x1x8xf32>
    %177 = vector.shape_cast %176 : vector<1x4x1x8xf32> to vector<4x8xf32>
    %178 = arith.truncf %177 : vector<4x8xf32> to vector<4x8xbf16>
    %cst_117 = arith.constant 0.000000e+00 : bf16
    %179 = vector.broadcast %cst_117 : bf16 to vector<4x8xbf16>
    %true_118 = arith.constant true
    %180 = arith.select %true_118, %178, %179 : vector<4x8xbf16>
    %181 = vector.extract_strided_slice %180 {offsets = [0, 1], sizes = [4, 7], strides = [1, 1]} : vector<4x8xbf16> to vector<4x7xbf16>
    %182 = tpu.concatenate %181, %5 in 1 : vector<4x7xbf16>, vector<4x1xbf16> -> vector<4x8xbf16>
    %183 = tpu.concatenate %173, %175, %180, %182 in 0 : vector<4x8xbf16>, vector<4x8xbf16>, vector<4x8xbf16>, vector<4x8xbf16> -> vector<16x8xbf16>
    %cst_119 = arith.constant dense<0.000000e+00> : vector<8x8xf32>
    %184 = tpu.matmul %0, %183, %cst_119 {dimension_numbers = #tpu.dot_dimension_numbers<[1], [0], [0], [1], [0, 0, 1, 1], [], []>} : vector<8x16xbf16>, vector<16x8xbf16>, vector<8x8xf32> -> vector<8x8xf32>
    %185 = vector.broadcast %1 : vector<8x1xf32> to vector<8x8xf32>
    %186 = arith.mulf %184, %185 : vector<8x8xf32>
    %187 = vector.broadcast %2 : vector<8x1xf32> to vector<8x8xf32>
    %188 = arith.addf %186, %187 : vector<8x8xf32>
    %cst_120 = arith.constant 0.000000e+00 : f32
    %189 = vector.broadcast %cst_120 : f32 to vector<8x8xf32>
    %190 = arith.maximumf %188, %189 : vector<8x8xf32>
    %191 = vector.extract_strided_slice %190 {offsets = [0, 0], sizes = [4, 8], strides = [1, 1]} : vector<8x8xf32> to vector<4x8xf32>
    %cst_121 = arith.constant dense<0.000000e+00> : vector<4x16xf32>
    %192 = tpu.matmul %191, %3, %cst_121 {dimension_numbers = #tpu.dot_dimension_numbers<[1], [0], [0], [1], [0, 0, 1, 1], [], []>} : vector<4x8xf32>, vector<8x16xf32>, vector<4x16xf32> -> vector<4x16xf32>
    %193 = vector.extract_strided_slice %190 {offsets = [4, 0], sizes = [4, 8], strides = [1, 1]} : vector<8x8xf32> to vector<4x8xf32>
    %cst_122 = arith.constant dense<0.000000e+00> : vector<4x16xf32>
    %194 = tpu.matmul %193, %4, %cst_122 {dimension_numbers = #tpu.dot_dimension_numbers<[1], [0], [0], [1], [0, 0, 1, 1], [], []>} : vector<4x8xf32>, vector<8x16xf32>, vector<4x16xf32> -> vector<4x16xf32>
    %195 = arith.addf %192, %194 : vector<4x16xf32>
    %196 = vector.extract_strided_slice %195 {offsets = [0, 0], sizes = [2, 16], strides = [1, 1]} : vector<4x16xf32> to vector<2x16xf32>
    %c0_123 = arith.constant 0 : index
    %c0_124 = arith.constant 0 : index
    %c10 = arith.constant 10 : index
    %c0_125 = arith.constant 0 : index
    %197 = vector.load %arg8[%c0_123, %c0_124, %c10, %c0_125] : memref<1x2x16x16xf32, #tpu.memory_space<vmem>>, vector<1x2x1x16xf32>
    %198 = vector.shape_cast %197 : vector<1x2x1x16xf32> to vector<2x16xf32>
    %199 = vector.shape_cast %196 : vector<2x16xf32> to vector<1x2x1x16xf32>
    tpu.vector_store %arg8[%c0_123, %c0_124, %c10, %c0_125], %199 {strides = array<i32>} : memref<1x2x16x16xf32, #tpu.memory_space<vmem>>, vector<1x2x1x16xf32>,
    %200 = vector.extract_strided_slice %195 {offsets = [2, 0], sizes = [2, 16], strides = [1, 1]} : vector<4x16xf32> to vector<2x16xf32>
    %c0_126 = arith.constant 0 : index
    %c0_127 = arith.constant 0 : index
    %c11 = arith.constant 11 : index
    %c0_128 = arith.constant 0 : index
    %201 = vector.load %arg8[%c0_126, %c0_127, %c11, %c0_128] : memref<1x2x16x16xf32, #tpu.memory_space<vmem>>, vector<1x2x1x16xf32>
    %202 = vector.shape_cast %201 : vector<1x2x1x16xf32> to vector<2x16xf32>
    %203 = vector.shape_cast %200 : vector<2x16xf32> to vector<1x2x1x16xf32>
    tpu.vector_store %arg8[%c0_126, %c0_127, %c11, %c0_128], %203 {strides = array<i32>} : memref<1x2x16x16xf32, #tpu.memory_space<vmem>>, vector<1x2x1x16xf32>,
    %c0_129 = arith.constant 0 : index
    %c0_130 = arith.constant 0 : index
    %c6_131 = arith.constant 6 : index
    %c0_132 = arith.constant 0 : index
    %204 = vector.load %arg2[%c0_129, %c0_130, %c6_131, %c0_132] : memref<1x4x8x8xf32, #tpu.memory_space<vmem>>, vector<1x4x1x8xf32>
    %205 = vector.shape_cast %204 : vector<1x4x1x8xf32> to vector<4x8xf32>
    %206 = arith.truncf %205 : vector<4x8xf32> to vector<4x8xbf16>
    %207 = vector.extract_strided_slice %206 {offsets = [0, 1], sizes = [4, 7], strides = [1, 1]} : vector<4x8xbf16> to vector<4x7xbf16>
    %208 = tpu.concatenate %207, %5 in 1 : vector<4x7xbf16>, vector<4x1xbf16> -> vector<4x8xbf16>
    %c0_133 = arith.constant 0 : index
    %c0_134 = arith.constant 0 : index
    %c7_135 = arith.constant 7 : index
    %c0_136 = arith.constant 0 : index
    %209 = vector.load %arg2[%c0_133, %c0_134, %c7_135, %c0_136] : memref<1x4x8x8xf32, #tpu.memory_space<vmem>>, vector<1x4x1x8xf32>
    %210 = vector.shape_cast %209 : vector<1x4x1x8xf32> to vector<4x8xf32>
    %211 = arith.truncf %210 : vector<4x8xf32> to vector<4x8xbf16>
    %cst_137 = arith.constant 0.000000e+00 : bf16
    %212 = vector.broadcast %cst_137 : bf16 to vector<4x8xbf16>
    %true_138 = arith.constant true
    %213 = arith.select %true_138, %211, %212 : vector<4x8xbf16>
    %214 = vector.extract_strided_slice %213 {offsets = [0, 1], sizes = [4, 7], strides = [1, 1]} : vector<4x8xbf16> to vector<4x7xbf16>
    %215 = tpu.concatenate %214, %5 in 1 : vector<4x7xbf16>, vector<4x1xbf16> -> vector<4x8xbf16>
    %216 = tpu.concatenate %206, %208, %213, %215 in 0 : vector<4x8xbf16>, vector<4x8xbf16>, vector<4x8xbf16>, vector<4x8xbf16> -> vector<16x8xbf16>
    %cst_139 = arith.constant dense<0.000000e+00> : vector<8x8xf32>
    %217 = tpu.matmul %0, %216, %cst_139 {dimension_numbers = #tpu.dot_dimension_numbers<[1], [0], [0], [1], [0, 0, 1, 1], [], []>} : vector<8x16xbf16>, vector<16x8xbf16>, vector<8x8xf32> -> vector<8x8xf32>
    %218 = vector.broadcast %1 : vector<8x1xf32> to vector<8x8xf32>
    %219 = arith.mulf %217, %218 : vector<8x8xf32>
    %220 = vector.broadcast %2 : vector<8x1xf32> to vector<8x8xf32>
    %221 = arith.addf %219, %220 : vector<8x8xf32>
    %cst_140 = arith.constant 0.000000e+00 : f32
    %222 = vector.broadcast %cst_140 : f32 to vector<8x8xf32>
    %223 = arith.maximumf %221, %222 : vector<8x8xf32>
    %224 = vector.extract_strided_slice %223 {offsets = [0, 0], sizes = [4, 8], strides = [1, 1]} : vector<8x8xf32> to vector<4x8xf32>
    %cst_141 = arith.constant dense<0.000000e+00> : vector<4x16xf32>
    %225 = tpu.matmul %224, %3, %cst_141 {dimension_numbers = #tpu.dot_dimension_numbers<[1], [0], [0], [1], [0, 0, 1, 1], [], []>} : vector<4x8xf32>, vector<8x16xf32>, vector<4x16xf32> -> vector<4x16xf32>
    %226 = vector.extract_strided_slice %223 {offsets = [4, 0], sizes = [4, 8], strides = [1, 1]} : vector<8x8xf32> to vector<4x8xf32>
    %cst_142 = arith.constant dense<0.000000e+00> : vector<4x16xf32>
    %227 = tpu.matmul %226, %4, %cst_142 {dimension_numbers = #tpu.dot_dimension_numbers<[1], [0], [0], [1], [0, 0, 1, 1], [], []>} : vector<4x8xf32>, vector<8x16xf32>, vector<4x16xf32> -> vector<4x16xf32>
    %228 = arith.addf %225, %227 : vector<4x16xf32>
    %229 = vector.extract_strided_slice %228 {offsets = [0, 0], sizes = [2, 16], strides = [1, 1]} : vector<4x16xf32> to vector<2x16xf32>
    %c0_143 = arith.constant 0 : index
    %c0_144 = arith.constant 0 : index
    %c12 = arith.constant 12 : index
    %c0_145 = arith.constant 0 : index
    %230 = vector.load %arg8[%c0_143, %c0_144, %c12, %c0_145] : memref<1x2x16x16xf32, #tpu.memory_space<vmem>>, vector<1x2x1x16xf32>
    %231 = vector.shape_cast %230 : vector<1x2x1x16xf32> to vector<2x16xf32>
    %232 = vector.shape_cast %229 : vector<2x16xf32> to vector<1x2x1x16xf32>
    tpu.vector_store %arg8[%c0_143, %c0_144, %c12, %c0_145], %232 {strides = array<i32>} : memref<1x2x16x16xf32, #tpu.memory_space<vmem>>, vector<1x2x1x16xf32>,
    %233 = vector.extract_strided_slice %228 {offsets = [2, 0], sizes = [2, 16], strides = [1, 1]} : vector<4x16xf32> to vector<2x16xf32>
    %c0_146 = arith.constant 0 : index
    %c0_147 = arith.constant 0 : index
    %c13 = arith.constant 13 : index
    %c0_148 = arith.constant 0 : index
    %234 = vector.load %arg8[%c0_146, %c0_147, %c13, %c0_148] : memref<1x2x16x16xf32, #tpu.memory_space<vmem>>, vector<1x2x1x16xf32>
    %235 = vector.shape_cast %234 : vector<1x2x1x16xf32> to vector<2x16xf32>
    %236 = vector.shape_cast %233 : vector<2x16xf32> to vector<1x2x1x16xf32>
    tpu.vector_store %arg8[%c0_146, %c0_147, %c13, %c0_148], %236 {strides = array<i32>} : memref<1x2x16x16xf32, #tpu.memory_space<vmem>>, vector<1x2x1x16xf32>,
    %c0_149 = arith.constant 0 : index
    %c0_150 = arith.constant 0 : index
    %c7_151 = arith.constant 7 : index
    %c0_152 = arith.constant 0 : index
    %237 = vector.load %arg2[%c0_149, %c0_150, %c7_151, %c0_152] : memref<1x4x8x8xf32, #tpu.memory_space<vmem>>, vector<1x4x1x8xf32>
    %238 = vector.shape_cast %237 : vector<1x4x1x8xf32> to vector<4x8xf32>
    %239 = arith.truncf %238 : vector<4x8xf32> to vector<4x8xbf16>
    %240 = vector.extract_strided_slice %239 {offsets = [0, 1], sizes = [4, 7], strides = [1, 1]} : vector<4x8xbf16> to vector<4x7xbf16>
    %241 = tpu.concatenate %240, %5 in 1 : vector<4x7xbf16>, vector<4x1xbf16> -> vector<4x8xbf16>
    %c0_153 = arith.constant 0 : index
    %c0_154 = arith.constant 0 : index
    %c7_155 = arith.constant 7 : index
    %c0_156 = arith.constant 0 : index
    %242 = vector.load %arg2[%c0_153, %c0_154, %c7_155, %c0_156] : memref<1x4x8x8xf32, #tpu.memory_space<vmem>>, vector<1x4x1x8xf32>
    %243 = vector.shape_cast %242 : vector<1x4x1x8xf32> to vector<4x8xf32>
    %244 = arith.truncf %243 : vector<4x8xf32> to vector<4x8xbf16>
    %cst_157 = arith.constant 0.000000e+00 : bf16
    %245 = vector.broadcast %cst_157 : bf16 to vector<4x8xbf16>
    %false = arith.constant false
    %246 = arith.select %false, %244, %245 : vector<4x8xbf16>
    %247 = vector.extract_strided_slice %246 {offsets = [0, 1], sizes = [4, 7], strides = [1, 1]} : vector<4x8xbf16> to vector<4x7xbf16>
    %248 = tpu.concatenate %247, %5 in 1 : vector<4x7xbf16>, vector<4x1xbf16> -> vector<4x8xbf16>
    %249 = tpu.concatenate %239, %241, %246, %248 in 0 : vector<4x8xbf16>, vector<4x8xbf16>, vector<4x8xbf16>, vector<4x8xbf16> -> vector<16x8xbf16>
    %cst_158 = arith.constant dense<0.000000e+00> : vector<8x8xf32>
    %250 = tpu.matmul %0, %249, %cst_158 {dimension_numbers = #tpu.dot_dimension_numbers<[1], [0], [0], [1], [0, 0, 1, 1], [], []>} : vector<8x16xbf16>, vector<16x8xbf16>, vector<8x8xf32> -> vector<8x8xf32>
    %251 = vector.broadcast %1 : vector<8x1xf32> to vector<8x8xf32>
    %252 = arith.mulf %250, %251 : vector<8x8xf32>
    %253 = vector.broadcast %2 : vector<8x1xf32> to vector<8x8xf32>
    %254 = arith.addf %252, %253 : vector<8x8xf32>
    %cst_159 = arith.constant 0.000000e+00 : f32
    %255 = vector.broadcast %cst_159 : f32 to vector<8x8xf32>
    %256 = arith.maximumf %254, %255 : vector<8x8xf32>
    %257 = vector.extract_strided_slice %256 {offsets = [0, 0], sizes = [4, 8], strides = [1, 1]} : vector<8x8xf32> to vector<4x8xf32>
    %cst_160 = arith.constant dense<0.000000e+00> : vector<4x16xf32>
    %258 = tpu.matmul %257, %3, %cst_160 {dimension_numbers = #tpu.dot_dimension_numbers<[1], [0], [0], [1], [0, 0, 1, 1], [], []>} : vector<4x8xf32>, vector<8x16xf32>, vector<4x16xf32> -> vector<4x16xf32>
    %259 = vector.extract_strided_slice %256 {offsets = [4, 0], sizes = [4, 8], strides = [1, 1]} : vector<8x8xf32> to vector<4x8xf32>
    %cst_161 = arith.constant dense<0.000000e+00> : vector<4x16xf32>
    %260 = tpu.matmul %259, %4, %cst_161 {dimension_numbers = #tpu.dot_dimension_numbers<[1], [0], [0], [1], [0, 0, 1, 1], [], []>} : vector<4x8xf32>, vector<8x16xf32>, vector<4x16xf32> -> vector<4x16xf32>
    %261 = arith.addf %258, %260 : vector<4x16xf32>
    %262 = vector.extract_strided_slice %261 {offsets = [0, 0], sizes = [2, 16], strides = [1, 1]} : vector<4x16xf32> to vector<2x16xf32>
    %c0_162 = arith.constant 0 : index
    %c0_163 = arith.constant 0 : index
    %c14 = arith.constant 14 : index
    %c0_164 = arith.constant 0 : index
    %263 = vector.load %arg8[%c0_162, %c0_163, %c14, %c0_164] : memref<1x2x16x16xf32, #tpu.memory_space<vmem>>, vector<1x2x1x16xf32>
    %264 = vector.shape_cast %263 : vector<1x2x1x16xf32> to vector<2x16xf32>
    %265 = vector.shape_cast %262 : vector<2x16xf32> to vector<1x2x1x16xf32>
    tpu.vector_store %arg8[%c0_162, %c0_163, %c14, %c0_164], %265 {strides = array<i32>} : memref<1x2x16x16xf32, #tpu.memory_space<vmem>>, vector<1x2x1x16xf32>,
    %266 = vector.extract_strided_slice %261 {offsets = [2, 0], sizes = [2, 16], strides = [1, 1]} : vector<4x16xf32> to vector<2x16xf32>
    %c0_165 = arith.constant 0 : index
    %c0_166 = arith.constant 0 : index
    %c15 = arith.constant 15 : index
    %c0_167 = arith.constant 0 : index
    %267 = vector.load %arg8[%c0_165, %c0_166, %c15, %c0_167] : memref<1x2x16x16xf32, #tpu.memory_space<vmem>>, vector<1x2x1x16xf32>
    %268 = vector.shape_cast %267 : vector<1x2x1x16xf32> to vector<2x16xf32>
    %269 = vector.shape_cast %266 : vector<2x16xf32> to vector<1x2x1x16xf32>
    tpu.vector_store %arg8[%c0_165, %c0_166, %c15, %c0_167], %269 {strides = array<i32>} : memref<1x2x16x16xf32, #tpu.memory_space<vmem>>, vector<1x2x1x16xf32>,
    return
  }
  func.func @transform_0(%arg0: i32, %arg1: i32) -> (i32, i32, i32, i32) {
    %c0_i32 = arith.constant 0 : i32
    %c0_i32_0 = arith.constant 0 : i32
    %c0_i32_1 = arith.constant 0 : i32
    %c0_i32_2 = arith.constant 0 : i32
    return %arg0, %c0_i32, %c0_i32_0, %c0_i32_1 : i32, i32, i32, i32
  }
  func.func @transform_1(%arg0: i32, %arg1: i32) -> (i32, i32) {
    %c0_i32 = arith.constant 0 : i32
    %c0_i32_0 = arith.constant 0 : i32
    %c0_i32_1 = arith.constant 0 : i32
    return %c0_i32, %c0_i32_0 : i32, i32
  }
  func.func @transform_2(%arg0: i32, %arg1: i32) -> (i32, i32) {
    %c0_i32 = arith.constant 0 : i32
    %c0_i32_0 = arith.constant 0 : i32
    %c0_i32_1 = arith.constant 0 : i32
    return %c0_i32, %c0_i32_0 : i32, i32
  }
  func.func @transform_3(%arg0: i32, %arg1: i32) -> (i32, i32) {
    %c0_i32 = arith.constant 0 : i32
    %c0_i32_0 = arith.constant 0 : i32
    %c0_i32_1 = arith.constant 0 : i32
    return %c0_i32, %c0_i32_0 : i32, i32
  }
  func.func @transform_4(%arg0: i32, %arg1: i32) -> (i32, i32) {
    %c0_i32 = arith.constant 0 : i32
    %c0_i32_0 = arith.constant 0 : i32
    %c0_i32_1 = arith.constant 0 : i32
    return %c0_i32, %c0_i32_0 : i32, i32
  }
  func.func @transform_5(%arg0: i32, %arg1: i32) -> (i32, i32) {
    %c0_i32 = arith.constant 0 : i32
    %c0_i32_0 = arith.constant 0 : i32
    %c0_i32_1 = arith.constant 0 : i32
    return %c0_i32, %c0_i32_0 : i32, i32
  }
  func.func @transform_6(%arg0: i32, %arg1: i32) -> (i32, i32, i32, i32) {
    %c0_i32 = arith.constant 0 : i32
    %c0_i32_0 = arith.constant 0 : i32
    %c0_i32_1 = arith.constant 0 : i32
    return %arg0, %c0_i32, %arg1, %c0_i32_0 : i32, i32, i32, i32
  }
}

</mosaic_0001>

<llo_original>
// kernel: tpu_custom_call.1
$region0: #{tpu_custom_call.1}
  #allocation0 [shape = 'u32[]', space=smem, size = 0x4, offset = 0x4, fixed_abs, tag = 'smem constant byte address 0x4 - core index']
  #allocation1 [shape = 'u32[144,128]{1,0:T(1,128)}', space=vmem, size = 0x12000, scoped, tag = 'internal scratch']
  %s0 = inlined_call_operand.hbm [shape: f32[2,4,8,8], index: 0, kind: input, shape index: {}]
  %s1 = inlined_call_operand.vmem [shape: bf16[8,16], index: 1, kind: input, shape index: {}]
  %s2 = inlined_call_operand.vmem [shape: f32[8,1], index: 2, kind: input, shape index: {}]
  %s3 = inlined_call_operand.vmem [shape: f32[8,1], index: 3, kind: input, shape index: {}]
  %s4 = inlined_call_operand.vmem [shape: f32[8,16], index: 4, kind: input, shape index: {}]
  %s5 = inlined_call_operand.vmem [shape: f32[8,16], index: 5, kind: input, shape index: {}]
  %s6 = inlined_call_operand.hbm [shape: f32[2,2,16,16], index: 6, kind: output, shape index: {}]
  %s7 = sld [smem:[#allocation0]]
  $region61: #{tpu_custom_call.1} parent=0
    _
  %s9 = ssub.s32 1, %s7
  %s10 = scalar_select 0, %s9, %s7
  $region1: #{tpu_custom_call.1} parent=0
    #allocation2 [shape = 'u8[32768]{0}', space=vmem, size = 0x8000, scoped, tag = 'input window, operand 0']
    #allocation3 [shape = 's32[2]{0}', space=sflag, size = 0x8, scoped, tag = 'scoped memory for tpu_custom_call.1']
    #allocation4 [shape = 's32[2]{0}', space=sflag, size = 0x8, scoped, tag = 'scoped memory for tpu_custom_call.1']
    #allocation5 [shape = 'u8[32768]{0}', space=vmem, size = 0x8000, scoped, tag = 'output window, operand 0']
    %11 = vsyncpa [#allocation3], 0
    %s12 = scalar_lea.sflag [#allocation3], 1
    %13 = vsyncpa %s12, 0
    %14 = vsyncpa [#allocation4], 0
    %s15 = scalar_lea.sflag [#allocation4], 1
    %16 = vsyncpa %s15, 0
    loop: start=0, step=1, limit=4
    $region2: #{tpu_custom_call.1} parent=1 // loop_pre_header
      _
    $region3: #{tpu_custom_call.1} parent=1 // loop_header
      %s18 = sphi 0, %s22
      %p19 = scmp.ge.s32.totalorder %s18, 4
      %s25 = sphi 0, %s37
      %s26 = sphi 0, %s33
      %s27 = sphi 0, %s25
      %s28 = sphi 0, %s26
      %s29 = sphi 0, %s27
      %s30 = sphi 0, %s28
      %s40 = sphi 0, %s42
      %s43 = sphi 0, %s40
      %s44 = sphi 0, %s43
      %s60 = sphi 0, %s44
      %s64 = sphi 0, %s64
      %s66 = sphi 0, %s64
      %s67 = sphi 0, %s66
      %s81 = sphi 0, %s67
      %s85 = sphi 0, %s85
      %s87 = sphi 0, %s85
      %s88 = sphi 0, %s87
      %s102 = sphi 0, %s88
      %s106 = sphi 0, %s106
      %s108 = sphi 0, %s106
      %s109 = sphi 0, %s108
      %s123 = sphi 0, %s109
      %s127 = sphi 0, %s127
      %s129 = sphi 0, %s127
      %s130 = sphi 0, %s129
      %s144 = sphi 0, %s130
      %s148 = sphi 0, %s148
      %s150 = sphi 0, %s148
      %s151 = sphi 0, %s150
      %s165 = sphi 0, %s151
      %s173 = sphi 0, %s175
      %s176 = sphi 0, %s173
      %s177 = sphi 0, %s176
      %s193 = sphi 0, %s177
    $region4: #{tpu_custom_call.1} parent=1 // loop_header_branch
      %21 = sbr.rel (%p19) target = $region8
    $region5: #{tpu_custom_call.1} parent=1 // loop_body
      %s23 = ssub.s32 %s18, 1
      %s24 = ssub.s32 %s18, 2
      %s31 = sadd.s32 1, %s26
      %p32 = scmp.ge.s32.totalorder %s31, 1
      %s33 = scalar_select %p32, 0, %s31
      %s34 = sadd.s32 1, %s25
      %s35 = scalar_select %p32, %s34, %s25
      %p36 = scmp.ge.s32.totalorder %s35, 2
      %s37 = scalar_select %p36, 0, %s35
      %s38 = ssub.s32 %s25, %s37
      %p39 = scmp.eq.s32.totalorder %s38, 0
      %s41 = sadd.s32 %s40, 1
      %s42 = scalar_select %p39, %s40, %s41
      %p45 = pneg %p39
      %p46 = scmp.eq.s32.totalorder %s18, 1
      %p47 = por %p45, %p46
      %p48 = scmp.ne.s32.totalorder %s40, %s43
      %p49 = scmp.eq.s32.totalorder %s18, 0
      %p50 = por %p48, %p49
      %p51 = scmp.ne.s32.totalorder %s40, %s43
      %p52 = scmp.eq.s32.totalorder %s23, 1
      %p53 = por %p51, %p52
      %p54 = scmp.ne.s32.totalorder %s43, %s44
      %p55 = scmp.eq.s32.totalorder %s23, 0
      %p56 = por %p54, %p55
      %p57 = scmp.ne.s32.totalorder %s43, %s44
      %p58 = scmp.eq.s32.totalorder %s24, 1
      %p59 = por %p57, %p58
      %p61 = scmp.ne.s32.totalorder %s44, %s60
      %p62 = scmp.eq.s32.totalorder %s24, 0
      %p63 = por %p61, %p62
      %s65 = sadd.s32 %s64, 1
      %p68 = scmp.eq.s32.totalorder %s18, 1
      %p69 = scmp.ne.s32.totalorder %s64, %s66
      %p70 = scmp.eq.s32.totalorder %s18, 0
      %p71 = por %p69, %p70
      %p72 = scmp.ne.s32.totalorder %s64, %s66
      %p73 = scmp.eq.s32.totalorder %s23, 1
      %p74 = por %p72, %p73
      %p75 = scmp.ne.s32.totalorder %s66, %s67
      %p76 = scmp.eq.s32.totalorder %s23, 0
      %p77 = por %p75, %p76
      %p78 = scmp.ne.s32.totalorder %s66, %s67
      %p79 = scmp.eq.s32.totalorder %s24, 1
      %p80 = por %p78, %p79
      %p82 = scmp.ne.s32.totalorder %s67, %s81
      %p83 = scmp.eq.s32.totalorder %s24, 0
      %p84 = por %p82, %p83
      %s86 = sadd.s32 %s85, 1
      %p89 = scmp.eq.s32.totalorder %s18, 1
      %p90 = scmp.ne.s32.totalorder %s85, %s87
      %p91 = scmp.eq.s32.totalorder %s18, 0
      %p92 = por %p90, %p91
      %p93 = scmp.ne.s32.totalorder %s85, %s87
      %p94 = scmp.eq.s32.totalorder %s23, 1
      %p95 = por %p93, %p94
      %p96 = scmp.ne.s32.totalorder %s87, %s88
      %p97 = scmp.eq.s32.totalorder %s23, 0
      %p98 = por %p96, %p97
      %p99 = scmp.ne.s32.totalorder %s87, %s88
      %p100 = scmp.eq.s32.totalorder %s24, 1
      %p101 = por %p99, %p100
      %p103 = scmp.ne.s32.totalorder %s88, %s102
      %p104 = scmp.eq.s32.totalorder %s24, 0
      %p105 = por %p103, %p104
      %s107 = sadd.s32 %s106, 1
      %p110 = scmp.eq.s32.totalorder %s18, 1
      %p111 = scmp.ne.s32.totalorder %s106, %s108
      %p112 = scmp.eq.s32.totalorder %s18, 0
      %p113 = por %p111, %p112
      %p114 = scmp.ne.s32.totalorder %s106, %s108
      %p115 = scmp.eq.s32.totalorder %s23, 1
      %p116 = por %p114, %p115
      %p117 = scmp.ne.s32.totalorder %s108, %s109
      %p118 = scmp.eq.s32.totalorder %s23, 0
      %p119 = por %p117, %p118
      %p120 = scmp.ne.s32.totalorder %s108, %s109
      %p121 = scmp.eq.s32.totalorder %s24, 1
      %p122 = por %p120, %p121
      %p124 = scmp.ne.s32.totalorder %s109, %s123
      %p125 = scmp.eq.s32.totalorder %s24, 0
      %p126 = por %p124, %p125
      %s128 = sadd.s32 %s127, 1
      %p131 = scmp.eq.s32.totalorder %s18, 1
      %p132 = scmp.ne.s32.totalorder %s127, %s129
      %p133 = scmp.eq.s32.totalorder %s18, 0
      %p134 = por %p132, %p133
      %p135 = scmp.ne.s32.totalorder %s127, %s129
      %p136 = scmp.eq.s32.totalorder %s23, 1
      %p137 = por %p135, %p136
      %p138 = scmp.ne.s32.totalorder %s129, %s130
      %p139 = scmp.eq.s32.totalorder %s23, 0
      %p140 = por %p138, %p139
      %p141 = scmp.ne.s32.totalorder %s129, %s130
      %p142 = scmp.eq.s32.totalorder %s24, 1
      %p143 = por %p141, %p142
      %p145 = scmp.ne.s32.totalorder %s130, %s144
      %p146 = scmp.eq.s32.totalorder %s24, 0
      %p147 = por %p145, %p146
      %s149 = sadd.s32 %s148, 1
      %p152 = scmp.eq.s32.totalorder %s18, 1
      %p153 = scmp.ne.s32.totalorder %s148, %s150
      %p154 = scmp.eq.s32.totalorder %s18, 0
      %p155 = por %p153, %p154
      %p156 = scmp.ne.s32.totalorder %s148, %s150
      %p157 = scmp.eq.s32.totalorder %s23, 1
      %p158 = por %p156, %p157
      %p159 = scmp.ne.s32.totalorder %s150, %s151
      %p160 = scmp.eq.s32.totalorder %s23, 0
      %p161 = por %p159, %p160
      %p162 = scmp.ne.s32.totalorder %s150, %s151
      %p163 = scmp.eq.s32.totalorder %s24, 1
      %p164 = por %p162, %p163
      %p166 = scmp.ne.s32.totalorder %s151, %s165
      %p167 = scmp.eq.s32.totalorder %s24, 0
      %p168 = por %p166, %p167
      %s169 = ssub.s32 %s25, %s37
      %s170 = ssub.s32 %s26, %s33
      %s171 = sor.u32 %s169, %s170
      %p172 = scmp.eq.s32.totalorder %s171, 0
      %s174 = sadd.s32 %s173, 1
      %s175 = scalar_select %p172, %s173, %s174
      %p178 = pneg %p172
      %p179 = scmp.eq.s32.totalorder %s18, 1
      %p180 = por %p178, %p179
      %p181 = scmp.ne.s32.totalorder %s173, %s176
      %p182 = scmp.eq.s32.totalorder %s18, 0
      %p183 = por %p181, %p182
      %p184 = scmp.ne.s32.totalorder %s173, %s176
      %p185 = scmp.eq.s32.totalorder %s23, 1
      %p186 = por %p184, %p185
      %p187 = scmp.ne.s32.totalorder %s176, %s177
      %p188 = scmp.eq.s32.totalorder %s23, 0
      %p189 = por %p187, %p188
      %p190 = scmp.ne.s32.totalorder %s176, %s177
      %p191 = scmp.eq.s32.totalorder %s24, 1
      %p192 = por %p190, %p191
      %p194 = scmp.ne.s32.totalorder %s177, %s193
      %p195 = scmp.eq.s32.totalorder %s24, 0
      %p196 = por %p194, %p195
      %p197 = scmp.le.s32.totalorder 1, %s18
      %p198 = scmp.lt.s32.totalorder %s18, 3
      %p199 = pnand %p197, %p198
      %p200 = pneg %p199
      // Predicated region
      $region9: #{tpu_custom_call.1} parent=5 // pred_check
        _
      $region10: #{tpu_custom_call.1} parent=5 // pred_check_branch
        %202 = sbr.rel (%p199) target = $region12
      $region11: #{tpu_custom_call.1} parent=5 // pred_region
        %s203 = ssub.s32 %s18, 1
        // Predicated region
        $region13: #{tpu_custom_call.1} parent=11 // pred_check
          %p204 = pneg %p77
        $region14: #{tpu_custom_call.1} parent=11 // pred_check_branch
          %206 = sbr.rel (%p204) target = $region16
        $region15: #{tpu_custom_call.1} parent=11 // pred_region
          _
        $region16: #{tpu_custom_call.1} parent=11 // pred_fallthru
          _
        // Predicated region
        $region17: #{tpu_custom_call.1} parent=11 // pred_check
          %p207 = pneg %p98
        $region18: #{tpu_custom_call.1} parent=11 // pred_check_branch
          %209 = sbr.rel (%p207) target = $region20
        $region19: #{tpu_custom_call.1} parent=11 // pred_region
          _
        $region20: #{tpu_custom_call.1} parent=11 // pred_fallthru
          _
        // Predicated region
        $region21: #{tpu_custom_call.1} parent=11 // pred_check
          %p210 = pneg %p119
        $region22: #{tpu_custom_call.1} parent=11 // pred_check_branch
          %212 = sbr.rel (%p210) target = $region24
        $region23: #{tpu_custom_call.1} parent=11 // pred_region
          _
        $region24: #{tpu_custom_call.1} parent=11 // pred_fallthru
          _
        // Predicated region
        $region25: #{tpu_custom_call.1} parent=11 // pred_check
          %p213 = pneg %p140
        $region26: #{tpu_custom_call.1} parent=11 // pred_check_branch
          %215 = sbr.rel (%p213) target = $region28
        $region27: #{tpu_custom_call.1} parent=11 // pred_region
          _
        $region28: #{tpu_custom_call.1} parent=11 // pred_fallthru
          _
        // Predicated region
        $region29: #{tpu_custom_call.1} parent=11 // pred_check
          %p216 = pneg %p161
        $region30: #{tpu_custom_call.1} parent=11 // pred_check_branch
          %218 = sbr.rel (%p216) target = $region32
        $region31: #{tpu_custom_call.1} parent=11 // pred_region
          _
        $region32: #{tpu_custom_call.1} parent=11 // pred_fallthru
          _
      $region12: #{tpu_custom_call.1} parent=5 // pred_fallthru
        _
      %p219 = scmp.lt.s32.totalorder %s18, 2
      // Predicated region
      $region33: #{tpu_custom_call.1} parent=5 // pred_check
        %p220 = pneg %p219
      $region34: #{tpu_custom_call.1} parent=5 // pred_check_branch
        %222 = sbr.rel (%p220) target = $region36
      $region35: #{tpu_custom_call.1} parent=5 // pred_region
        // Predicated region
        $region37: #{tpu_custom_call.1} parent=35 // pred_check
          %p223 = pneg %p50
        $region38: #{tpu_custom_call.1} parent=35 // pred_check_branch
          %225 = sbr.rel (%p223) target = $region40
        $region39: #{tpu_custom_call.1} parent=35 // pred_region
          %s226 = sand.u32 %s40, 1
          %s227 = scalar_lea.sflag [#allocation3], %s226
          %s228 = sand.u32 %s40, 1
          %s229 = smul.addr %s228, 32
          %s230 = scalar_lea.vmem [#allocation2], %s229
          %s232 = ssub.s32 512, 512
          %233 = vsyncadd %s227, %s232
          %s234 = smul.addr %s25, 4
          %s235 = smul.addr %s234, 128
          %s236 = scalar_lea.hbm %s0, %s235
          %s237 = sshll.u32 %s230, 4
          %s238 = int_to_ptr.vmem [resolvable:$true] %s237
          %243 = dma.hbm_to_vmem [thread:$0]  %s236, 512, %s238, %s227, 128, 128, 8
        $region40: #{tpu_custom_call.1} parent=35 // pred_fallthru
          _
      $region36: #{tpu_custom_call.1} parent=5 // pred_fallthru
        _
      %p244 = scmp.le.s32.totalorder 1, %s18
      %p245 = scmp.lt.s32.totalorder %s18, 3
      %p246 = pnand %p244, %p245
      %p247 = pneg %p246
      // Predicated region
      $region41: #{tpu_custom_call.1} parent=5 // pred_check
        _
      $region42: #{tpu_custom_call.1} parent=5 // pred_check_branch
        %249 = sbr.rel (%p246) target = $region44
      $region43: #{tpu_custom_call.1} parent=5 // pred_region
        %s250 = ssub.s32 %s18, 1
        %s251 = sand.u32 %s43, 1
        %s252 = scalar_lea.sflag [#allocation3], %s251
        %s253 = sand.u32 %s43, 1
        %s254 = smul.addr %s253, 32
        %s255 = scalar_lea.vmem [#allocation2], %s254
        // Predicated region
        $region45: #{tpu_custom_call.1} parent=43 // pred_check
          %p256 = pneg %p56
        $region46: #{tpu_custom_call.1} parent=43 // pred_check_branch
          %258 = sbr.rel (%p256) target = $region48
        $region47: #{tpu_custom_call.1} parent=43 // pred_region
          %259 = dma.done %s252, 512
        $region48: #{tpu_custom_call.1} parent=43 // pred_fallthru
          _
        %s260 = sand.u32 %s43, 1
        %s261 = scalar_lea.sflag [#allocation3], %s260
        %s262 = sand.u32 %s43, 1
        %s263 = smul.addr %s262, 32
        %s264 = scalar_lea.vmem [#allocation2], %s263
        %p265 = pneg %p56
        %p266 = pneg %p53
        %p267 = pneg %p77
        %p268 = pneg %p74
        %p269 = pneg %p98
        %p270 = pneg %p95
        %p271 = pneg %p119
        %p272 = pneg %p116
        %p273 = pneg %p140
        %p274 = pneg %p137
        %p275 = pneg %p161
        %p276 = pneg %p158
        %p277 = pneg %p189
        %p278 = pneg %p186
        %s279 = sand.u32 %s176, 1
        %s280 = scalar_lea.sflag [#allocation4], %s279
        %s281 = sand.u32 %s176, 1
        %s282 = smul.addr %s281, 32
        %s283 = scalar_lea.vmem [#allocation5], %s282
        %s284 = smul.u32 2, %s28
        %v286 = vld [vmem:[%s1] sm:$0xf]
        %v287 = vld [vmem:[%s2] sm:$0xff]
        %v288 = vld [vmem:[%s3] sm:$0xff]
        %v289 = vld [vmem:[%s4] sm:$0xff]
        %v290 = vld [vmem:[%s5] sm:$0xff]
        %v291 = vld [vmem:[%s255] sm:$0x1]
        %v292 = vld [vmem:[%s255 + $0x8] sm:$0x1]
        %v293 = vld [vmem:[%s255 + $0x10] sm:$0x1]
        %v294 = vld [vmem:[%s255 + $0x18] sm:$0x1]
        %v295 = vpack.c.bf16 %v291, %v291
        %v296 = vpack.c.bf16 %v292, %v292
        %v297 = vpack.c.bf16 %v293, %v293
        %v298 = vpack.c.bf16 %v294, %v294
        %v303 = vunpack.c.l.b16 %v295
        %v304 = vunpack.c.l.b16 %v296
        %v305 = vunpack.c.l.b16 %v297
        %v306 = vunpack.c.l.b16 %v298
        %v307 = vrot.slane %v304, 7
        %vm308 = vcmask 1041409
        %v309 = vsel %vm308, %v307, %v303
        %v310 = vrot.slane %v305, 6
        %vm311 = vcmask 1042434
        %v312 = vsel %vm311, %v310, %v309
        %v313 = vrot.slane %v306, 5
        %vm314 = vcmask 1043459
        %v315 = vsel %vm314, %v313, %v312
        %v316 = vpack.c.b16 %v315, %v315
        %317 = vrot.lane.b32.xlu0 %v316, 127
        %v318 = vpop.permute.xlu0 %317
        %vm319 = vcmask 56320
        %v322 = vsel %vm319, %v318, 0
        %v323 = vld [vmem:[%s255 + $0x1] sm:$0x1]
        %v324 = vld [vmem:[%s255 + $0x9] sm:$0x1]
        %v325 = vld [vmem:[%s255 + $0x11] sm:$0x1]
        %v326 = vld [vmem:[%s255 + $0x19] sm:$0x1]
        %v327 = vpack.c.bf16 %v323, %v323
        %v328 = vpack.c.bf16 %v324, %v324
        %v329 = vpack.c.bf16 %v325, %v325
        %v330 = vpack.c.bf16 %v326, %v326
        %v335 = vunpack.c.l.b16 %v327
        %v336 = vunpack.c.l.b16 %v328
        %v337 = vunpack.c.l.b16 %v329
        %v338 = vunpack.c.l.b16 %v330
        %v339 = vrot.slane %v336, 7
        %v340 = vsel %vm308, %v339, %v335
        %v341 = vrot.slane %v337, 6
        %v342 = vsel %vm311, %v341, %v340
        %v343 = vrot.slane %v338, 5
        %v344 = vsel %vm314, %v343, %v342
        %v345 = vpack.c.b16 %v344, %v344
        %346 = vrot.lane.b32.xlu0 %v345, 127
        %v347 = vpop.permute.xlu0 %346
        %v349 = vsel %vm319, %v347, 0
        %v351 = vrot.slane %v322, 6
        %v353 = vrot.slane %v349, 2
        %vm354 = vcmask 1041408
        %v357 = vsel %vm354, %v316, %v351
        %vm358 = vcmask 1043456
        %v360 = vsel %vm358, %v357, %v345
        %vm361 = vcmask 1045504
        %v363 = vsel %vm361, %v360, %v353
        %vm365 = vcmask 130048
        %v367 = vsel %vm365, %v286, 0
        %369 = vmatprep.subr.bf16.mxu0 0
        %370 = vmatpush1.bf16.msra.mxu0 %v363
        %371 = vmatprep.subr.bf16.mxu0 0
        %372 = vmatpush1.bf16.msra.mxu0 0
        %373 = vmatprep.subr.bf16.mxu0 0
        %374 = vmatpush1.bf16.msra.mxu0 0
        %375 = vmatprep.subr.bf16.mxu0 0
        %376 = vmatpush1.bf16.msra.mxu0 0
        %377 = vmatprep.subr.bf16.mxu0 0
        %378 = vmatpush1.bf16.msra.mxu0 0
        %379 = vmatprep.subr.bf16.mxu0 0
        %380 = vmatpush1.bf16.msra.mxu0 0
        %381 = vmatprep.subr.bf16.mxu0 0
        %382 = vmatpush1.bf16.msra.mxu0 0
        %383 = vmatprep.subr.bf16.mxu0 0
        %384 = vmatpush1.bf16.msra.mxu0 0
        %385 = vmatprep.subr.bf16.mxu0 0
        %386 = vmatpush1.bf16.msra.mxu0 0
        %387 = vmatprep.subr.bf16.mxu0 0
        %388 = vmatpush1.bf16.msra.mxu0 0
        %389 = vmatprep.subr.bf16.mxu0 0
        %390 = vmatpush1.bf16.msra.mxu0 0
        %391 = vmatprep.subr.bf16.mxu0 0
        %392 = vmatpush1.bf16.msra.mxu0 0
        %393 = vmatprep.subr.bf16.mxu0 0
        %394 = vmatpush1.bf16.msra.mxu0 0
        %395 = vmatprep.subr.bf16.mxu0 0
        %396 = vmatpush1.bf16.msra.mxu0 0
        %397 = vmatprep.subr.bf16.mxu0 0
        %398 = vmatpush1.bf16.msra.mxu0 0
        %399 = vmatprep.subr.bf16.mxu0 0
        %400 = vmatpush1.bf16.msra.mxu0 0
        %401 = vmatprep.mubr.bf16.mxu0 0
        %402 = vmatmul.mubr.bf16.gmra.mrb[0].mxu0 %v367
        %v403 = vpop.f32.mrb[0].mxu0
        %v404 = vadd.f32 0.0, %v403
        %v405 = vpop.f32.mrb[0].mxu0
        %v406 = vpop.f32.mrb[0].mxu0
        %v407 = vpop.f32.mrb[0].mxu0
        %408 = vdwg.mxu0
        %410 = vset.pattern.permute.xlu0 0
        %411 = vperm.xlu0 %410, %v287
        %v412 = vpop.permute.xlu0 %411
        %v414 = vmul.f32 %v404, %v412
        %416 = vset.pattern.permute.xlu0 0
        %417 = vperm.xlu0 %416, %v288
        %v418 = vpop.permute.xlu0 %417
        %v420 = vadd.f32 %v414, %v418
        %v421 = vmax.f32 %v420, 0.0
        %v423 = vrot.slane %v421, 4
        %vm424 = vcmask 64512
        %v425 = vsel %vm424, %v423, 0
        %427 = vmatprep.subr.mxu0 0.0
        %428 = vmatpush1.msra.mxu0 %v290
        %429 = vmatprep.subr.mxu0 0.0
        %430 = vmatpush1.msra.mxu0 0.0
        %431 = vmatprep.subr.mxu0 0.0
        %432 = vmatpush1.msra.mxu0 0.0
        %433 = vmatprep.subr.mxu0 0.0
        %434 = vmatpush1.msra.mxu0 0.0
        %435 = vmatprep.subr.mxu0 0.0
        %436 = vmatpush1.msra.mxu0 0.0
        %437 = vmatprep.subr.mxu0 0.0
        %438 = vmatpush1.msra.mxu0 0.0
        %439 = vmatprep.subr.mxu0 0.0
        %440 = vmatpush1.msra.mxu0 0.0
        %441 = vmatprep.subr.mxu0 0.0
        %442 = vmatpush1.msra.mxu0 0.0
        %443 = vmatprep.subr.mxu0 0.0
        %444 = vmatpush1.msra.mxu0 0.0
        %445 = vmatprep.subr.mxu0 0.0
        %446 = vmatpush1.msra.mxu0 0.0
        %447 = vmatprep.subr.mxu0 0.0
        %448 = vmatpush1.msra.mxu0 0.0
        %449 = vmatprep.subr.mxu0 0.0
        %450 = vmatpush1.msra.mxu0 0.0
        %451 = vmatprep.subr.mxu0 0.0
        %452 = vmatpush1.msra.mxu0 0.0
        %453 = vmatprep.subr.mxu0 0.0
        %454 = vmatpush1.msra.mxu0 0.0
        %455 = vmatprep.subr.mxu0 0.0
        %456 = vmatpush1.msra.mxu0 0.0
        %457 = vmatprep.subr.mxu0 0.0
        %458 = vmatpush1.msra.mxu0 0.0
        %459 = vmatprep.subr.mxu0 0.0
        %460 = vmatpush1.msra.mxu0 0.0
        %461 = vmatprep.subr.mxu0 0.0
        %462 = vmatpush1.msra.mxu0 0.0
        %463 = vmatprep.subr.mxu0 0.0
        %464 = vmatpush1.msra.mxu0 0.0
        %465 = vmatprep.subr.mxu0 0.0
        %466 = vmatpush1.msra.mxu0 0.0
        %467 = vmatprep.subr.mxu0 0.0
        %468 = vmatpush1.msra.mxu0 0.0
        %469 = vmatprep.subr.mxu0 0.0
        %470 = vmatpush1.msra.mxu0 0.0
        %471 = vmatprep.subr.mxu0 0.0
        %472 = vmatpush1.msra.mxu0 0.0
        %473 = vmatprep.subr.mxu0 0.0
        %474 = vmatpush1.msra.mxu0 0.0
        %475 = vmatprep.subr.mxu0 0.0
        %476 = vmatpush1.msra.mxu0 0.0
        %477 = vmatprep.subr.mxu0 0.0
        %478 = vmatpush1.msra.mxu0 0.0
        %479 = vmatprep.subr.mxu0 0.0
        %480 = vmatpush1.msra.mxu0 0.0
        %481 = vmatprep.subr.mxu0 0.0
        %482 = vmatpush1.msra.mxu0 0.0
        %483 = vmatprep.subr.mxu0 0.0
        %484 = vmatpush1.msra.mxu0 0.0
        %485 = vmatprep.subr.mxu0 0.0
        %486 = vmatpush1.msra.mxu0 0.0
        %487 = vmatprep.subr.mxu0 0.0
        %488 = vmatpush1.msra.mxu0 0.0
        %489 = vmatprep.subr.mxu0 0.0
        %490 = vmatpush1.msra.mxu0 0.0
        %491 = vmatprep.mubr.f32.mxu0 0.0
        %492 = vmatmul.mubr.f32.gmra.mrb[0].mxu0 %v425
        %v493 = vpop.f32.mrb[0].mxu0
        %v494 = vadd.f32 0.0, %v493
        %v495 = vpop.f32.mrb[0].mxu0
        %496 = vdwg.mxu0
        %v497 = vsel %vm424, %v421, 0
        %499 = vmatprep.subr.mxu0 0.0
        %500 = vmatpush1.msra.mxu0 %v289
        %501 = vmatprep.subr.mxu0 0.0
        %502 = vmatpush1.msra.mxu0 0.0
        %503 = vmatprep.subr.mxu0 0.0
        %504 = vmatpush1.msra.mxu0 0.0
        %505 = vmatprep.subr.mxu0 0.0
        %506 = vmatpush1.msra.mxu0 0.0
        %507 = vmatprep.subr.mxu0 0.0
        %508 = vmatpush1.msra.mxu0 0.0
        %509 = vmatprep.subr.mxu0 0.0
        %510 = vmatpush1.msra.mxu0 0.0
        %511 = vmatprep.subr.mxu0 0.0
        %512 = vmatpush1.msra.mxu0 0.0
        %513 = vmatprep.subr.mxu0 0.0
        %514 = vmatpush1.msra.mxu0 0.0
        %515 = vmatprep.subr.mxu0 0.0
        %516 = vmatpush1.msra.mxu0 0.0
        %517 = vmatprep.subr.mxu0 0.0
        %518 = vmatpush1.msra.mxu0 0.0
        %519 = vmatprep.subr.mxu0 0.0
        %520 = vmatpush1.msra.mxu0 0.0
        %521 = vmatprep.subr.mxu0 0.0
        %522 = vmatpush1.msra.mxu0 0.0
        %523 = vmatprep.subr.mxu0 0.0
        %524 = vmatpush1.msra.mxu0 0.0
        %525 = vmatprep.subr.mxu0 0.0
        %526 = vmatpush1.msra.mxu0 0.0
        %527 = vmatprep.subr.mxu0 0.0
        %528 = vmatpush1.msra.mxu0 0.0
        %529 = vmatprep.subr.mxu0 0.0
        %530 = vmatpush1.msra.mxu0 0.0
        %531 = vmatprep.subr.mxu0 0.0
        %532 = vmatpush1.msra.mxu0 0.0
        %533 = vmatprep.subr.mxu0 0.0
        %534 = vmatpush1.msra.mxu0 0.0
        %535 = vmatprep.subr.mxu0 0.0
        %536 = vmatpush1.msra.mxu0 0.0
        %537 = vmatprep.subr.mxu0 0.0
        %538 = vmatpush1.msra.mxu0 0.0
        %539 = vmatprep.subr.mxu0 0.0
        %540 = vmatpush1.msra.mxu0 0.0
        %541 = vmatprep.subr.mxu0 0.0
        %542 = vmatpush1.msra.mxu0 0.0
        %543 = vmatprep.subr.mxu0 0.0
        %544 = vmatpush1.msra.mxu0 0.0
        %545 = vmatprep.subr.mxu0 0.0
        %546 = vmatpush1.msra.mxu0 0.0
        %547 = vmatprep.subr.mxu0 0.0
        %548 = vmatpush1.msra.mxu0 0.0
        %549 = vmatprep.subr.mxu0 0.0
        %550 = vmatpush1.msra.mxu0 0.0
        %551 = vmatprep.subr.mxu0 0.0
        %552 = vmatpush1.msra.mxu0 0.0
        %553 = vmatprep.subr.mxu0 0.0
        %554 = vmatpush1.msra.mxu0 0.0
        %555 = vmatprep.subr.mxu0 0.0
        %556 = vmatpush1.msra.mxu0 0.0
        %557 = vmatprep.subr.mxu0 0.0
        %558 = vmatpush1.msra.mxu0 0.0
        %559 = vmatprep.subr.mxu0 0.0
        %560 = vmatpush1.msra.mxu0 0.0
        %561 = vmatprep.subr.mxu0 0.0
        %562 = vmatpush1.msra.mxu0 0.0
        %563 = vmatprep.mubr.f32.mxu0 0.0
        %564 = vmatmul.mubr.f32.gmra.mrb[0].mxu0 %v497
        %v565 = vpop.f32.mrb[0].mxu0
        %v566 = vadd.f32 %v494, %v565
        %v567 = vpop.f32.mrb[0].mxu0
        %568 = vdwg.mxu0
        %v571 = vunpack.c.l.s4 1966171168
        %v572 = vunpack.c.0.s8 %v571
        %v573 = vlaneseq
        %v574 = vshrl.u32 %v573, 7
        %v575 = vsub.s32 %v572, %v574
        %v576 = vrot.slane %v566, %v575
        %v577 = vcombine.high %v576, %v576
        %v579 = vunpack.c.l.s4 1966171168
        %v580 = vunpack.c.0.s8 %v579
        %v581 = vlaneseq
        %v582 = vshrl.u32 %v581, 7
        %v583 = vsub.s32 %v580, %v582
        %v584 = vrot.slane %v576, %v583
        %v586 = vunpack.c.l.s4 1966171168
        %v587 = vunpack.c.0.s8 %v586
        %v588 = vlaneseq
        %v589 = vshrl.u32 %v588, 7
        %v590 = vsub.s32 %v587, %v589
        %v591 = vrot.slane %v577, %v590
        %vm594 = vcmask 122880
        %595 = vst.msk [vmem:[%s283] sm:$0x1] %vm594, %v584
        %596 = vst.msk [vmem:[%s283 + $0x10] sm:$0x1] %vm594, %v591
        %v597 = vcombine.high %v584, %v584
        %v598 = vcombine.high %v591, %v591
        %601 = vst.msk [vmem:[%s283 + $0x1] sm:$0x1] %vm594, %v597
        %602 = vst.msk [vmem:[%s283 + $0x11] sm:$0x1] %vm594, %v598
        %v603 = vld [vmem:[%s255 + $0x1] sm:$0x1]
        %v604 = vld [vmem:[%s255 + $0x9] sm:$0x1]
        %v605 = vld [vmem:[%s255 + $0x11] sm:$0x1]
        %v606 = vld [vmem:[%s255 + $0x19] sm:$0x1]
        %v607 = vpack.c.bf16 %v603, %v603
        %v608 = vpack.c.bf16 %v604, %v604
        %v609 = vpack.c.bf16 %v605, %v605
        %v610 = vpack.c.bf16 %v606, %v606
        %v615 = vunpack.c.l.b16 %v607
        %v616 = vunpack.c.l.b16 %v608
        %v617 = vunpack.c.l.b16 %v609
        %v618 = vunpack.c.l.b16 %v610
        %v619 = vrot.slane %v616, 7
        %v620 = vsel %vm308, %v619, %v615
        %v621 = vrot.slane %v617, 6
        %v622 = vsel %vm311, %v621, %v620
        %v623 = vrot.slane %v618, 5
        %v624 = vsel %vm314, %v623, %v622
        %v625 = vpack.c.b16 %v624, %v624
        %626 = vrot.lane.b32.xlu0 %v625, 127
        %v627 = vpop.permute.xlu0 %626
        %v629 = vsel %vm319, %v627, 0
        %v630 = vld [vmem:[%s255 + $0x2] sm:$0x1]
        %v631 = vld [vmem:[%s255 + $0xa] sm:$0x1]
        %v632 = vld [vmem:[%s255 + $0x12] sm:$0x1]
        %v633 = vld [vmem:[%s255 + $0x1a] sm:$0x1]
        %v634 = vpack.c.bf16 %v630, %v630
        %v635 = vpack.c.bf16 %v631, %v631
        %v636 = vpack.c.bf16 %v632, %v632
        %v637 = vpack.c.bf16 %v633, %v633
        %v642 = vunpack.c.l.b16 %v634
        %v643 = vunpack.c.l.b16 %v635
        %v644 = vunpack.c.l.b16 %v636
        %v645 = vunpack.c.l.b16 %v637
        %v646 = vrot.slane %v643, 7
        %v647 = vsel %vm308, %v646, %v642
        %v648 = vrot.slane %v644, 6
        %v649 = vsel %vm311, %v648, %v647
        %v650 = vrot.slane %v645, 5
        %v651 = vsel %vm314, %v650, %v649
        %v652 = vpack.c.b16 %v651, %v651
        %653 = vrot.lane.b32.xlu0 %v652, 127
        %v654 = vpop.permute.xlu0 %653
        %v656 = vsel %vm319, %v654, 0
        %v658 = vrot.slane %v629, 6
        %v660 = vrot.slane %v656, 2
        %v663 = vsel %vm354, %v625, %v658
        %v665 = vsel %vm358, %v663, %v652
        %v667 = vsel %vm361, %v665, %v660
        %669 = vmatprep.subr.bf16.mxu0 0
        %670 = vmatpush1.bf16.msra.mxu0 %v667
        %671 = vmatprep.subr.bf16.mxu0 0
        %672 = vmatpush1.bf16.msra.mxu0 0
        %673 = vmatprep.subr.bf16.mxu0 0
        %674 = vmatpush1.bf16.msra.mxu0 0
        %675 = vmatprep.subr.bf16.mxu0 0
        %676 = vmatpush1.bf16.msra.mxu0 0
        %677 = vmatprep.subr.bf16.mxu0 0
        %678 = vmatpush1.bf16.msra.mxu0 0
        %679 = vmatprep.subr.bf16.mxu0 0
        %680 = vmatpush1.bf16.msra.mxu0 0
        %681 = vmatprep.subr.bf16.mxu0 0
        %682 = vmatpush1.bf16.msra.mxu0 0
        %683 = vmatprep.subr.bf16.mxu0 0
        %684 = vmatpush1.bf16.msra.mxu0 0
        %685 = vmatprep.subr.bf16.mxu0 0
        %686 = vmatpush1.bf16.msra.mxu0 0
        %687 = vmatprep.subr.bf16.mxu0 0
        %688 = vmatpush1.bf16.msra.mxu0 0
        %689 = vmatprep.subr.bf16.mxu0 0
        %690 = vmatpush1.bf16.msra.mxu0 0
        %691 = vmatprep.subr.bf16.mxu0 0
        %692 = vmatpush1.bf16.msra.mxu0 0
        %693 = vmatprep.subr.bf16.mxu0 0
        %694 = vmatpush1.bf16.msra.mxu0 0
        %695 = vmatprep.subr.bf16.mxu0 0
        %696 = vmatpush1.bf16.msra.mxu0 0
        %697 = vmatprep.subr.bf16.mxu0 0
        %698 = vmatpush1.bf16.msra.mxu0 0
        %699 = vmatprep.subr.bf16.mxu0 0
        %700 = vmatpush1.bf16.msra.mxu0 0
        %701 = vmatprep.mubr.bf16.mxu0 0
        %702 = vmatmul.mubr.bf16.gmra.mrb[0].mxu0 %v367
        %v703 = vpop.f32.mrb[0].mxu0
        %v704 = vadd.f32 0.0, %v703
        %v705 = vpop.f32.mrb[0].mxu0
        %v706 = vpop.f32.mrb[0].mxu0
        %v707 = vpop.f32.mrb[0].mxu0
        %708 = vdwg.mxu0
        %v709 = vmul.f32 %v704, %v412
        %v710 = vadd.f32 %v709, %v418
        %v711 = vmax.f32 %v710, 0.0
        %v713 = vrot.slane %v711, 4
        %v714 = vsel %vm424, %v713, 0
        %716 = vmatprep.subr.mxu0 0.0
        %717 = vmatpush1.msra.mxu0 %v290
        %718 = vmatprep.subr.mxu0 0.0
        %719 = vmatpush1.msra.mxu0 0.0
        %720 = vmatprep.subr.mxu0 0.0
        %721 = vmatpush1.msra.mxu0 0.0
        %722 = vmatprep.subr.mxu0 0.0
        %723 = vmatpush1.msra.mxu0 0.0
        %724 = vmatprep.subr.mxu0 0.0
        %725 = vmatpush1.msra.mxu0 0.0
        %726 = vmatprep.subr.mxu0 0.0
        %727 = vmatpush1.msra.mxu0 0.0
        %728 = vmatprep.subr.mxu0 0.0
        %729 = vmatpush1.msra.mxu0 0.0
        %730 = vmatprep.subr.mxu0 0.0
        %731 = vmatpush1.msra.mxu0 0.0
        %732 = vmatprep.subr.mxu0 0.0
        %733 = vmatpush1.msra.mxu0 0.0
        %734 = vmatprep.subr.mxu0 0.0
        %735 = vmatpush1.msra.mxu0 0.0
        %736 = vmatprep.subr.mxu0 0.0
        %737 = vmatpush1.msra.mxu0 0.0
        %738 = vmatprep.subr.mxu0 0.0
        %739 = vmatpush1.msra.mxu0 0.0
        %740 = vmatprep.subr.mxu0 0.0
        %741 = vmatpush1.msra.mxu0 0.0
        %742 = vmatprep.subr.mxu0 0.0
        %743 = vmatpush1.msra.mxu0 0.0
        %744 = vmatprep.subr.mxu0 0.0
        %745 = vmatpush1.msra.mxu0 0.0
        %746 = vmatprep.subr.mxu0 0.0
        %747 = vmatpush1.msra.mxu0 0.0
        %748 = vmatprep.subr.mxu0 0.0
        %749 = vmatpush1.msra.mxu0 0.0
        %750 = vmatprep.subr.mxu0 0.0
        %751 = vmatpush1.msra.mxu0 0.0
        %752 = vmatprep.subr.mxu0 0.0
        %753 = vmatpush1.msra.mxu0 0.0
        %754 = vmatprep.subr.mxu0 0.0
        %755 = vmatpush1.msra.mxu0 0.0
        %756 = vmatprep.subr.mxu0 0.0
        %757 = vmatpush1.msra.mxu0 0.0
        %758 = vmatprep.subr.mxu0 0.0
        %759 = vmatpush1.msra.mxu0 0.0
        %760 = vmatprep.subr.mxu0 0.0
        %761 = vmatpush1.msra.mxu0 0.0
        %762 = vmatprep.subr.mxu0 0.0
        %763 = vmatpush1.msra.mxu0 0.0
        %764 = vmatprep.subr.mxu0 0.0
        %765 = vmatpush1.msra.mxu0 0.0
        %766 = vmatprep.subr.mxu0 0.0
        %767 = vmatpush1.msra.mxu0 0.0
        %768 = vmatprep.subr.mxu0 0.0
        %769 = vmatpush1.msra.mxu0 0.0
        %770 = vmatprep.subr.mxu0 0.0
        %771 = vmatpush1.msra.mxu0 0.0
        %772 = vmatprep.subr.mxu0 0.0
        %773 = vmatpush1.msra.mxu0 0.0
        %774 = vmatprep.subr.mxu0 0.0
        %775 = vmatpush1.msra.mxu0 0.0
        %776 = vmatprep.subr.mxu0 0.0
        %777 = vmatpush1.msra.mxu0 0.0
        %778 = vmatprep.subr.mxu0 0.0
        %779 = vmatpush1.msra.mxu0 0.0
        %780 = vmatprep.mubr.f32.mxu0 0.0
        %781 = vmatmul.mubr.f32.gmra.mrb[0].mxu0 %v714
        %v782 = vpop.f32.mrb[0].mxu0
        %v783 = vadd.f32 0.0, %v782
        %v784 = vpop.f32.mrb[0].mxu0
        %785 = vdwg.mxu0
        %v786 = vsel %vm424, %v711, 0
        %788 = vmatprep.subr.mxu0 0.0
        %789 = vmatpush1.msra.mxu0 %v289
        %790 = vmatprep.subr.mxu0 0.0
        %791 = vmatpush1.msra.mxu0 0.0
        %792 = vmatprep.subr.mxu0 0.0
        %793 = vmatpush1.msra.mxu0 0.0
        %794 = vmatprep.subr.mxu0 0.0
        %795 = vmatpush1.msra.mxu0 0.0
        %796 = vmatprep.subr.mxu0 0.0
        %797 = vmatpush1.msra.mxu0 0.0
        %798 = vmatprep.subr.mxu0 0.0
        %799 = vmatpush1.msra.mxu0 0.0
        %800 = vmatprep.subr.mxu0 0.0
        %801 = vmatpush1.msra.mxu0 0.0
        %802 = vmatprep.subr.mxu0 0.0
        %803 = vmatpush1.msra.mxu0 0.0
        %804 = vmatprep.subr.mxu0 0.0
        %805 = vmatpush1.msra.mxu0 0.0
        %806 = vmatprep.subr.mxu0 0.0
        %807 = vmatpush1.msra.mxu0 0.0
        %808 = vmatprep.subr.mxu0 0.0
        %809 = vmatpush1.msra.mxu0 0.0
        %810 = vmatprep.subr.mxu0 0.0
        %811 = vmatpush1.msra.mxu0 0.0
        %812 = vmatprep.subr.mxu0 0.0
        %813 = vmatpush1.msra.mxu0 0.0
        %814 = vmatprep.subr.mxu0 0.0
        %815 = vmatpush1.msra.mxu0 0.0
        %816 = vmatprep.subr.mxu0 0.0
        %817 = vmatpush1.msra.mxu0 0.0
        %818 = vmatprep.subr.mxu0 0.0
        %819 = vmatpush1.msra.mxu0 0.0
        %820 = vmatprep.subr.mxu0 0.0
        %821 = vmatpush1.msra.mxu0 0.0
        %822 = vmatprep.subr.mxu0 0.0
        %823 = vmatpush1.msra.mxu0 0.0
        %824 = vmatprep.subr.mxu0 0.0
        %825 = vmatpush1.msra.mxu0 0.0
        %826 = vmatprep.subr.mxu0 0.0
        %827 = vmatpush1.msra.mxu0 0.0
        %828 = vmatprep.subr.mxu0 0.0
        %829 = vmatpush1.msra.mxu0 0.0
        %830 = vmatprep.subr.mxu0 0.0
        %831 = vmatpush1.msra.mxu0 0.0
        %832 = vmatprep.subr.mxu0 0.0
        %833 = vmatpush1.msra.mxu0 0.0
        %834 = vmatprep.subr.mxu0 0.0
        %835 = vmatpush1.msra.mxu0 0.0
        %836 = vmatprep.subr.mxu0 0.0
        %837 = vmatpush1.msra.mxu0 0.0
        %838 = vmatprep.subr.mxu0 0.0
        %839 = vmatpush1.msra.mxu0 0.0
        %840 = vmatprep.subr.mxu0 0.0
        %841 = vmatpush1.msra.mxu0 0.0
        %842 = vmatprep.subr.mxu0 0.0
        %843 = vmatpush1.msra.mxu0 0.0
        %844 = vmatprep.subr.mxu0 0.0
        %845 = vmatpush1.msra.mxu0 0.0
        %846 = vmatprep.subr.mxu0 0.0
        %847 = vmatpush1.msra.mxu0 0.0
        %848 = vmatprep.subr.mxu0 0.0
        %849 = vmatpush1.msra.mxu0 0.0
        %850 = vmatprep.subr.mxu0 0.0
        %851 = vmatpush1.msra.mxu0 0.0
        %852 = vmatprep.mubr.f32.mxu0 0.0
        %853 = vmatmul.mubr.f32.gmra.mrb[0].mxu0 %v786
        %v854 = vpop.f32.mrb[0].mxu0
        %v855 = vadd.f32 %v783, %v854
        %v856 = vpop.f32.mrb[0].mxu0
        %857 = vdwg.mxu0
        %v860 = vunpack.c.l.s4 1966171168
        %v861 = vunpack.c.0.s8 %v860
        %v862 = vlaneseq
        %v863 = vshrl.u32 %v862, 7
        %v864 = vsub.s32 %v861, %v863
        %v865 = vrot.slane %v855, %v864
        %v866 = vcombine.high %v865, %v865
        %v868 = vunpack.c.l.s4 1966171168
        %v869 = vunpack.c.0.s8 %v868
        %v870 = vlaneseq
        %v871 = vshrl.u32 %v870, 7
        %v872 = vsub.s32 %v869, %v871
        %v873 = vrot.slane %v865, %v872
        %v875 = vunpack.c.l.s4 1966171168
        %v876 = vunpack.c.0.s8 %v875
        %v877 = vlaneseq
        %v878 = vshrl.u32 %v877, 7
        %v879 = vsub.s32 %v876, %v878
        %v880 = vrot.slane %v866, %v879
        %883 = vst.msk [vmem:[%s283 + $0x2] sm:$0x1] %vm594, %v873
        %884 = vst.msk [vmem:[%s283 + $0x12] sm:$0x1] %vm594, %v880
        %v885 = vcombine.high %v873, %v873
        %v886 = vcombine.high %v880, %v880
        %889 = vst.msk [vmem:[%s283 + $0x3] sm:$0x1] %vm594, %v885
        %890 = vst.msk [vmem:[%s283 + $0x13] sm:$0x1] %vm594, %v886
        %v891 = vld [vmem:[%s255 + $0x2] sm:$0x1]
        %v892 = vld [vmem:[%s255 + $0xa] sm:$0x1]
        %v893 = vld [vmem:[%s255 + $0x12] sm:$0x1]
        %v894 = vld [vmem:[%s255 + $0x1a] sm:$0x1]
        %v895 = vpack.c.bf16 %v891, %v891
        %v896 = vpack.c.bf16 %v892, %v892
        %v897 = vpack.c.bf16 %v893, %v893
        %v898 = vpack.c.bf16 %v894, %v894
        %v903 = vunpack.c.l.b16 %v895
        %v904 = vunpack.c.l.b16 %v896
        %v905 = vunpack.c.l.b16 %v897
        %v906 = vunpack.c.l.b16 %v898
        %v907 = vrot.slane %v904, 7
        %v908 = vsel %vm308, %v907, %v903
        %v909 = vrot.slane %v905, 6
        %v910 = vsel %vm311, %v909, %v908
        %v911 = vrot.slane %v906, 5
        %v912 = vsel %vm314, %v911, %v910
        %v913 = vpack.c.b16 %v912, %v912
        %914 = vrot.lane.b32.xlu0 %v913, 127
        %v915 = vpop.permute.xlu0 %914
        %v917 = vsel %vm319, %v915, 0
        %v918 = vld [vmem:[%s255 + $0x3] sm:$0x1]
        %v919 = vld [vmem:[%s255 + $0xb] sm:$0x1]
        %v920 = vld [vmem:[%s255 + $0x13] sm:$0x1]
        %v921 = vld [vmem:[%s255 + $0x1b] sm:$0x1]
        %v922 = vpack.c.bf16 %v918, %v918
        %v923 = vpack.c.bf16 %v919, %v919
        %v924 = vpack.c.bf16 %v920, %v920
        %v925 = vpack.c.bf16 %v921, %v921
        %v930 = vunpack.c.l.b16 %v922
        %v931 = vunpack.c.l.b16 %v923
        %v932 = vunpack.c.l.b16 %v924
        %v933 = vunpack.c.l.b16 %v925
        %v934 = vrot.slane %v931, 7
        %v935 = vsel %vm308, %v934, %v930
        %v936 = vrot.slane %v932, 6
        %v937 = vsel %vm311, %v936, %v935
        %v938 = vrot.slane %v933, 5
        %v939 = vsel %vm314, %v938, %v937
        %v940 = vpack.c.b16 %v939, %v939
        %941 = vrot.lane.b32.xlu0 %v940, 127
        %v942 = vpop.permute.xlu0 %941
        %v944 = vsel %vm319, %v942, 0
        %v946 = vrot.slane %v917, 6
        %v948 = vrot.slane %v944, 2
        %v951 = vsel %vm354, %v913, %v946
        %v953 = vsel %vm358, %v951, %v940
        %v955 = vsel %vm361, %v953, %v948
        %957 = vmatprep.subr.bf16.mxu0 0
        %958 = vmatpush1.bf16.msra.mxu0 %v955
        %959 = vmatprep.subr.bf16.mxu0 0
        %960 = vmatpush1.bf16.msra.mxu0 0
        %961 = vmatprep.subr.bf16.mxu0 0
        %962 = vmatpush1.bf16.msra.mxu0 0
        %963 = vmatprep.subr.bf16.mxu0 0
        %964 = vmatpush1.bf16.msra.mxu0 0
        %965 = vmatprep.subr.bf16.mxu0 0
        %966 = vmatpush1.bf16.msra.mxu0 0
        %967 = vmatprep.subr.bf16.mxu0 0
        %968 = vmatpush1.bf16.msra.mxu0 0
        %969 = vmatprep.subr.bf16.mxu0 0
        %970 = vmatpush1.bf16.msra.mxu0 0
        %971 = vmatprep.subr.bf16.mxu0 0
        %972 = vmatpush1.bf16.msra.mxu0 0
        %973 = vmatprep.subr.bf16.mxu0 0
        %974 = vmatpush1.bf16.msra.mxu0 0
        %975 = vmatprep.subr.bf16.mxu0 0
        %976 = vmatpush1.bf16.msra.mxu0 0
        %977 = vmatprep.subr.bf16.mxu0 0
        %978 = vmatpush1.bf16.msra.mxu0 0
        %979 = vmatprep.subr.bf16.mxu0 0
        %980 = vmatpush1.bf16.msra.mxu0 0
        %981 = vmatprep.subr.bf16.mxu0 0
        %982 = vmatpush1.bf16.msra.mxu0 0
        %983 = vmatprep.subr.bf16.mxu0 0
        %984 = vmatpush1.bf16.msra.mxu0 0
        %985 = vmatprep.subr.bf16.mxu0 0
        %986 = vmatpush1.bf16.msra.mxu0 0
        %987 = vmatprep.subr.bf16.mxu0 0
        %988 = vmatpush1.bf16.msra.mxu0 0
        %989 = vmatprep.mubr.bf16.mxu0 0
        %990 = vmatmul.mubr.bf16.gmra.mrb[0].mxu0 %v367
        %v991 = vpop.f32.mrb[0].mxu0
        %v992 = vadd.f32 0.0, %v991
        %v993 = vpop.f32.mrb[0].mxu0
        %v994 = vpop.f32.mrb[0].mxu0
        %v995 = vpop.f32.mrb[0].mxu0
        %996 = vdwg.mxu0
        %v997 = vmul.f32 %v992, %v412
        %v998 = vadd.f32 %v997, %v418
        %v999 = vmax.f32 %v998, 0.0
        %v1001 = vrot.slane %v999, 4
        %v1002 = vsel %vm424, %v1001, 0
        %1004 = vmatprep.subr.mxu0 0.0
        %1005 = vmatpush1.msra.mxu0 %v290
        %1006 = vmatprep.subr.mxu0 0.0
        %1007 = vmatpush1.msra.mxu0 0.0
        %1008 = vmatprep.subr.mxu0 0.0
        %1009 = vmatpush1.msra.mxu0 0.0
        %1010 = vmatprep.subr.mxu0 0.0
        %1011 = vmatpush1.msra.mxu0 0.0
        %1012 = vmatprep.subr.mxu0 0.0
        %1013 = vmatpush1.msra.mxu0 0.0
        %1014 = vmatprep.subr.mxu0 0.0
        %1015 = vmatpush1.msra.mxu0 0.0
        %1016 = vmatprep.subr.mxu0 0.0
        %1017 = vmatpush1.msra.mxu0 0.0
        %1018 = vmatprep.subr.mxu0 0.0
        %1019 = vmatpush1.msra.mxu0 0.0
        %1020 = vmatprep.subr.mxu0 0.0
        %1021 = vmatpush1.msra.mxu0 0.0
        %1022 = vmatprep.subr.mxu0 0.0
        %1023 = vmatpush1.msra.mxu0 0.0
        %1024 = vmatprep.subr.mxu0 0.0
        %1025 = vmatpush1.msra.mxu0 0.0
        %1026 = vmatprep.subr.mxu0 0.0
        %1027 = vmatpush1.msra.mxu0 0.0
        %1028 = vmatprep.subr.mxu0 0.0
        %1029 = vmatpush1.msra.mxu0 0.0
        %1030 = vmatprep.subr.mxu0 0.0
        %1031 = vmatpush1.msra.mxu0 0.0
        %1032 = vmatprep.subr.mxu0 0.0
        %1033 = vmatpush1.msra.mxu0 0.0
        %1034 = vmatprep.subr.mxu0 0.0
        %1035 = vmatpush1.msra.mxu0 0.0
        %1036 = vmatprep.subr.mxu0 0.0
        %1037 = vmatpush1.msra.mxu0 0.0
        %1038 = vmatprep.subr.mxu0 0.0
        %1039 = vmatpush1.msra.mxu0 0.0
        %1040 = vmatprep.subr.mxu0 0.0
        %1041 = vmatpush1.msra.mxu0 0.0
        %1042 = vmatprep.subr.mxu0 0.0
        %1043 = vmatpush1.msra.mxu0 0.0
        %1044 = vmatprep.subr.mxu0 0.0
        %1045 = vmatpush1.msra.mxu0 0.0
        %1046 = vmatprep.subr.mxu0 0.0
        %1047 = vmatpush1.msra.mxu0 0.0
        %1048 = vmatprep.subr.mxu0 0.0
        %1049 = vmatpush1.msra.mxu0 0.0
        %1050 = vmatprep.subr.mxu0 0.0
        %1051 = vmatpush1.msra.mxu0 0.0
        %1052 = vmatprep.subr.mxu0 0.0
        %1053 = vmatpush1.msra.mxu0 0.0
        %1054 = vmatprep.subr.mxu0 0.0
        %1055 = vmatpush1.msra.mxu0 0.0
        %1056 = vmatprep.subr.mxu0 0.0
        %1057 = vmatpush1.msra.mxu0 0.0
        %1058 = vmatprep.subr.mxu0 0.0
        %1059 = vmatpush1.msra.mxu0 0.0
        %1060 = vmatprep.subr.mxu0 0.0
        %1061 = vmatpush1.msra.mxu0 0.0
        %1062 = vmatprep.subr.mxu0 0.0
        %1063 = vmatpush1.msra.mxu0 0.0
        %1064 = vmatprep.subr.mxu0 0.0
        %1065 = vmatpush1.msra.mxu0 0.0
        %1066 = vmatprep.subr.mxu0 0.0
        %1067 = vmatpush1.msra.mxu0 0.0
        %1068 = vmatprep.mubr.f32.mxu0 0.0
        %1069 = vmatmul.mubr.f32.gmra.mrb[0].mxu0 %v1002
        %v1070 = vpop.f32.mrb[0].mxu0
        %v1071 = vadd.f32 0.0, %v1070
        %v1072 = vpop.f32.mrb[0].mxu0
        %1073 = vdwg.mxu0
        %v1074 = vsel %vm424, %v999, 0
        %1076 = vmatprep.subr.mxu0 0.0
        %1077 = vmatpush1.msra.mxu0 %v289
        %1078 = vmatprep.subr.mxu0 0.0
        %1079 = vmatpush1.msra.mxu0 0.0
        %1080 = vmatprep.subr.mxu0 0.0
        %1081 = vmatpush1.msra.mxu0 0.0
        %1082 = vmatprep.subr.mxu0 0.0
        %1083 = vmatpush1.msra.mxu0 0.0
        %1084 = vmatprep.subr.mxu0 0.0
        %1085 = vmatpush1.msra.mxu0 0.0
        %1086 = vmatprep.subr.mxu0 0.0
        %1087 = vmatpush1.msra.mxu0 0.0
        %1088 = vmatprep.subr.mxu0 0.0
        %1089 = vmatpush1.msra.mxu0 0.0
        %1090 = vmatprep.subr.mxu0 0.0
        %1091 = vmatpush1.msra.mxu0 0.0
        %1092 = vmatprep.subr.mxu0 0.0
        %1093 = vmatpush1.msra.mxu0 0.0
        %1094 = vmatprep.subr.mxu0 0.0
        %1095 = vmatpush1.msra.mxu0 0.0
        %1096 = vmatprep.subr.mxu0 0.0
        %1097 = vmatpush1.msra.mxu0 0.0
        %1098 = vmatprep.subr.mxu0 0.0
        %1099 = vmatpush1.msra.mxu0 0.0
        %1100 = vmatprep.subr.mxu0 0.0
        %1101 = vmatpush1.msra.mxu0 0.0
        %1102 = vmatprep.subr.mxu0 0.0
        %1103 = vmatpush1.msra.mxu0 0.0
        %1104 = vmatprep.subr.mxu0 0.0
        %1105 = vmatpush1.msra.mxu0 0.0
        %1106 = vmatprep.subr.mxu0 0.0
        %1107 = vmatpush1.msra.mxu0 0.0
        %1108 = vmatprep.subr.mxu0 0.0
        %1109 = vmatpush1.msra.mxu0 0.0
        %1110 = vmatprep.subr.mxu0 0.0
        %1111 = vmatpush1.msra.mxu0 0.0
        %1112 = vmatprep.subr.mxu0 0.0
        %1113 = vmatpush1.msra.mxu0 0.0
        %1114 = vmatprep.subr.mxu0 0.0
        %1115 = vmatpush1.msra.mxu0 0.0
        %1116 = vmatprep.subr.mxu0 0.0
        %1117 = vmatpush1.msra.mxu0 0.0
        %1118 = vmatprep.subr.mxu0 0.0
        %1119 = vmatpush1.msra.mxu0 0.0
        %1120 = vmatprep.subr.mxu0 0.0
        %1121 = vmatpush1.msra.mxu0 0.0
        %1122 = vmatprep.subr.mxu0 0.0
        %1123 = vmatpush1.msra.mxu0 0.0
        %1124 = vmatprep.subr.mxu0 0.0
        %1125 = vmatpush1.msra.mxu0 0.0
        %1126 = vmatprep.subr.mxu0 0.0
        %1127 = vmatpush1.msra.mxu0 0.0
        %1128 = vmatprep.subr.mxu0 0.0
        %1129 = vmatpush1.msra.mxu0 0.0
        %1130 = vmatprep.subr.mxu0 0.0
        %1131 = vmatpush1.msra.mxu0 0.0
        %1132 = vmatprep.subr.mxu0 0.0
        %1133 = vmatpush1.msra.mxu0 0.0
        %1134 = vmatprep.subr.mxu0 0.0
        %1135 = vmatpush1.msra.mxu0 0.0
        %1136 = vmatprep.subr.mxu0 0.0
        %1137 = vmatpush1.msra.mxu0 0.0
        %1138 = vmatprep.subr.mxu0 0.0
        %1139 = vmatpush1.msra.mxu0 0.0
        %1140 = vmatprep.mubr.f32.mxu0 0.0
        %1141 = vmatmul.mubr.f32.gmra.mrb[0].mxu0 %v1074
        %v1142 = vpop.f32.mrb[0].mxu0
        %v1143 = vadd.f32 %v1071, %v1142
        %v1144 = vpop.f32.mrb[0].mxu0
        %1145 = vdwg.mxu0
        %v1148 = vunpack.c.l.s4 1966171168
        %v1149 = vunpack.c.0.s8 %v1148
        %v1150 = vlaneseq
        %v1151 = vshrl.u32 %v1150, 7
        %v1152 = vsub.s32 %v1149, %v1151
        %v1153 = vrot.slane %v1143, %v1152
        %v1154 = vcombine.high %v1153, %v1153
        %v1156 = vunpack.c.l.s4 1966171168
        %v1157 = vunpack.c.0.s8 %v1156
        %v1158 = vlaneseq
        %v1159 = vshrl.u32 %v1158, 7
        %v1160 = vsub.s32 %v1157, %v1159
        %v1161 = vrot.slane %v1153, %v1160
        %v1163 = vunpack.c.l.s4 1966171168
        %v1164 = vunpack.c.0.s8 %v1163
        %v1165 = vlaneseq
        %v1166 = vshrl.u32 %v1165, 7
        %v1167 = vsub.s32 %v1164, %v1166
        %v1168 = vrot.slane %v1154, %v1167
        %1171 = vst.msk [vmem:[%s283 + $0x4] sm:$0x1] %vm594, %v1161
        %1172 = vst.msk [vmem:[%s283 + $0x14] sm:$0x1] %vm594, %v1168
        %v1173 = vcombine.high %v1161, %v1161
        %v1174 = vcombine.high %v1168, %v1168
        %1177 = vst.msk [vmem:[%s283 + $0x5] sm:$0x1] %vm594, %v1173
        %1178 = vst.msk [vmem:[%s283 + $0x15] sm:$0x1] %vm594, %v1174
        %v1179 = vld [vmem:[%s255 + $0x3] sm:$0x1]
        %v1180 = vld [vmem:[%s255 + $0xb] sm:$0x1]
        %v1181 = vld [vmem:[%s255 + $0x13] sm:$0x1]
        %v1182 = vld [vmem:[%s255 + $0x1b] sm:$0x1]
        %v1183 = vpack.c.bf16 %v1179, %v1179
        %v1184 = vpack.c.bf16 %v1180, %v1180
        %v1185 = vpack.c.bf16 %v1181, %v1181
        %v1186 = vpack.c.bf16 %v1182, %v1182
        %v1191 = vunpack.c.l.b16 %v1183
        %v1192 = vunpack.c.l.b16 %v1184
        %v1193 = vunpack.c.l.b16 %v1185
        %v1194 = vunpack.c.l.b16 %v1186
        %v1195 = vrot.slane %v1192, 7
        %v1196 = vsel %vm308, %v1195, %v1191
        %v1197 = vrot.slane %v1193, 6
        %v1198 = vsel %vm311, %v1197, %v1196
        %v1199 = vrot.slane %v1194, 5
        %v1200 = vsel %vm314, %v1199, %v1198
        %v1201 = vpack.c.b16 %v1200, %v1200
        %1202 = vrot.lane.b32.xlu0 %v1201, 127
        %v1203 = vpop.permute.xlu0 %1202
        %v1205 = vsel %vm319, %v1203, 0
        %v1206 = vld [vmem:[%s255 + $0x4] sm:$0x1]
        %v1207 = vld [vmem:[%s255 + $0xc] sm:$0x1]
        %v1208 = vld [vmem:[%s255 + $0x14] sm:$0x1]
        %v1209 = vld [vmem:[%s255 + $0x1c] sm:$0x1]
        %v1210 = vpack.c.bf16 %v1206, %v1206
        %v1211 = vpack.c.bf16 %v1207, %v1207
        %v1212 = vpack.c.bf16 %v1208, %v1208
        %v1213 = vpack.c.bf16 %v1209, %v1209
        %v1218 = vunpack.c.l.b16 %v1210
        %v1219 = vunpack.c.l.b16 %v1211
        %v1220 = vunpack.c.l.b16 %v1212
        %v1221 = vunpack.c.l.b16 %v1213
        %v1222 = vrot.slane %v1219, 7
        %v1223 = vsel %vm308, %v1222, %v1218
        %v1224 = vrot.slane %v1220, 6
        %v1225 = vsel %vm311, %v1224, %v1223
        %v1226 = vrot.slane %v1221, 5
        %v1227 = vsel %vm314, %v1226, %v1225
        %v1228 = vpack.c.b16 %v1227, %v1227
        %1229 = vrot.lane.b32.xlu0 %v1228, 127
        %v1230 = vpop.permute.xlu0 %1229
        %v1232 = vsel %vm319, %v1230, 0
        %v1234 = vrot.slane %v1205, 6
        %v1236 = vrot.slane %v1232, 2
        %v1239 = vsel %vm354, %v1201, %v1234
        %v1241 = vsel %vm358, %v1239, %v1228
        %v1243 = vsel %vm361, %v1241, %v1236
        %1245 = vmatprep.subr.bf16.mxu0 0
        %1246 = vmatpush1.bf16.msra.mxu0 %v1243
        %1247 = vmatprep.subr.bf16.mxu0 0
        %1248 = vmatpush1.bf16.msra.mxu0 0
        %1249 = vmatprep.subr.bf16.mxu0 0
        %1250 = vmatpush1.bf16.msra.mxu0 0
        %1251 = vmatprep.subr.bf16.mxu0 0
        %1252 = vmatpush1.bf16.msra.mxu0 0
        %1253 = vmatprep.subr.bf16.mxu0 0
        %1254 = vmatpush1.bf16.msra.mxu0 0
        %1255 = vmatprep.subr.bf16.mxu0 0
        %1256 = vmatpush1.bf16.msra.mxu0 0
        %1257 = vmatprep.subr.bf16.mxu0 0
        %1258 = vmatpush1.bf16.msra.mxu0 0
        %1259 = vmatprep.subr.bf16.mxu0 0
        %1260 = vmatpush1.bf16.msra.mxu0 0
        %1261 = vmatprep.subr.bf16.mxu0 0
        %1262 = vmatpush1.bf16.msra.mxu0 0
        %1263 = vmatprep.subr.bf16.mxu0 0
        %1264 = vmatpush1.bf16.msra.mxu0 0
        %1265 = vmatprep.subr.bf16.mxu0 0
        %1266 = vmatpush1.bf16.msra.mxu0 0
        %1267 = vmatprep.subr.bf16.mxu0 0
        %1268 = vmatpush1.bf16.msra.mxu0 0
        %1269 = vmatprep.subr.bf16.mxu0 0
        %1270 = vmatpush1.bf16.msra.mxu0 0
        %1271 = vmatprep.subr.bf16.mxu0 0
        %1272 = vmatpush1.bf16.msra.mxu0 0
        %1273 = vmatprep.subr.bf16.mxu0 0
        %1274 = vmatpush1.bf16.msra.mxu0 0
        %1275 = vmatprep.subr.bf16.mxu0 0
        %1276 = vmatpush1.bf16.msra.mxu0 0
        %1277 = vmatprep.mubr.bf16.mxu0 0
        %1278 = vmatmul.mubr.bf16.gmra.mrb[0].mxu0 %v367
        %v1279 = vpop.f32.mrb[0].mxu0
        %v1280 = vadd.f32 0.0, %v1279
        %v1281 = vpop.f32.mrb[0].mxu0
        %v1282 = vpop.f32.mrb[0].mxu0
        %v1283 = vpop.f32.mrb[0].mxu0
        %1284 = vdwg.mxu0
        %v1285 = vmul.f32 %v1280, %v412
        %v1286 = vadd.f32 %v1285, %v418
        %v1287 = vmax.f32 %v1286, 0.0
        %v1289 = vrot.slane %v1287, 4
        %v1290 = vsel %vm424, %v1289, 0
        %1292 = vmatprep.subr.mxu0 0.0
        %1293 = vmatpush1.msra.mxu0 %v290
        %1294 = vmatprep.subr.mxu0 0.0
        %1295 = vmatpush1.msra.mxu0 0.0
        %1296 = vmatprep.subr.mxu0 0.0
        %1297 = vmatpush1.msra.mxu0 0.0
        %1298 = vmatprep.subr.mxu0 0.0
        %1299 = vmatpush1.msra.mxu0 0.0
        %1300 = vmatprep.subr.mxu0 0.0
        %1301 = vmatpush1.msra.mxu0 0.0
        %1302 = vmatprep.subr.mxu0 0.0
        %1303 = vmatpush1.msra.mxu0 0.0
        %1304 = vmatprep.subr.mxu0 0.0
        %1305 = vmatpush1.msra.mxu0 0.0
        %1306 = vmatprep.subr.mxu0 0.0
        %1307 = vmatpush1.msra.mxu0 0.0
        %1308 = vmatprep.subr.mxu0 0.0
        %1309 = vmatpush1.msra.mxu0 0.0
        %1310 = vmatprep.subr.mxu0 0.0
        %1311 = vmatpush1.msra.mxu0 0.0
        %1312 = vmatprep.subr.mxu0 0.0
        %1313 = vmatpush1.msra.mxu0 0.0
        %1314 = vmatprep.subr.mxu0 0.0
        %1315 = vmatpush1.msra.mxu0 0.0
        %1316 = vmatprep.subr.mxu0 0.0
        %1317 = vmatpush1.msra.mxu0 0.0
        %1318 = vmatprep.subr.mxu0 0.0
        %1319 = vmatpush1.msra.mxu0 0.0
        %1320 = vmatprep.subr.mxu0 0.0
        %1321 = vmatpush1.msra.mxu0 0.0
        %1322 = vmatprep.subr.mxu0 0.0
        %1323 = vmatpush1.msra.mxu0 0.0
        %1324 = vmatprep.subr.mxu0 0.0
        %1325 = vmatpush1.msra.mxu0 0.0
        %1326 = vmatprep.subr.mxu0 0.0
        %1327 = vmatpush1.msra.mxu0 0.0
        %1328 = vmatprep.subr.mxu0 0.0
        %1329 = vmatpush1.msra.mxu0 0.0
        %1330 = vmatprep.subr.mxu0 0.0
        %1331 = vmatpush1.msra.mxu0 0.0
        %1332 = vmatprep.subr.mxu0 0.0
        %1333 = vmatpush1.msra.mxu0 0.0
        %1334 = vmatprep.subr.mxu0 0.0
        %1335 = vmatpush1.msra.mxu0 0.0
        %1336 = vmatprep.subr.mxu0 0.0
        %1337 = vmatpush1.msra.mxu0 0.0
        %1338 = vmatprep.subr.mxu0 0.0
        %1339 = vmatpush1.msra.mxu0 0.0
        %1340 = vmatprep.subr.mxu0 0.0
        %1341 = vmatpush1.msra.mxu0 0.0
        %1342 = vmatprep.subr.mxu0 0.0
        %1343 = vmatpush1.msra.mxu0 0.0
        %1344 = vmatprep.subr.mxu0 0.0
        %1345 = vmatpush1.msra.mxu0 0.0
        %1346 = vmatprep.subr.mxu0 0.0
        %1347 = vmatpush1.msra.mxu0 0.0
        %1348 = vmatprep.subr.mxu0 0.0
        %1349 = vmatpush1.msra.mxu0 0.0
        %1350 = vmatprep.subr.mxu0 0.0
        %1351 = vmatpush1.msra.mxu0 0.0
        %1352 = vmatprep.subr.mxu0 0.0
        %1353 = vmatpush1.msra.mxu0 0.0
        %1354 = vmatprep.subr.mxu0 0.0
        %1355 = vmatpush1.msra.mxu0 0.0
        %1356 = vmatprep.mubr.f32.mxu0 0.0
        %1357 = vmatmul.mubr.f32.gmra.mrb[0].mxu0 %v1290
        %v1358 = vpop.f32.mrb[0].mxu0
        %v1359 = vadd.f32 0.0, %v1358
        %v1360 = vpop.f32.mrb[0].mxu0
        %1361 = vdwg.mxu0
        %v1362 = vsel %vm424, %v1287, 0
        %1364 = vmatprep.subr.mxu0 0.0
        %1365 = vmatpush1.msra.mxu0 %v289
        %1366 = vmatprep.subr.mxu0 0.0
        %1367 = vmatpush1.msra.mxu0 0.0
        %1368 = vmatprep.subr.mxu0 0.0
        %1369 = vmatpush1.msra.mxu0 0.0
        %1370 = vmatprep.subr.mxu0 0.0
        %1371 = vmatpush1.msra.mxu0 0.0
        %1372 = vmatprep.subr.mxu0 0.0
        %1373 = vmatpush1.msra.mxu0 0.0
        %1374 = vmatprep.subr.mxu0 0.0
        %1375 = vmatpush1.msra.mxu0 0.0
        %1376 = vmatprep.subr.mxu0 0.0
        %1377 = vmatpush1.msra.mxu0 0.0
        %1378 = vmatprep.subr.mxu0 0.0
        %1379 = vmatpush1.msra.mxu0 0.0
        %1380 = vmatprep.subr.mxu0 0.0
        %1381 = vmatpush1.msra.mxu0 0.0
        %1382 = vmatprep.subr.mxu0 0.0
        %1383 = vmatpush1.msra.mxu0 0.0
        %1384 = vmatprep.subr.mxu0 0.0
        %1385 = vmatpush1.msra.mxu0 0.0
        %1386 = vmatprep.subr.mxu0 0.0
        %1387 = vmatpush1.msra.mxu0 0.0
        %1388 = vmatprep.subr.mxu0 0.0
        %1389 = vmatpush1.msra.mxu0 0.0
        %1390 = vmatprep.subr.mxu0 0.0
        %1391 = vmatpush1.msra.mxu0 0.0
        %1392 = vmatprep.subr.mxu0 0.0
        %1393 = vmatpush1.msra.mxu0 0.0
        %1394 = vmatprep.subr.mxu0 0.0
        %1395 = vmatpush1.msra.mxu0 0.0
        %1396 = vmatprep.subr.mxu0 0.0
        %1397 = vmatpush1.msra.mxu0 0.0
        %1398 = vmatprep.subr.mxu0 0.0
        %1399 = vmatpush1.msra.mxu0 0.0
        %1400 = vmatprep.subr.mxu0 0.0
        %1401 = vmatpush1.msra.mxu0 0.0
        %1402 = vmatprep.subr.mxu0 0.0
        %1403 = vmatpush1.msra.mxu0 0.0
        %1404 = vmatprep.subr.mxu0 0.0
        %1405 = vmatpush1.msra.mxu0 0.0
        %1406 = vmatprep.subr.mxu0 0.0
        %1407 = vmatpush1.msra.mxu0 0.0
        %1408 = vmatprep.subr.mxu0 0.0
        %1409 = vmatpush1.msra.mxu0 0.0
        %1410 = vmatprep.subr.mxu0 0.0
        %1411 = vmatpush1.msra.mxu0 0.0
        %1412 = vmatprep.subr.mxu0 0.0
        %1413 = vmatpush1.msra.mxu0 0.0
        %1414 = vmatprep.subr.mxu0 0.0
        %1415 = vmatpush1.msra.mxu0 0.0
        %1416 = vmatprep.subr.mxu0 0.0
        %1417 = vmatpush1.msra.mxu0 0.0
        %1418 = vmatprep.subr.mxu0 0.0
        %1419 = vmatpush1.msra.mxu0 0.0
        %1420 = vmatprep.subr.mxu0 0.0
        %1421 = vmatpush1.msra.mxu0 0.0
        %1422 = vmatprep.subr.mxu0 0.0
        %1423 = vmatpush1.msra.mxu0 0.0
        %1424 = vmatprep.subr.mxu0 0.0
        %1425 = vmatpush1.msra.mxu0 0.0
        %1426 = vmatprep.subr.mxu0 0.0
        %1427 = vmatpush1.msra.mxu0 0.0
        %1428 = vmatprep.mubr.f32.mxu0 0.0
        %1429 = vmatmul.mubr.f32.gmra.mrb[0].mxu0 %v1362
        %v1430 = vpop.f32.mrb[0].mxu0
        %v1431 = vadd.f32 %v1359, %v1430
        %v1432 = vpop.f32.mrb[0].mxu0
        %1433 = vdwg.mxu0
        %v1436 = vunpack.c.l.s4 1966171168
        %v1437 = vunpack.c.0.s8 %v1436
        %v1438 = vlaneseq
        %v1439 = vshrl.u32 %v1438, 7
        %v1440 = vsub.s32 %v1437, %v1439
        %v1441 = vrot.slane %v1431, %v1440
        %v1442 = vcombine.high %v1441, %v1441
        %v1444 = vunpack.c.l.s4 1966171168
        %v1445 = vunpack.c.0.s8 %v1444
        %v1446 = vlaneseq
        %v1447 = vshrl.u32 %v1446, 7
        %v1448 = vsub.s32 %v1445, %v1447
        %v1449 = vrot.slane %v1441, %v1448
        %v1451 = vunpack.c.l.s4 1966171168
        %v1452 = vunpack.c.0.s8 %v1451
        %v1453 = vlaneseq
        %v1454 = vshrl.u32 %v1453, 7
        %v1455 = vsub.s32 %v1452, %v1454
        %v1456 = vrot.slane %v1442, %v1455
        %1459 = vst.msk [vmem:[%s283 + $0x6] sm:$0x1] %vm594, %v1449
        %1460 = vst.msk [vmem:[%s283 + $0x16] sm:$0x1] %vm594, %v1456
        %v1461 = vcombine.high %v1449, %v1449
        %v1462 = vcombine.high %v1456, %v1456
        %1465 = vst.msk [vmem:[%s283 + $0x7] sm:$0x1] %vm594, %v1461
        %1466 = vst.msk [vmem:[%s283 + $0x17] sm:$0x1] %vm594, %v1462
        %v1467 = vld [vmem:[%s255 + $0x4] sm:$0x1]
        %v1468 = vld [vmem:[%s255 + $0xc] sm:$0x1]
        %v1469 = vld [vmem:[%s255 + $0x14] sm:$0x1]
        %v1470 = vld [vmem:[%s255 + $0x1c] sm:$0x1]
        %v1471 = vpack.c.bf16 %v1467, %v1467
        %v1472 = vpack.c.bf16 %v1468, %v1468
        %v1473 = vpack.c.bf16 %v1469, %v1469
        %v1474 = vpack.c.bf16 %v1470, %v1470
        %v1479 = vunpack.c.l.b16 %v1471
        %v1480 = vunpack.c.l.b16 %v1472
        %v1481 = vunpack.c.l.b16 %v1473
        %v1482 = vunpack.c.l.b16 %v1474
        %v1483 = vrot.slane %v1480, 7
        %v1484 = vsel %vm308, %v1483, %v1479
        %v1485 = vrot.slane %v1481, 6
        %v1486 = vsel %vm311, %v1485, %v1484
        %v1487 = vrot.slane %v1482, 5
        %v1488 = vsel %vm314, %v1487, %v1486
        %v1489 = vpack.c.b16 %v1488, %v1488
        %1490 = vrot.lane.b32.xlu0 %v1489, 127
        %v1491 = vpop.permute.xlu0 %1490
        %v1493 = vsel %vm319, %v1491, 0
        %v1494 = vld [vmem:[%s255 + $0x5] sm:$0x1]
        %v1495 = vld [vmem:[%s255 + $0xd] sm:$0x1]
        %v1496 = vld [vmem:[%s255 + $0x15] sm:$0x1]
        %v1497 = vld [vmem:[%s255 + $0x1d] sm:$0x1]
        %v1498 = vpack.c.bf16 %v1494, %v1494
        %v1499 = vpack.c.bf16 %v1495, %v1495
        %v1500 = vpack.c.bf16 %v1496, %v1496
        %v1501 = vpack.c.bf16 %v1497, %v1497
        %v1506 = vunpack.c.l.b16 %v1498
        %v1507 = vunpack.c.l.b16 %v1499
        %v1508 = vunpack.c.l.b16 %v1500
        %v1509 = vunpack.c.l.b16 %v1501
        %v1510 = vrot.slane %v1507, 7
        %v1511 = vsel %vm308, %v1510, %v1506
        %v1512 = vrot.slane %v1508, 6
        %v1513 = vsel %vm311, %v1512, %v1511
        %v1514 = vrot.slane %v1509, 5
        %v1515 = vsel %vm314, %v1514, %v1513
        %v1516 = vpack.c.b16 %v1515, %v1515
        %1517 = vrot.lane.b32.xlu0 %v1516, 127
        %v1518 = vpop.permute.xlu0 %1517
        %v1520 = vsel %vm319, %v1518, 0
        %v1522 = vrot.slane %v1493, 6
        %v1524 = vrot.slane %v1520, 2
        %v1527 = vsel %vm354, %v1489, %v1522
        %v1529 = vsel %vm358, %v1527, %v1516
        %v1531 = vsel %vm361, %v1529, %v1524
        %1533 = vmatprep.subr.bf16.mxu0 0
        %1534 = vmatpush1.bf16.msra.mxu0 %v1531
        %1535 = vmatprep.subr.bf16.mxu0 0
        %1536 = vmatpush1.bf16.msra.mxu0 0
        %1537 = vmatprep.subr.bf16.mxu0 0
        %1538 = vmatpush1.bf16.msra.mxu0 0
        %1539 = vmatprep.subr.bf16.mxu0 0
        %1540 = vmatpush1.bf16.msra.mxu0 0
        %1541 = vmatprep.subr.bf16.mxu0 0
        %1542 = vmatpush1.bf16.msra.mxu0 0
        %1543 = vmatprep.subr.bf16.mxu0 0
        %1544 = vmatpush1.bf16.msra.mxu0 0
        %1545 = vmatprep.subr.bf16.mxu0 0
        %1546 = vmatpush1.bf16.msra.mxu0 0
        %1547 = vmatprep.subr.bf16.mxu0 0
        %1548 = vmatpush1.bf16.msra.mxu0 0
        %1549 = vmatprep.subr.bf16.mxu0 0
        %1550 = vmatpush1.bf16.msra.mxu0 0
        %1551 = vmatprep.subr.bf16.mxu0 0
        %1552 = vmatpush1.bf16.msra.mxu0 0
        %1553 = vmatprep.subr.bf16.mxu0 0
        %1554 = vmatpush1.bf16.msra.mxu0 0
        %1555 = vmatprep.subr.bf16.mxu0 0
        %1556 = vmatpush1.bf16.msra.mxu0 0
        %1557 = vmatprep.subr.bf16.mxu0 0
        %1558 = vmatpush1.bf16.msra.mxu0 0
        %1559 = vmatprep.subr.bf16.mxu0 0
        %1560 = vmatpush1.bf16.msra.mxu0 0
        %1561 = vmatprep.subr.bf16.mxu0 0
        %1562 = vmatpush1.bf16.msra.mxu0 0
        %1563 = vmatprep.subr.bf16.mxu0 0
        %1564 = vmatpush1.bf16.msra.mxu0 0
        %1565 = vmatprep.mubr.bf16.mxu0 0
        %1566 = vmatmul.mubr.bf16.gmra.mrb[0].mxu0 %v367
        %v1567 = vpop.f32.mrb[0].mxu0
        %v1568 = vadd.f32 0.0, %v1567
        %v1569 = vpop.f32.mrb[0].mxu0
        %v1570 = vpop.f32.mrb[0].mxu0
        %v1571 = vpop.f32.mrb[0].mxu0
        %1572 = vdwg.mxu0
        %v1573 = vmul.f32 %v1568, %v412
        %v1574 = vadd.f32 %v1573, %v418
        %v1575 = vmax.f32 %v1574, 0.0
        %v1577 = vrot.slane %v1575, 4
        %v1578 = vsel %vm424, %v1577, 0
        %1580 = vmatprep.subr.mxu0 0.0
        %1581 = vmatpush1.msra.mxu0 %v290
        %1582 = vmatprep.subr.mxu0 0.0
        %1583 = vmatpush1.msra.mxu0 0.0
        %1584 = vmatprep.subr.mxu0 0.0
        %1585 = vmatpush1.msra.mxu0 0.0
        %1586 = vmatprep.subr.mxu0 0.0
        %1587 = vmatpush1.msra.mxu0 0.0
        %1588 = vmatprep.subr.mxu0 0.0
        %1589 = vmatpush1.msra.mxu0 0.0
        %1590 = vmatprep.subr.mxu0 0.0
        %1591 = vmatpush1.msra.mxu0 0.0
        %1592 = vmatprep.subr.mxu0 0.0
        %1593 = vmatpush1.msra.mxu0 0.0
        %1594 = vmatprep.subr.mxu0 0.0
        %1595 = vmatpush1.msra.mxu0 0.0
        %1596 = vmatprep.subr.mxu0 0.0
        %1597 = vmatpush1.msra.mxu0 0.0
        %1598 = vmatprep.subr.mxu0 0.0
        %1599 = vmatpush1.msra.mxu0 0.0
        %1600 = vmatprep.subr.mxu0 0.0
        %1601 = vmatpush1.msra.mxu0 0.0
        %1602 = vmatprep.subr.mxu0 0.0
        %1603 = vmatpush1.msra.mxu0 0.0
        %1604 = vmatprep.subr.mxu0 0.0
        %1605 = vmatpush1.msra.mxu0 0.0
        %1606 = vmatprep.subr.mxu0 0.0
        %1607 = vmatpush1.msra.mxu0 0.0
        %1608 = vmatprep.subr.mxu0 0.0
        %1609 = vmatpush1.msra.mxu0 0.0
        %1610 = vmatprep.subr.mxu0 0.0
        %1611 = vmatpush1.msra.mxu0 0.0
        %1612 = vmatprep.subr.mxu0 0.0
        %1613 = vmatpush1.msra.mxu0 0.0
        %1614 = vmatprep.subr.mxu0 0.0
        %1615 = vmatpush1.msra.mxu0 0.0
        %1616 = vmatprep.subr.mxu0 0.0
        %1617 = vmatpush1.msra.mxu0 0.0
        %1618 = vmatprep.subr.mxu0 0.0
        %1619 = vmatpush1.msra.mxu0 0.0
        %1620 = vmatprep.subr.mxu0 0.0
        %1621 = vmatpush1.msra.mxu0 0.0
        %1622 = vmatprep.subr.mxu0 0.0
        %1623 = vmatpush1.msra.mxu0 0.0
        %1624 = vmatprep.subr.mxu0 0.0
        %1625 = vmatpush1.msra.mxu0 0.0
        %1626 = vmatprep.subr.mxu0 0.0
        %1627 = vmatpush1.msra.mxu0 0.0
        %1628 = vmatprep.subr.mxu0 0.0
        %1629 = vmatpush1.msra.mxu0 0.0
        %1630 = vmatprep.subr.mxu0 0.0
        %1631 = vmatpush1.msra.mxu0 0.0
        %1632 = vmatprep.subr.mxu0 0.0
        %1633 = vmatpush1.msra.mxu0 0.0
        %1634 = vmatprep.subr.mxu0 0.0
        %1635 = vmatpush1.msra.mxu0 0.0
        %1636 = vmatprep.subr.mxu0 0.0
        %1637 = vmatpush1.msra.mxu0 0.0
        %1638 = vmatprep.subr.mxu0 0.0
        %1639 = vmatpush1.msra.mxu0 0.0
        %1640 = vmatprep.subr.mxu0 0.0
        %1641 = vmatpush1.msra.mxu0 0.0
        %1642 = vmatprep.subr.mxu0 0.0
        %1643 = vmatpush1.msra.mxu0 0.0
        %1644 = vmatprep.mubr.f32.mxu0 0.0
        %1645 = vmatmul.mubr.f32.gmra.mrb[0].mxu0 %v1578
        %v1646 = vpop.f32.mrb[0].mxu0
        %v1647 = vadd.f32 0.0, %v1646
        %v1648 = vpop.f32.mrb[0].mxu0
        %1649 = vdwg.mxu0
        %v1650 = vsel %vm424, %v1575, 0
        %1652 = vmatprep.subr.mxu0 0.0
        %1653 = vmatpush1.msra.mxu0 %v289
        %1654 = vmatprep.subr.mxu0 0.0
        %1655 = vmatpush1.msra.mxu0 0.0
        %1656 = vmatprep.subr.mxu0 0.0
        %1657 = vmatpush1.msra.mxu0 0.0
        %1658 = vmatprep.subr.mxu0 0.0
        %1659 = vmatpush1.msra.mxu0 0.0
        %1660 = vmatprep.subr.mxu0 0.0
        %1661 = vmatpush1.msra.mxu0 0.0
        %1662 = vmatprep.subr.mxu0 0.0
        %1663 = vmatpush1.msra.mxu0 0.0
        %1664 = vmatprep.subr.mxu0 0.0
        %1665 = vmatpush1.msra.mxu0 0.0
        %1666 = vmatprep.subr.mxu0 0.0
        %1667 = vmatpush1.msra.mxu0 0.0
        %1668 = vmatprep.subr.mxu0 0.0
        %1669 = vmatpush1.msra.mxu0 0.0
        %1670 = vmatprep.subr.mxu0 0.0
        %1671 = vmatpush1.msra.mxu0 0.0
        %1672 = vmatprep.subr.mxu0 0.0
        %1673 = vmatpush1.msra.mxu0 0.0
        %1674 = vmatprep.subr.mxu0 0.0
        %1675 = vmatpush1.msra.mxu0 0.0
        %1676 = vmatprep.subr.mxu0 0.0
        %1677 = vmatpush1.msra.mxu0 0.0
        %1678 = vmatprep.subr.mxu0 0.0
        %1679 = vmatpush1.msra.mxu0 0.0
        %1680 = vmatprep.subr.mxu0 0.0
        %1681 = vmatpush1.msra.mxu0 0.0
        %1682 = vmatprep.subr.mxu0 0.0
        %1683 = vmatpush1.msra.mxu0 0.0
        %1684 = vmatprep.subr.mxu0 0.0
        %1685 = vmatpush1.msra.mxu0 0.0
        %1686 = vmatprep.subr.mxu0 0.0
        %1687 = vmatpush1.msra.mxu0 0.0
        %1688 = vmatprep.subr.mxu0 0.0
        %1689 = vmatpush1.msra.mxu0 0.0
        %1690 = vmatprep.subr.mxu0 0.0
        %1691 = vmatpush1.msra.mxu0 0.0
        %1692 = vmatprep.subr.mxu0 0.0
        %1693 = vmatpush1.msra.mxu0 0.0
        %1694 = vmatprep.subr.mxu0 0.0
        %1695 = vmatpush1.msra.mxu0 0.0
        %1696 = vmatprep.subr.mxu0 0.0
        %1697 = vmatpush1.msra.mxu0 0.0
        %1698 = vmatprep.subr.mxu0 0.0
        %1699 = vmatpush1.msra.mxu0 0.0
        %1700 = vmatprep.subr.mxu0 0.0
        %1701 = vmatpush1.msra.mxu0 0.0
        %1702 = vmatprep.subr.mxu0 0.0
        %1703 = vmatpush1.msra.mxu0 0.0
        %1704 = vmatprep.subr.mxu0 0.0
        %1705 = vmatpush1.msra.mxu0 0.0
        %1706 = vmatprep.subr.mxu0 0.0
        %1707 = vmatpush1.msra.mxu0 0.0
        %1708 = vmatprep.subr.mxu0 0.0
        %1709 = vmatpush1.msra.mxu0 0.0
        %1710 = vmatprep.subr.mxu0 0.0
        %1711 = vmatpush1.msra.mxu0 0.0
        %1712 = vmatprep.subr.mxu0 0.0
        %1713 = vmatpush1.msra.mxu0 0.0
        %1714 = vmatprep.subr.mxu0 0.0
        %1715 = vmatpush1.msra.mxu0 0.0
        %1716 = vmatprep.mubr.f32.mxu0 0.0
        %1717 = vmatmul.mubr.f32.gmra.mrb[0].mxu0 %v1650
        %v1718 = vpop.f32.mrb[0].mxu0
        %v1719 = vadd.f32 %v1647, %v1718
        %v1720 = vpop.f32.mrb[0].mxu0
        %1721 = vdwg.mxu0
        %v1724 = vunpack.c.l.s4 1966171168
        %v1725 = vunpack.c.0.s8 %v1724
        %v1726 = vlaneseq
        %v1727 = vshrl.u32 %v1726, 7
        %v1728 = vsub.s32 %v1725, %v1727
        %v1729 = vrot.slane %v1719, %v1728
        %v1730 = vcombine.high %v1729, %v1729
        %v1732 = vunpack.c.l.s4 1966171168
        %v1733 = vunpack.c.0.s8 %v1732
        %v1734 = vlaneseq
        %v1735 = vshrl.u32 %v1734, 7
        %v1736 = vsub.s32 %v1733, %v1735
        %v1737 = vrot.slane %v1729, %v1736
        %v1739 = vunpack.c.l.s4 1966171168
        %v1740 = vunpack.c.0.s8 %v1739
        %v1741 = vlaneseq
        %v1742 = vshrl.u32 %v1741, 7
        %v1743 = vsub.s32 %v1740, %v1742
        %v1744 = vrot.slane %v1730, %v1743
        %1747 = vst.msk [vmem:[%s283 + $0x8] sm:$0x1] %vm594, %v1737
        %1748 = vst.msk [vmem:[%s283 + $0x18] sm:$0x1] %vm594, %v1744
        %v1749 = vcombine.high %v1737, %v1737
        %v1750 = vcombine.high %v1744, %v1744
        %1753 = vst.msk [vmem:[%s283 + $0x9] sm:$0x1] %vm594, %v1749
        %1754 = vst.msk [vmem:[%s283 + $0x19] sm:$0x1] %vm594, %v1750
        %v1755 = vld [vmem:[%s255 + $0x5] sm:$0x1]
        %v1756 = vld [vmem:[%s255 + $0xd] sm:$0x1]
        %v1757 = vld [vmem:[%s255 + $0x15] sm:$0x1]
        %v1758 = vld [vmem:[%s255 + $0x1d] sm:$0x1]
        %v1759 = vpack.c.bf16 %v1755, %v1755
        %v1760 = vpack.c.bf16 %v1756, %v1756
        %v1761 = vpack.c.bf16 %v1757, %v1757
        %v1762 = vpack.c.bf16 %v1758, %v1758
        %v1767 = vunpack.c.l.b16 %v1759
        %v1768 = vunpack.c.l.b16 %v1760
        %v1769 = vunpack.c.l.b16 %v1761
        %v1770 = vunpack.c.l.b16 %v1762
        %v1771 = vrot.slane %v1768, 7
        %v1772 = vsel %vm308, %v1771, %v1767
        %v1773 = vrot.slane %v1769, 6
        %v1774 = vsel %vm311, %v1773, %v1772
        %v1775 = vrot.slane %v1770, 5
        %v1776 = vsel %vm314, %v1775, %v1774
        %v1777 = vpack.c.b16 %v1776, %v1776
        %1778 = vrot.lane.b32.xlu0 %v1777, 127
        %v1779 = vpop.permute.xlu0 %1778
        %v1781 = vsel %vm319, %v1779, 0
        %v1782 = vld [vmem:[%s255 + $0x6] sm:$0x1]
        %v1783 = vld [vmem:[%s255 + $0xe] sm:$0x1]
        %v1784 = vld [vmem:[%s255 + $0x16] sm:$0x1]
        %v1785 = vld [vmem:[%s255 + $0x1e] sm:$0x1]
        %v1786 = vpack.c.bf16 %v1782, %v1782
        %v1787 = vpack.c.bf16 %v1783, %v1783
        %v1788 = vpack.c.bf16 %v1784, %v1784
        %v1789 = vpack.c.bf16 %v1785, %v1785
        %v1794 = vunpack.c.l.b16 %v1786
        %v1795 = vunpack.c.l.b16 %v1787
        %v1796 = vunpack.c.l.b16 %v1788
        %v1797 = vunpack.c.l.b16 %v1789
        %v1798 = vrot.slane %v1795, 7
        %v1799 = vsel %vm308, %v1798, %v1794
        %v1800 = vrot.slane %v1796, 6
        %v1801 = vsel %vm311, %v1800, %v1799
        %v1802 = vrot.slane %v1797, 5
        %v1803 = vsel %vm314, %v1802, %v1801
        %v1804 = vpack.c.b16 %v1803, %v1803
        %1805 = vrot.lane.b32.xlu0 %v1804, 127
        %v1806 = vpop.permute.xlu0 %1805
        %v1808 = vsel %vm319, %v1806, 0
        %v1810 = vrot.slane %v1781, 6
        %v1812 = vrot.slane %v1808, 2
        %v1815 = vsel %vm354, %v1777, %v1810
        %v1817 = vsel %vm358, %v1815, %v1804
        %v1819 = vsel %vm361, %v1817, %v1812
        %1821 = vmatprep.subr.bf16.mxu0 0
        %1822 = vmatpush1.bf16.msra.mxu0 %v1819
        %1823 = vmatprep.subr.bf16.mxu0 0
        %1824 = vmatpush1.bf16.msra.mxu0 0
        %1825 = vmatprep.subr.bf16.mxu0 0
        %1826 = vmatpush1.bf16.msra.mxu0 0
        %1827 = vmatprep.subr.bf16.mxu0 0
        %1828 = vmatpush1.bf16.msra.mxu0 0
        %1829 = vmatprep.subr.bf16.mxu0 0
        %1830 = vmatpush1.bf16.msra.mxu0 0
        %1831 = vmatprep.subr.bf16.mxu0 0
        %1832 = vmatpush1.bf16.msra.mxu0 0
        %1833 = vmatprep.subr.bf16.mxu0 0
        %1834 = vmatpush1.bf16.msra.mxu0 0
        %1835 = vmatprep.subr.bf16.mxu0 0
        %1836 = vmatpush1.bf16.msra.mxu0 0
        %1837 = vmatprep.subr.bf16.mxu0 0
        %1838 = vmatpush1.bf16.msra.mxu0 0
        %1839 = vmatprep.subr.bf16.mxu0 0
        %1840 = vmatpush1.bf16.msra.mxu0 0
        %1841 = vmatprep.subr.bf16.mxu0 0
        %1842 = vmatpush1.bf16.msra.mxu0 0
        %1843 = vmatprep.subr.bf16.mxu0 0
        %1844 = vmatpush1.bf16.msra.mxu0 0
        %1845 = vmatprep.subr.bf16.mxu0 0
        %1846 = vmatpush1.bf16.msra.mxu0 0
        %1847 = vmatprep.subr.bf16.mxu0 0
        %1848 = vmatpush1.bf16.msra.mxu0 0
        %1849 = vmatprep.subr.bf16.mxu0 0
        %1850 = vmatpush1.bf16.msra.mxu0 0
        %1851 = vmatprep.subr.bf16.mxu0 0
        %1852 = vmatpush1.bf16.msra.mxu0 0
        %1853 = vmatprep.mubr.bf16.mxu0 0
        %1854 = vmatmul.mubr.bf16.gmra.mrb[0].mxu0 %v367
        %v1855 = vpop.f32.mrb[0].mxu0
        %v1856 = vadd.f32 0.0, %v1855
        %v1857 = vpop.f32.mrb[0].mxu0
        %v1858 = vpop.f32.mrb[0].mxu0
        %v1859 = vpop.f32.mrb[0].mxu0
        %1860 = vdwg.mxu0
        %v1861 = vmul.f32 %v1856, %v412
        %v1862 = vadd.f32 %v1861, %v418
        %v1863 = vmax.f32 %v1862, 0.0
        %v1865 = vrot.slane %v1863, 4
        %v1866 = vsel %vm424, %v1865, 0
        %1868 = vmatprep.subr.mxu0 0.0
        %1869 = vmatpush1.msra.mxu0 %v290
        %1870 = vmatprep.subr.mxu0 0.0
        %1871 = vmatpush1.msra.mxu0 0.0
        %1872 = vmatprep.subr.mxu0 0.0
        %1873 = vmatpush1.msra.mxu0 0.0
        %1874 = vmatprep.subr.mxu0 0.0
        %1875 = vmatpush1.msra.mxu0 0.0
        %1876 = vmatprep.subr.mxu0 0.0
        %1877 = vmatpush1.msra.mxu0 0.0
        %1878 = vmatprep.subr.mxu0 0.0
        %1879 = vmatpush1.msra.mxu0 0.0
        %1880 = vmatprep.subr.mxu0 0.0
        %1881 = vmatpush1.msra.mxu0 0.0
        %1882 = vmatprep.subr.mxu0 0.0
        %1883 = vmatpush1.msra.mxu0 0.0
        %1884 = vmatprep.subr.mxu0 0.0
        %1885 = vmatpush1.msra.mxu0 0.0
        %1886 = vmatprep.subr.mxu0 0.0
        %1887 = vmatpush1.msra.mxu0 0.0
        %1888 = vmatprep.subr.mxu0 0.0
        %1889 = vmatpush1.msra.mxu0 0.0
        %1890 = vmatprep.subr.mxu0 0.0
        %1891 = vmatpush1.msra.mxu0 0.0
        %1892 = vmatprep.subr.mxu0 0.0
        %1893 = vmatpush1.msra.mxu0 0.0
        %1894 = vmatprep.subr.mxu0 0.0
        %1895 = vmatpush1.msra.mxu0 0.0
        %1896 = vmatprep.subr.mxu0 0.0
        %1897 = vmatpush1.msra.mxu0 0.0
        %1898 = vmatprep.subr.mxu0 0.0
        %1899 = vmatpush1.msra.mxu0 0.0
        %1900 = vmatprep.subr.mxu0 0.0
        %1901 = vmatpush1.msra.mxu0 0.0
        %1902 = vmatprep.subr.mxu0 0.0
        %1903 = vmatpush1.msra.mxu0 0.0
        %1904 = vmatprep.subr.mxu0 0.0
        %1905 = vmatpush1.msra.mxu0 0.0
        %1906 = vmatprep.subr.mxu0 0.0
        %1907 = vmatpush1.msra.mxu0 0.0
        %1908 = vmatprep.subr.mxu0 0.0
        %1909 = vmatpush1.msra.mxu0 0.0
        %1910 = vmatprep.subr.mxu0 0.0
        %1911 = vmatpush1.msra.mxu0 0.0
        %1912 = vmatprep.subr.mxu0 0.0
        %1913 = vmatpush1.msra.mxu0 0.0
        %1914 = vmatprep.subr.mxu0 0.0
        %1915 = vmatpush1.msra.mxu0 0.0
        %1916 = vmatprep.subr.mxu0 0.0
        %1917 = vmatpush1.msra.mxu0 0.0
        %1918 = vmatprep.subr.mxu0 0.0
        %1919 = vmatpush1.msra.mxu0 0.0
        %1920 = vmatprep.subr.mxu0 0.0
        %1921 = vmatpush1.msra.mxu0 0.0
        %1922 = vmatprep.subr.mxu0 0.0
        %1923 = vmatpush1.msra.mxu0 0.0
        %1924 = vmatprep.subr.mxu0 0.0
        %1925 = vmatpush1.msra.mxu0 0.0
        %1926 = vmatprep.subr.mxu0 0.0
        %1927 = vmatpush1.msra.mxu0 0.0
        %1928 = vmatprep.subr.mxu0 0.0
        %1929 = vmatpush1.msra.mxu0 0.0
        %1930 = vmatprep.subr.mxu0 0.0
        %1931 = vmatpush1.msra.mxu0 0.0
        %1932 = vmatprep.mubr.f32.mxu0 0.0
        %1933 = vmatmul.mubr.f32.gmra.mrb[0].mxu0 %v1866
        %v1934 = vpop.f32.mrb[0].mxu0
        %v1935 = vadd.f32 0.0, %v1934
        %v1936 = vpop.f32.mrb[0].mxu0
        %1937 = vdwg.mxu0
        %v1938 = vsel %vm424, %v1863, 0
        %1940 = vmatprep.subr.mxu0 0.0
        %1941 = vmatpush1.msra.mxu0 %v289
        %1942 = vmatprep.subr.mxu0 0.0
        %1943 = vmatpush1.msra.mxu0 0.0
        %1944 = vmatprep.subr.mxu0 0.0
        %1945 = vmatpush1.msra.mxu0 0.0
        %1946 = vmatprep.subr.mxu0 0.0
        %1947 = vmatpush1.msra.mxu0 0.0
        %1948 = vmatprep.subr.mxu0 0.0
        %1949 = vmatpush1.msra.mxu0 0.0
        %1950 = vmatprep.subr.mxu0 0.0
        %1951 = vmatpush1.msra.mxu0 0.0
        %1952 = vmatprep.subr.mxu0 0.0
        %1953 = vmatpush1.msra.mxu0 0.0
        %1954 = vmatprep.subr.mxu0 0.0
        %1955 = vmatpush1.msra.mxu0 0.0
        %1956 = vmatprep.subr.mxu0 0.0
        %1957 = vmatpush1.msra.mxu0 0.0
        %1958 = vmatprep.subr.mxu0 0.0
        %1959 = vmatpush1.msra.mxu0 0.0
        %1960 = vmatprep.subr.mxu0 0.0
        %1961 = vmatpush1.msra.mxu0 0.0
        %1962 = vmatprep.subr.mxu0 0.0
        %1963 = vmatpush1.msra.mxu0 0.0
        %1964 = vmatprep.subr.mxu0 0.0
        %1965 = vmatpush1.msra.mxu0 0.0
        %1966 = vmatprep.subr.mxu0 0.0
        %1967 = vmatpush1.msra.mxu0 0.0
        %1968 = vmatprep.subr.mxu0 0.0
        %1969 = vmatpush1.msra.mxu0 0.0
        %1970 = vmatprep.subr.mxu0 0.0
        %1971 = vmatpush1.msra.mxu0 0.0
        %1972 = vmatprep.subr.mxu0 0.0
        %1973 = vmatpush1.msra.mxu0 0.0
        %1974 = vmatprep.subr.mxu0 0.0
        %1975 = vmatpush1.msra.mxu0 0.0
        %1976 = vmatprep.subr.mxu0 0.0
        %1977 = vmatpush1.msra.mxu0 0.0
        %1978 = vmatprep.subr.mxu0 0.0
        %1979 = vmatpush1.msra.mxu0 0.0
        %1980 = vmatprep.subr.mxu0 0.0
        %1981 = vmatpush1.msra.mxu0 0.0
        %1982 = vmatprep.subr.mxu0 0.0
        %1983 = vmatpush1.msra.mxu0 0.0
        %1984 = vmatprep.subr.mxu0 0.0
        %1985 = vmatpush1.msra.mxu0 0.0
        %1986 = vmatprep.subr.mxu0 0.0
        %1987 = vmatpush1.msra.mxu0 0.0
        %1988 = vmatprep.subr.mxu0 0.0
        %1989 = vmatpush1.msra.mxu0 0.0
        %1990 = vmatprep.subr.mxu0 0.0
        %1991 = vmatpush1.msra.mxu0 0.0
        %1992 = vmatprep.subr.mxu0 0.0
        %1993 = vmatpush1.msra.mxu0 0.0
        %1994 = vmatprep.subr.mxu0 0.0
        %1995 = vmatpush1.msra.mxu0 0.0
        %1996 = vmatprep.subr.mxu0 0.0
        %1997 = vmatpush1.msra.mxu0 0.0
        %1998 = vmatprep.subr.mxu0 0.0
        %1999 = vmatpush1.msra.mxu0 0.0
        %2000 = vmatprep.subr.mxu0 0.0
        %2001 = vmatpush1.msra.mxu0 0.0
        %2002 = vmatprep.subr.mxu0 0.0
        %2003 = vmatpush1.msra.mxu0 0.0
        %2004 = vmatprep.mubr.f32.mxu0 0.0
        %2005 = vmatmul.mubr.f32.gmra.mrb[0].mxu0 %v1938
        %v2006 = vpop.f32.mrb[0].mxu0
        %v2007 = vadd.f32 %v1935, %v2006
        %v2008 = vpop.f32.mrb[0].mxu0
        %2009 = vdwg.mxu0
        %v2012 = vunpack.c.l.s4 1966171168
        %v2013 = vunpack.c.0.s8 %v2012
        %v2014 = vlaneseq
        %v2015 = vshrl.u32 %v2014, 7
        %v2016 = vsub.s32 %v2013, %v2015
        %v2017 = vrot.slane %v2007, %v2016
        %v2018 = vcombine.high %v2017, %v2017
        %v2020 = vunpack.c.l.s4 1966171168
        %v2021 = vunpack.c.0.s8 %v2020
        %v2022 = vlaneseq
        %v2023 = vshrl.u32 %v2022, 7
        %v2024 = vsub.s32 %v2021, %v2023
        %v2025 = vrot.slane %v2017, %v2024
        %v2027 = vunpack.c.l.s4 1966171168
        %v2028 = vunpack.c.0.s8 %v2027
        %v2029 = vlaneseq
        %v2030 = vshrl.u32 %v2029, 7
        %v2031 = vsub.s32 %v2028, %v2030
        %v2032 = vrot.slane %v2018, %v2031
        %2035 = vst.msk [vmem:[%s283 + $0xa] sm:$0x1] %vm594, %v2025
        %2036 = vst.msk [vmem:[%s283 + $0x1a] sm:$0x1] %vm594, %v2032
        %v2037 = vcombine.high %v2025, %v2025
        %v2038 = vcombine.high %v2032, %v2032
        %2041 = vst.msk [vmem:[%s283 + $0xb] sm:$0x1] %vm594, %v2037
        %2042 = vst.msk [vmem:[%s283 + $0x1b] sm:$0x1] %vm594, %v2038
        %v2043 = vld [vmem:[%s255 + $0x6] sm:$0x1]
        %v2044 = vld [vmem:[%s255 + $0xe] sm:$0x1]
        %v2045 = vld [vmem:[%s255 + $0x16] sm:$0x1]
        %v2046 = vld [vmem:[%s255 + $0x1e] sm:$0x1]
        %v2047 = vpack.c.bf16 %v2043, %v2043
        %v2048 = vpack.c.bf16 %v2044, %v2044
        %v2049 = vpack.c.bf16 %v2045, %v2045
        %v2050 = vpack.c.bf16 %v2046, %v2046
        %v2055 = vunpack.c.l.b16 %v2047
        %v2056 = vunpack.c.l.b16 %v2048
        %v2057 = vunpack.c.l.b16 %v2049
        %v2058 = vunpack.c.l.b16 %v2050
        %v2059 = vrot.slane %v2056, 7
        %v2060 = vsel %vm308, %v2059, %v2055
        %v2061 = vrot.slane %v2057, 6
        %v2062 = vsel %vm311, %v2061, %v2060
        %v2063 = vrot.slane %v2058, 5
        %v2064 = vsel %vm314, %v2063, %v2062
        %v2065 = vpack.c.b16 %v2064, %v2064
        %2066 = vrot.lane.b32.xlu0 %v2065, 127
        %v2067 = vpop.permute.xlu0 %2066
        %v2069 = vsel %vm319, %v2067, 0
        %v2070 = vld [vmem:[%s255 + $0x7] sm:$0x1]
        %v2071 = vld [vmem:[%s255 + $0xf] sm:$0x1]
        %v2072 = vld [vmem:[%s255 + $0x17] sm:$0x1]
        %v2073 = vld [vmem:[%s255 + $0x1f] sm:$0x1]
        %v2074 = vpack.c.bf16 %v2070, %v2070
        %v2075 = vpack.c.bf16 %v2071, %v2071
        %v2076 = vpack.c.bf16 %v2072, %v2072
        %v2077 = vpack.c.bf16 %v2073, %v2073
        %v2082 = vunpack.c.l.b16 %v2074
        %v2083 = vunpack.c.l.b16 %v2075
        %v2084 = vunpack.c.l.b16 %v2076
        %v2085 = vunpack.c.l.b16 %v2077
        %v2086 = vrot.slane %v2083, 7
        %v2087 = vsel %vm308, %v2086, %v2082
        %v2088 = vrot.slane %v2084, 6
        %v2089 = vsel %vm311, %v2088, %v2087
        %v2090 = vrot.slane %v2085, 5
        %v2091 = vsel %vm314, %v2090, %v2089
        %v2092 = vpack.c.b16 %v2091, %v2091
        %2093 = vrot.lane.b32.xlu0 %v2092, 127
        %v2094 = vpop.permute.xlu0 %2093
        %v2096 = vsel %vm319, %v2094, 0
        %v2098 = vrot.slane %v2069, 6
        %v2100 = vrot.slane %v2096, 2
        %v2103 = vsel %vm354, %v2065, %v2098
        %v2105 = vsel %vm358, %v2103, %v2092
        %v2107 = vsel %vm361, %v2105, %v2100
        %2109 = vmatprep.subr.bf16.mxu0 0
        %2110 = vmatpush1.bf16.msra.mxu0 %v2107
        %2111 = vmatprep.subr.bf16.mxu0 0
        %2112 = vmatpush1.bf16.msra.mxu0 0
        %2113 = vmatprep.subr.bf16.mxu0 0
        %2114 = vmatpush1.bf16.msra.mxu0 0
        %2115 = vmatprep.subr.bf16.mxu0 0
        %2116 = vmatpush1.bf16.msra.mxu0 0
        %2117 = vmatprep.subr.bf16.mxu0 0
        %2118 = vmatpush1.bf16.msra.mxu0 0
        %2119 = vmatprep.subr.bf16.mxu0 0
        %2120 = vmatpush1.bf16.msra.mxu0 0
        %2121 = vmatprep.subr.bf16.mxu0 0
        %2122 = vmatpush1.bf16.msra.mxu0 0
        %2123 = vmatprep.subr.bf16.mxu0 0
        %2124 = vmatpush1.bf16.msra.mxu0 0
        %2125 = vmatprep.subr.bf16.mxu0 0
        %2126 = vmatpush1.bf16.msra.mxu0 0
        %2127 = vmatprep.subr.bf16.mxu0 0
        %2128 = vmatpush1.bf16.msra.mxu0 0
        %2129 = vmatprep.subr.bf16.mxu0 0
        %2130 = vmatpush1.bf16.msra.mxu0 0
        %2131 = vmatprep.subr.bf16.mxu0 0
        %2132 = vmatpush1.bf16.msra.mxu0 0
        %2133 = vmatprep.subr.bf16.mxu0 0
        %2134 = vmatpush1.bf16.msra.mxu0 0
        %2135 = vmatprep.subr.bf16.mxu0 0
        %2136 = vmatpush1.bf16.msra.mxu0 0
        %2137 = vmatprep.subr.bf16.mxu0 0
        %2138 = vmatpush1.bf16.msra.mxu0 0
        %2139 = vmatprep.subr.bf16.mxu0 0
        %2140 = vmatpush1.bf16.msra.mxu0 0
        %2141 = vmatprep.mubr.bf16.mxu0 0
        %2142 = vmatmul.mubr.bf16.gmra.mrb[0].mxu0 %v367
        %v2143 = vpop.f32.mrb[0].mxu0
        %v2144 = vadd.f32 0.0, %v2143
        %v2145 = vpop.f32.mrb[0].mxu0
        %v2146 = vpop.f32.mrb[0].mxu0
        %v2147 = vpop.f32.mrb[0].mxu0
        %2148 = vdwg.mxu0
        %v2149 = vmul.f32 %v2144, %v412
        %v2150 = vadd.f32 %v2149, %v418
        %v2151 = vmax.f32 %v2150, 0.0
        %v2153 = vrot.slane %v2151, 4
        %v2154 = vsel %vm424, %v2153, 0
        %2156 = vmatprep.subr.mxu0 0.0
        %2157 = vmatpush1.msra.mxu0 %v290
        %2158 = vmatprep.subr.mxu0 0.0
        %2159 = vmatpush1.msra.mxu0 0.0
        %2160 = vmatprep.subr.mxu0 0.0
        %2161 = vmatpush1.msra.mxu0 0.0
        %2162 = vmatprep.subr.mxu0 0.0
        %2163 = vmatpush1.msra.mxu0 0.0
        %2164 = vmatprep.subr.mxu0 0.0
        %2165 = vmatpush1.msra.mxu0 0.0
        %2166 = vmatprep.subr.mxu0 0.0
        %2167 = vmatpush1.msra.mxu0 0.0
        %2168 = vmatprep.subr.mxu0 0.0
        %2169 = vmatpush1.msra.mxu0 0.0
        %2170 = vmatprep.subr.mxu0 0.0
        %2171 = vmatpush1.msra.mxu0 0.0
        %2172 = vmatprep.subr.mxu0 0.0
        %2173 = vmatpush1.msra.mxu0 0.0
        %2174 = vmatprep.subr.mxu0 0.0
        %2175 = vmatpush1.msra.mxu0 0.0
        %2176 = vmatprep.subr.mxu0 0.0
        %2177 = vmatpush1.msra.mxu0 0.0
        %2178 = vmatprep.subr.mxu0 0.0
        %2179 = vmatpush1.msra.mxu0 0.0
        %2180 = vmatprep.subr.mxu0 0.0
        %2181 = vmatpush1.msra.mxu0 0.0
        %2182 = vmatprep.subr.mxu0 0.0
        %2183 = vmatpush1.msra.mxu0 0.0
        %2184 = vmatprep.subr.mxu0 0.0
        %2185 = vmatpush1.msra.mxu0 0.0
        %2186 = vmatprep.subr.mxu0 0.0
        %2187 = vmatpush1.msra.mxu0 0.0
        %2188 = vmatprep.subr.mxu0 0.0
        %2189 = vmatpush1.msra.mxu0 0.0
        %2190 = vmatprep.subr.mxu0 0.0
        %2191 = vmatpush1.msra.mxu0 0.0
        %2192 = vmatprep.subr.mxu0 0.0
        %2193 = vmatpush1.msra.mxu0 0.0
        %2194 = vmatprep.subr.mxu0 0.0
        %2195 = vmatpush1.msra.mxu0 0.0
        %2196 = vmatprep.subr.mxu0 0.0
        %2197 = vmatpush1.msra.mxu0 0.0
        %2198 = vmatprep.subr.mxu0 0.0
        %2199 = vmatpush1.msra.mxu0 0.0
        %2200 = vmatprep.subr.mxu0 0.0
        %2201 = vmatpush1.msra.mxu0 0.0
        %2202 = vmatprep.subr.mxu0 0.0
        %2203 = vmatpush1.msra.mxu0 0.0
        %2204 = vmatprep.subr.mxu0 0.0
        %2205 = vmatpush1.msra.mxu0 0.0
        %2206 = vmatprep.subr.mxu0 0.0
        %2207 = vmatpush1.msra.mxu0 0.0
        %2208 = vmatprep.subr.mxu0 0.0
        %2209 = vmatpush1.msra.mxu0 0.0
        %2210 = vmatprep.subr.mxu0 0.0
        %2211 = vmatpush1.msra.mxu0 0.0
        %2212 = vmatprep.subr.mxu0 0.0
        %2213 = vmatpush1.msra.mxu0 0.0
        %2214 = vmatprep.subr.mxu0 0.0
        %2215 = vmatpush1.msra.mxu0 0.0
        %2216 = vmatprep.subr.mxu0 0.0
        %2217 = vmatpush1.msra.mxu0 0.0
        %2218 = vmatprep.subr.mxu0 0.0
        %2219 = vmatpush1.msra.mxu0 0.0
        %2220 = vmatprep.mubr.f32.mxu0 0.0
        %2221 = vmatmul.mubr.f32.gmra.mrb[0].mxu0 %v2154
        %v2222 = vpop.f32.mrb[0].mxu0
        %v2223 = vadd.f32 0.0, %v2222
        %v2224 = vpop.f32.mrb[0].mxu0
        %2225 = vdwg.mxu0
        %v2226 = vsel %vm424, %v2151, 0
        %2228 = vmatprep.subr.mxu0 0.0
        %2229 = vmatpush1.msra.mxu0 %v289
        %2230 = vmatprep.subr.mxu0 0.0
        %2231 = vmatpush1.msra.mxu0 0.0
        %2232 = vmatprep.subr.mxu0 0.0
        %2233 = vmatpush1.msra.mxu0 0.0
        %2234 = vmatprep.subr.mxu0 0.0
        %2235 = vmatpush1.msra.mxu0 0.0
        %2236 = vmatprep.subr.mxu0 0.0
        %2237 = vmatpush1.msra.mxu0 0.0
        %2238 = vmatprep.subr.mxu0 0.0
        %2239 = vmatpush1.msra.mxu0 0.0
        %2240 = vmatprep.subr.mxu0 0.0
        %2241 = vmatpush1.msra.mxu0 0.0
        %2242 = vmatprep.subr.mxu0 0.0
        %2243 = vmatpush1.msra.mxu0 0.0
        %2244 = vmatprep.subr.mxu0 0.0
        %2245 = vmatpush1.msra.mxu0 0.0
        %2246 = vmatprep.subr.mxu0 0.0
        %2247 = vmatpush1.msra.mxu0 0.0
        %2248 = vmatprep.subr.mxu0 0.0
        %2249 = vmatpush1.msra.mxu0 0.0
        %2250 = vmatprep.subr.mxu0 0.0
        %2251 = vmatpush1.msra.mxu0 0.0
        %2252 = vmatprep.subr.mxu0 0.0
        %2253 = vmatpush1.msra.mxu0 0.0
        %2254 = vmatprep.subr.mxu0 0.0
        %2255 = vmatpush1.msra.mxu0 0.0
        %2256 = vmatprep.subr.mxu0 0.0
        %2257 = vmatpush1.msra.mxu0 0.0
        %2258 = vmatprep.subr.mxu0 0.0
        %2259 = vmatpush1.msra.mxu0 0.0
        %2260 = vmatprep.subr.mxu0 0.0
        %2261 = vmatpush1.msra.mxu0 0.0
        %2262 = vmatprep.subr.mxu0 0.0
        %2263 = vmatpush1.msra.mxu0 0.0
        %2264 = vmatprep.subr.mxu0 0.0
        %2265 = vmatpush1.msra.mxu0 0.0
        %2266 = vmatprep.subr.mxu0 0.0
        %2267 = vmatpush1.msra.mxu0 0.0
        %2268 = vmatprep.subr.mxu0 0.0
        %2269 = vmatpush1.msra.mxu0 0.0
        %2270 = vmatprep.subr.mxu0 0.0
        %2271 = vmatpush1.msra.mxu0 0.0
        %2272 = vmatprep.subr.mxu0 0.0
        %2273 = vmatpush1.msra.mxu0 0.0
        %2274 = vmatprep.subr.mxu0 0.0
        %2275 = vmatpush1.msra.mxu0 0.0
        %2276 = vmatprep.subr.mxu0 0.0
        %2277 = vmatpush1.msra.mxu0 0.0
        %2278 = vmatprep.subr.mxu0 0.0
        %2279 = vmatpush1.msra.mxu0 0.0
        %2280 = vmatprep.subr.mxu0 0.0
        %2281 = vmatpush1.msra.mxu0 0.0
        %2282 = vmatprep.subr.mxu0 0.0
        %2283 = vmatpush1.msra.mxu0 0.0
        %2284 = vmatprep.subr.mxu0 0.0
        %2285 = vmatpush1.msra.mxu0 0.0
        %2286 = vmatprep.subr.mxu0 0.0
        %2287 = vmatpush1.msra.mxu0 0.0
        %2288 = vmatprep.subr.mxu0 0.0
        %2289 = vmatpush1.msra.mxu0 0.0
        %2290 = vmatprep.subr.mxu0 0.0
        %2291 = vmatpush1.msra.mxu0 0.0
        %2292 = vmatprep.mubr.f32.mxu0 0.0
        %2293 = vmatmul.mubr.f32.gmra.mrb[0].mxu0 %v2226
        %v2294 = vpop.f32.mrb[0].mxu0
        %v2295 = vadd.f32 %v2223, %v2294
        %v2296 = vpop.f32.mrb[0].mxu0
        %2297 = vdwg.mxu0
        %v2300 = vunpack.c.l.s4 1966171168
        %v2301 = vunpack.c.0.s8 %v2300
        %v2302 = vlaneseq
        %v2303 = vshrl.u32 %v2302, 7
        %v2304 = vsub.s32 %v2301, %v2303
        %v2305 = vrot.slane %v2295, %v2304
        %v2306 = vcombine.high %v2305, %v2305
        %v2308 = vunpack.c.l.s4 1966171168
        %v2309 = vunpack.c.0.s8 %v2308
        %v2310 = vlaneseq
        %v2311 = vshrl.u32 %v2310, 7
        %v2312 = vsub.s32 %v2309, %v2311
        %v2313 = vrot.slane %v2305, %v2312
        %v2315 = vunpack.c.l.s4 1966171168
        %v2316 = vunpack.c.0.s8 %v2315
        %v2317 = vlaneseq
        %v2318 = vshrl.u32 %v2317, 7
        %v2319 = vsub.s32 %v2316, %v2318
        %v2320 = vrot.slane %v2306, %v2319
        %2323 = vst.msk [vmem:[%s283 + $0xc] sm:$0x1] %vm594, %v2313
        %2324 = vst.msk [vmem:[%s283 + $0x1c] sm:$0x1] %vm594, %v2320
        %v2325 = vcombine.high %v2313, %v2313
        %v2326 = vcombine.high %v2320, %v2320
        %2329 = vst.msk [vmem:[%s283 + $0xd] sm:$0x1] %vm594, %v2325
        %2330 = vst.msk [vmem:[%s283 + $0x1d] sm:$0x1] %vm594, %v2326
        %v2331 = vld [vmem:[%s255 + $0x7] sm:$0x1]
        %v2332 = vld [vmem:[%s255 + $0xf] sm:$0x1]
        %v2333 = vld [vmem:[%s255 + $0x17] sm:$0x1]
        %v2334 = vld [vmem:[%s255 + $0x1f] sm:$0x1]
        %v2335 = vpack.c.bf16 %v2331, %v2331
        %v2336 = vpack.c.bf16 %v2332, %v2332
        %v2337 = vpack.c.bf16 %v2333, %v2333
        %v2338 = vpack.c.bf16 %v2334, %v2334
        %v2343 = vunpack.c.l.b16 %v2335
        %v2344 = vunpack.c.l.b16 %v2336
        %v2345 = vunpack.c.l.b16 %v2337
        %v2346 = vunpack.c.l.b16 %v2338
        %v2347 = vrot.slane %v2344, 7
        %v2348 = vsel %vm308, %v2347, %v2343
        %v2349 = vrot.slane %v2345, 6
        %v2350 = vsel %vm311, %v2349, %v2348
        %v2351 = vrot.slane %v2346, 5
        %v2352 = vsel %vm314, %v2351, %v2350
        %v2353 = vpack.c.b16 %v2352, %v2352
        %2354 = vrot.lane.b32.xlu0 %v2353, 127
        %v2355 = vpop.permute.xlu0 %2354
        %v2357 = vsel %vm319, %v2355, 0
        %v2359 = vrot.slane %v2357, 6
        %v2361 = vrot.slane 0, 2
        %v2364 = vsel %vm354, %v2353, %v2359
        %v2365 = vsel %vm358, %v2364, 0
        %v2367 = vsel %vm361, %v2365, %v2361
        %2369 = vmatprep.subr.bf16.mxu0 0
        %2370 = vmatpush1.bf16.msra.mxu0 %v2367
        %2371 = vmatprep.subr.bf16.mxu0 0
        %2372 = vmatpush1.bf16.msra.mxu0 0
        %2373 = vmatprep.subr.bf16.mxu0 0
        %2374 = vmatpush1.bf16.msra.mxu0 0
        %2375 = vmatprep.subr.bf16.mxu0 0
        %2376 = vmatpush1.bf16.msra.mxu0 0
        %2377 = vmatprep.subr.bf16.mxu0 0
        %2378 = vmatpush1.bf16.msra.mxu0 0
        %2379 = vmatprep.subr.bf16.mxu0 0
        %2380 = vmatpush1.bf16.msra.mxu0 0
        %2381 = vmatprep.subr.bf16.mxu0 0
        %2382 = vmatpush1.bf16.msra.mxu0 0
        %2383 = vmatprep.subr.bf16.mxu0 0
        %2384 = vmatpush1.bf16.msra.mxu0 0
        %2385 = vmatprep.subr.bf16.mxu0 0
        %2386 = vmatpush1.bf16.msra.mxu0 0
        %2387 = vmatprep.subr.bf16.mxu0 0
        %2388 = vmatpush1.bf16.msra.mxu0 0
        %2389 = vmatprep.subr.bf16.mxu0 0
        %2390 = vmatpush1.bf16.msra.mxu0 0
        %2391 = vmatprep.subr.bf16.mxu0 0
        %2392 = vmatpush1.bf16.msra.mxu0 0
        %2393 = vmatprep.subr.bf16.mxu0 0
        %2394 = vmatpush1.bf16.msra.mxu0 0
        %2395 = vmatprep.subr.bf16.mxu0 0
        %2396 = vmatpush1.bf16.msra.mxu0 0
        %2397 = vmatprep.subr.bf16.mxu0 0
        %2398 = vmatpush1.bf16.msra.mxu0 0
        %2399 = vmatprep.subr.bf16.mxu0 0
        %2400 = vmatpush1.bf16.msra.mxu0 0
        %2401 = vmatprep.mubr.bf16.mxu0 0
        %2402 = vmatmul.mubr.bf16.gmra.mrb[0].mxu0 %v367
        %v2403 = vpop.f32.mrb[0].mxu0
        %v2404 = vadd.f32 0.0, %v2403
        %v2405 = vpop.f32.mrb[0].mxu0
        %v2406 = vpop.f32.mrb[0].mxu0
        %v2407 = vpop.f32.mrb[0].mxu0
        %2408 = vdwg.mxu0
        %v2409 = vmul.f32 %v2404, %v412
        %v2410 = vadd.f32 %v2409, %v418
        %v2411 = vmax.f32 %v2410, 0.0
        %v2413 = vrot.slane %v2411, 4
        %v2414 = vsel %vm424, %v2413, 0
        %2416 = vmatprep.subr.mxu0 0.0
        %2417 = vmatpush1.msra.mxu0 %v290
        %2418 = vmatprep.subr.mxu0 0.0
        %2419 = vmatpush1.msra.mxu0 0.0
        %2420 = vmatprep.subr.mxu0 0.0
        %2421 = vmatpush1.msra.mxu0 0.0
        %2422 = vmatprep.subr.mxu0 0.0
        %2423 = vmatpush1.msra.mxu0 0.0
        %2424 = vmatprep.subr.mxu0 0.0
        %2425 = vmatpush1.msra.mxu0 0.0
        %2426 = vmatprep.subr.mxu0 0.0
        %2427 = vmatpush1.msra.mxu0 0.0
        %2428 = vmatprep.subr.mxu0 0.0
        %2429 = vmatpush1.msra.mxu0 0.0
        %2430 = vmatprep.subr.mxu0 0.0
        %2431 = vmatpush1.msra.mxu0 0.0
        %2432 = vmatprep.subr.mxu0 0.0
        %2433 = vmatpush1.msra.mxu0 0.0
        %2434 = vmatprep.subr.mxu0 0.0
        %2435 = vmatpush1.msra.mxu0 0.0
        %2436 = vmatprep.subr.mxu0 0.0
        %2437 = vmatpush1.msra.mxu0 0.0
        %2438 = vmatprep.subr.mxu0 0.0
        %2439 = vmatpush1.msra.mxu0 0.0
        %2440 = vmatprep.subr.mxu0 0.0
        %2441 = vmatpush1.msra.mxu0 0.0
        %2442 = vmatprep.subr.mxu0 0.0
        %2443 = vmatpush1.msra.mxu0 0.0
        %2444 = vmatprep.subr.mxu0 0.0
        %2445 = vmatpush1.msra.mxu0 0.0
        %2446 = vmatprep.subr.mxu0 0.0
        %2447 = vmatpush1.msra.mxu0 0.0
        %2448 = vmatprep.subr.mxu0 0.0
        %2449 = vmatpush1.msra.mxu0 0.0
        %2450 = vmatprep.subr.mxu0 0.0
        %2451 = vmatpush1.msra.mxu0 0.0
        %2452 = vmatprep.subr.mxu0 0.0
        %2453 = vmatpush1.msra.mxu0 0.0
        %2454 = vmatprep.subr.mxu0 0.0
        %2455 = vmatpush1.msra.mxu0 0.0
        %2456 = vmatprep.subr.mxu0 0.0
        %2457 = vmatpush1.msra.mxu0 0.0
        %2458 = vmatprep.subr.mxu0 0.0
        %2459 = vmatpush1.msra.mxu0 0.0
        %2460 = vmatprep.subr.mxu0 0.0
        %2461 = vmatpush1.msra.mxu0 0.0
        %2462 = vmatprep.subr.mxu0 0.0
        %2463 = vmatpush1.msra.mxu0 0.0
        %2464 = vmatprep.subr.mxu0 0.0
        %2465 = vmatpush1.msra.mxu0 0.0
        %2466 = vmatprep.subr.mxu0 0.0
        %2467 = vmatpush1.msra.mxu0 0.0
        %2468 = vmatprep.subr.mxu0 0.0
        %2469 = vmatpush1.msra.mxu0 0.0
        %2470 = vmatprep.subr.mxu0 0.0
        %2471 = vmatpush1.msra.mxu0 0.0
        %2472 = vmatprep.subr.mxu0 0.0
        %2473 = vmatpush1.msra.mxu0 0.0
        %2474 = vmatprep.subr.mxu0 0.0
        %2475 = vmatpush1.msra.mxu0 0.0
        %2476 = vmatprep.subr.mxu0 0.0
        %2477 = vmatpush1.msra.mxu0 0.0
        %2478 = vmatprep.subr.mxu0 0.0
        %2479 = vmatpush1.msra.mxu0 0.0
        %2480 = vmatprep.mubr.f32.mxu0 0.0
        %2481 = vmatmul.mubr.f32.gmra.mrb[0].mxu0 %v2414
        %v2482 = vpop.f32.mrb[0].mxu0
        %v2483 = vadd.f32 0.0, %v2482
        %v2484 = vpop.f32.mrb[0].mxu0
        %2485 = vdwg.mxu0
        %v2486 = vsel %vm424, %v2411, 0
        %2488 = vmatprep.subr.mxu0 0.0
        %2489 = vmatpush1.msra.mxu0 %v289
        %2490 = vmatprep.subr.mxu0 0.0
        %2491 = vmatpush1.msra.mxu0 0.0
        %2492 = vmatprep.subr.mxu0 0.0
        %2493 = vmatpush1.msra.mxu0 0.0
        %2494 = vmatprep.subr.mxu0 0.0
        %2495 = vmatpush1.msra.mxu0 0.0
        %2496 = vmatprep.subr.mxu0 0.0
        %2497 = vmatpush1.msra.mxu0 0.0
        %2498 = vmatprep.subr.mxu0 0.0
        %2499 = vmatpush1.msra.mxu0 0.0
        %2500 = vmatprep.subr.mxu0 0.0
        %2501 = vmatpush1.msra.mxu0 0.0
        %2502 = vmatprep.subr.mxu0 0.0
        %2503 = vmatpush1.msra.mxu0 0.0
        %2504 = vmatprep.subr.mxu0 0.0
        %2505 = vmatpush1.msra.mxu0 0.0
        %2506 = vmatprep.subr.mxu0 0.0
        %2507 = vmatpush1.msra.mxu0 0.0
        %2508 = vmatprep.subr.mxu0 0.0
        %2509 = vmatpush1.msra.mxu0 0.0
        %2510 = vmatprep.subr.mxu0 0.0
        %2511 = vmatpush1.msra.mxu0 0.0
        %2512 = vmatprep.subr.mxu0 0.0
        %2513 = vmatpush1.msra.mxu0 0.0
        %2514 = vmatprep.subr.mxu0 0.0
        %2515 = vmatpush1.msra.mxu0 0.0
        %2516 = vmatprep.subr.mxu0 0.0
        %2517 = vmatpush1.msra.mxu0 0.0
        %2518 = vmatprep.subr.mxu0 0.0
        %2519 = vmatpush1.msra.mxu0 0.0
        %2520 = vmatprep.subr.mxu0 0.0
        %2521 = vmatpush1.msra.mxu0 0.0
        %2522 = vmatprep.subr.mxu0 0.0
        %2523 = vmatpush1.msra.mxu0 0.0
        %2524 = vmatprep.subr.mxu0 0.0
        %2525 = vmatpush1.msra.mxu0 0.0
        %2526 = vmatprep.subr.mxu0 0.0
        %2527 = vmatpush1.msra.mxu0 0.0
        %2528 = vmatprep.subr.mxu0 0.0
        %2529 = vmatpush1.msra.mxu0 0.0
        %2530 = vmatprep.subr.mxu0 0.0
        %2531 = vmatpush1.msra.mxu0 0.0
        %2532 = vmatprep.subr.mxu0 0.0
        %2533 = vmatpush1.msra.mxu0 0.0
        %2534 = vmatprep.subr.mxu0 0.0
        %2535 = vmatpush1.msra.mxu0 0.0
        %2536 = vmatprep.subr.mxu0 0.0
        %2537 = vmatpush1.msra.mxu0 0.0
        %2538 = vmatprep.subr.mxu0 0.0
        %2539 = vmatpush1.msra.mxu0 0.0
        %2540 = vmatprep.subr.mxu0 0.0
        %2541 = vmatpush1.msra.mxu0 0.0
        %2542 = vmatprep.subr.mxu0 0.0
        %2543 = vmatpush1.msra.mxu0 0.0
        %2544 = vmatprep.subr.mxu0 0.0
        %2545 = vmatpush1.msra.mxu0 0.0
        %2546 = vmatprep.subr.mxu0 0.0
        %2547 = vmatpush1.msra.mxu0 0.0
        %2548 = vmatprep.subr.mxu0 0.0
        %2549 = vmatpush1.msra.mxu0 0.0
        %2550 = vmatprep.subr.mxu0 0.0
        %2551 = vmatpush1.msra.mxu0 0.0
        %2552 = vmatprep.mubr.f32.mxu0 0.0
        %2553 = vmatmul.mubr.f32.gmra.mrb[0].mxu0 %v2486
        %v2554 = vpop.f32.mrb[0].mxu0
        %v2555 = vadd.f32 %v2483, %v2554
        %v2556 = vpop.f32.mrb[0].mxu0
        %2557 = vdwg.mxu0
        %v2560 = vunpack.c.l.s4 1966171168
        %v2561 = vunpack.c.0.s8 %v2560
        %v2562 = vlaneseq
        %v2563 = vshrl.u32 %v2562, 7
        %v2564 = vsub.s32 %v2561, %v2563
        %v2565 = vrot.slane %v2555, %v2564
        %v2566 = vcombine.high %v2565, %v2565
        %v2568 = vunpack.c.l.s4 1966171168
        %v2569 = vunpack.c.0.s8 %v2568
        %v2570 = vlaneseq
        %v2571 = vshrl.u32 %v2570, 7
        %v2572 = vsub.s32 %v2569, %v2571
        %v2573 = vrot.slane %v2565, %v2572
        %v2575 = vunpack.c.l.s4 1966171168
        %v2576 = vunpack.c.0.s8 %v2575
        %v2577 = vlaneseq
        %v2578 = vshrl.u32 %v2577, 7
        %v2579 = vsub.s32 %v2576, %v2578
        %v2580 = vrot.slane %v2566, %v2579
        %2583 = vst.msk [vmem:[%s283 + $0xe] sm:$0x1] %vm594, %v2573
        %2584 = vst.msk [vmem:[%s283 + $0x1e] sm:$0x1] %vm594, %v2580
        %v2585 = vcombine.high %v2573, %v2573
        %v2586 = vcombine.high %v2580, %v2580
        %2589 = vst.msk [vmem:[%s283 + $0xf] sm:$0x1] %vm594, %v2585
        %2590 = vst.msk [vmem:[%s283 + $0x1f] sm:$0x1] %vm594, %v2586
        %s2591 = sand.u32 %s176, 1
        %s2592 = scalar_lea.sflag [#allocation4], %s2591
        %s2593 = sand.u32 %s176, 1
        %s2594 = smul.addr %s2593, 32
        %s2595 = scalar_lea.vmem [#allocation5], %s2594
        // Predicated region
        $region49: #{tpu_custom_call.1} parent=43 // pred_check
          %p2596 = pneg %p186
        $region50: #{tpu_custom_call.1} parent=43 // pred_check_branch
          %2598 = sbr.rel (%p2596) target = $region52
        $region51: #{tpu_custom_call.1} parent=43 // pred_region
          %s2599 = smul.u32 2, %s28
          %s2601 = ssub.s32 512, 512
          %2602 = vsyncadd %s2592, %s2601
          %s2603 = smul.addr %s27, 4
          %s2604 = sadd.s32 %s2599, %s2603
          %s2605 = smul.addr %s2604, 128
          %s2606 = scalar_lea.hbm %s6, %s2605
          %s2607 = sshll.u32 %s2595, 4
          %s2608 = int_to_ptr.vmem [resolvable:$true] %s2607
          %2613 = dma.vmem_to_hbm [thread:$0]  %s2608, 512, %s2606, %s2592, 128, 128, 8
        $region52: #{tpu_custom_call.1} parent=43 // pred_fallthru
          _
      $region44: #{tpu_custom_call.1} parent=5 // pred_fallthru
        _
      %p2614 = scmp.le.s32.totalorder 2, %s18
      // Predicated region
      $region53: #{tpu_custom_call.1} parent=5 // pred_check
        %p2615 = pneg %p2614
      $region54: #{tpu_custom_call.1} parent=5 // pred_check_branch
        %2617 = sbr.rel (%p2615) target = $region56
      $region55: #{tpu_custom_call.1} parent=5 // pred_region
        %s2618 = ssub.s32 %s18, 2
        // Predicated region
        $region57: #{tpu_custom_call.1} parent=55 // pred_check
          %p2619 = pneg %p192
        $region58: #{tpu_custom_call.1} parent=55 // pred_check_branch
          %2621 = sbr.rel (%p2619) target = $region60
        $region59: #{tpu_custom_call.1} parent=55 // pred_region
          %s2622 = sand.u32 %s177, 1
          %s2623 = scalar_lea.sflag [#allocation4], %s2622
          %s2624 = sand.u32 %s177, 1
          %s2625 = smul.addr %s2624, 32
          %s2626 = scalar_lea.vmem [#allocation5], %s2625
          %2627 = dma.done %s2623, 512
        $region60: #{tpu_custom_call.1} parent=55 // pred_fallthru
          _
      $region56: #{tpu_custom_call.1} parent=5 // pred_fallthru
        _
    $region6: #{tpu_custom_call.1} parent=1 // loop_footer
      %s22 = sadd.s32 1, %s18
    $region7: #{tpu_custom_call.1} parent=1 // loop_footer_branch
      %17 = sbr.rel target = $region3
    $region8: #{tpu_custom_call.1} parent=1 // loop_exit
      _
    %2628 = vsyncpa [#allocation3], 1
    %s2629 = scalar_lea.sflag [#allocation3], 1
    %2630 = vsyncpa %s2629, 1
    %2631 = vsyncpa [#allocation4], 1
    %s2632 = scalar_lea.sflag [#allocation4], 1
    %2633 = vsyncpa %s2632, 1

</llo_original>
